<compile_context>
chip_gen: v7x
topology: tpu7x:2x2x1
jax: 0.10.0
libtpu: 0.0.40
codegen_flags: <defaults>
</compile_context>

<pallas_src>
import jax
import jax.numpy as jnp
import numpy as np
from jax.experimental import pallas as pl
from jax.experimental.pallas import tpu as pltpu  # noqa: F401  (kept for parity)


_N, _H, _W, _CIN = 2, 16, 16, 3          # input (NHWC)
_HO, _WO = 4, 4                          # final 4x4 spatial grid
_M = _N * _HO * _WO                      # 32 output pixels = GEMM M dim
_K9 = 9                                  # 3x3 taps


# ----------------------------------------------------------------------------
# Fused StemBlock kernel: 4 GEMMs + elementwise, everything in vregs
# ----------------------------------------------------------------------------
def _stem_kernel(p0_ref, w0_ref, sb0_ref, m16_ref,
                 w1_ref, sb1_ref, m8_ref,
                 w2_ref, sb2_ref,
                 w3_ref, sb3_ref, fmask_ref,
                 o_ref):
    f32 = jnp.float32
    hi = jax.lax.Precision.HIGHEST

    def bn_relu(acc, sb):                      # folded eval-mode BN + ReLU
        return jnp.maximum(acc * sb[0:1, :] + sb[1:2, :], 0.0)

    # ---- Stage 1: conv0 (3x3/s2/p1, 3->16) at every stride-2 tap of every
    # final 4x4 pixel.  Taps folded into K/N (block-diagonal weight): ONE GEMM.
    tfeat = bn_relu(jnp.dot(p0_ref[...], w0_ref[...],
                            preferred_element_type=f32, precision=hi),
                    sb0_ref)                                   # (32, 9*16)
    # Zero out-of-bounds taps.  This doubles as the zero padding of the left1
    # conv AND of the max-pool; for the pool it is only valid because feat is
    # post-ReLU (>= 0), so 0-padding == -inf padding.  (review concern #1)
    tfeat = tfeat * m16_ref[...]

    # ---- Stage 2 (right branch): 3x3/s2/p1 max-pool = max over the 9 tap
    # groups (8 elementwise maxes on lane slices; no MXU, no stores).
    right = tfeat[:, 0:16]
    for k in range(1, _K9):
        right = jnp.maximum(right, tfeat[:, 16 * k:16 * (k + 1)])  # (32, 16)

    # ---- Stage 3: left0 (1x1, 16->8) applied per tap: ONE block-diag GEMM.
    tl0 = bn_relu(jnp.dot(tfeat, w1_ref[...],
                          preferred_element_type=f32, precision=hi),
                  sb1_ref)                                     # (32, 9*8)
    tl0 = tl0 * m8_ref[...]          # exact zero padding for the left1 conv

    # ---- Stage 4: left1 (3x3/s2/p1, 8->16): taps already in lanes -> K=72.
    left = bn_relu(jnp.dot(tl0, w2_ref[...],
                           preferred_element_type=f32, precision=hi),
                   sb2_ref)                                    # (32, 16)

    # ---- Stage 5: fuse im2col (32, 288) built purely from vreg values:
    # 9 statically shifted row copies of the concat map + one mask multiply.
    # concat channels = [left(16) | right(16)]  (== torch.cat([left, right])).
    cmap = jnp.concatenate([left, right], axis=-1)             # (32, 32)
    zpad = jnp.zeros((5, cmap.shape[-1]), f32)
    cpad = jnp.concatenate([zpad, cmap, zpad], axis=0)         # (42, 32)
    parts = []
    for di in (-1, 0, 1):
        for dj in (-1, 0, 1):
            s = 4 * di + dj          # row shift in the (n, i, j) row ordering
            parts.append(cpad[5 + s:5 + s + _M, :])            # (32, 32)
    # fmask zeroes every tap whose (i+di, j+dj) falls outside the 4x4 grid
    # (including cross-batch / cross-row wrap rows of the shifted copies).
    fuse_in = jnp.concatenate(parts, axis=-1) * fmask_ref[...]  # (32, 288)

    # ---- Stage 6: fuse conv (3x3/s1/p1, 32->16): ONE K=288 GEMM.
    o_ref[...] = bn_relu(jnp.dot(fuse_in, w3_ref[...],
                                 preferred_element_type=f32, precision=hi),
                         sb3_ref)                              # (32, 16)


# ----------------------------------------------------------------------------
# Host-side prep: static index tables, im2col gather, tap-folded weights
# ----------------------------------------------------------------------------
def _static_index_tables():
    """Trace-time numpy index grids + validity masks (all static)."""
    m = np.arange(_M)
    n_i, i_i, j_i = m // (_HO * _WO), (m // _WO) % _HO, m % _WO

    # conv0 im2col columns: col = k*27 + (ty*3 + tx)*3 + ci,  k = dy*3 + dx
    col = np.arange(_K9 * 27)
    k_c, r_c = col // 27, col % 27
    dy_c, dx_c = k_c // 3, k_c % 3
    ty_c, tx_c = (r_c // 3) // 3, (r_c // 3) % 3
    ci_c = r_c % 3
    # input coords for feat position (2i+dy-1, 2j+dx-1), conv0 tap (ty, tx);
    # already offset by the host-side pad of 3.
    yy = 4 * i_i[:, None] + 2 * dy_c[None, :] + ty_c[None, :]
    xx = 4 * j_i[:, None] + 2 * dx_c[None, :] + tx_c[None, :]

    # validity of feat position (2i+dy-1, 2j+dx-1) inside the 8x8 feat map
    dy_k, dx_k = np.arange(_K9) // 3, np.arange(_K9) % 3
    fy = 2 * i_i[:, None] + dy_k[None, :] - 1
    fx = 2 * j_i[:, None] + dx_k[None, :] - 1
    v1 = ((fy >= 0) & (fy < 8) & (fx >= 0) & (fx < 8)).astype(np.float32)

    # validity of fuse tap position (i+di, j+dj) inside the 4x4 grid
    di_k, dj_k = np.arange(_K9) // 3 - 1, np.arange(_K9) % 3 - 1
    gi = i_i[:, None] + di_k[None, :]
    gj = j_i[:, None] + dj_k[None, :]
    vf = ((gi >= 0) & (gi < _HO) & (gj >= 0) & (gj < _WO)).astype(np.float32)

    return n_i, yy, xx, ci_c, v1, vf


def _fold_bn(scale, bias, reps):
    return jnp.stack([jnp.tile(scale.astype(jnp.float32), reps),
                      jnp.tile(bias.astype(jnp.float32), reps)])


def stem_block(x, params):
    assert x.shape == (_N, _H, _W, _CIN), x.shape
    f32 = jnp.float32
    x = x.astype(f32)

    w0, s0, b0 = params["conv"]     # (3,3,3,16)
    w1, s1, b1 = params["left0"]    # (1,1,16,8)
    w2, s2, b2 = params["left1"]    # (3,3,8,16)
    w3, s3, b3 = params["fuse"]     # (3,3,32,16)

    n_i, yy, xx, ci_c, v1, vf = _static_index_tables()

    # conv0 im2col at every (output pixel, stride-2 tap): (32, 9*27) = (32, 243)
    xpad = jnp.pad(x, ((0, 0), (3, 3), (3, 3), (0, 0)))
    p0 = xpad[n_i[:, None], yy, xx, ci_c[None, :]]

    # Tap-folded weights: every conv becomes exactly one GEMM.
    eye9 = jnp.eye(_K9, dtype=f32)
    w0bd = jnp.kron(eye9, w0.astype(f32).reshape(27, 16))     # (243, 144)
    w1bd = jnp.kron(eye9, w1.astype(f32).reshape(16, 8))      # (144,  72)
    w2f = w2.astype(f32).reshape(72, 16)                      # ( 72,  16)
    w3f = w3.astype(f32).reshape(288, 16)                     # (288,  16)

    sb0 = _fold_bn(s0, b0, _K9)     # (2, 144)
    sb1 = _fold_bn(s1, b1, _K9)     # (2,  72)
    sb2 = _fold_bn(s2, b2, 1)       # (2,  16)
    sb3 = _fold_bn(s3, b3, 1)       # (2,  16)

    m16 = jnp.asarray(np.repeat(v1, 16, axis=1))    # (32, 144)
    m8 = jnp.asarray(np.repeat(v1, 8, axis=1))      # (32,  72)
    fmask = jnp.asarray(np.repeat(vf, 32, axis=1))  # (32, 288)

    out = pl.pallas_call(
        _stem_kernel,
        out_shape=jax.ShapeDtypeStruct((_M, 16), f32),
    )(p0, w0bd, sb0, m16, w1bd, sb1, m8, w2f, sb2, w3f, sb3, fmask)
    return out.reshape(_N, _HO, _WO, 16)


# ----------------------------------------------------------------------------
# pure-JAX reference for verification
# ----------------------------------------------------------------------------
def _ref_conv_bn_relu(x, w, scale, bias, stride, padding):
    y = jax.lax.conv_general_dilated(
        x, w, window_strides=(stride, stride),
        padding=((padding, padding), (padding, padding)),
        dimension_numbers=("NHWC", "HWIO", "NHWC"),
        precision=jax.lax.Precision.HIGHEST)
    return jnp.maximum(y * scale + bias, 0.0)


def _ref_maxpool(x, k, s, p):
    return jax.lax.reduce_window(
        x, -jnp.inf, jax.lax.max, (1, k, k, 1), (1, s, s, 1),
        ((0, 0), (p, p), (p, p), (0, 0)))


def stem_block_ref(x, params):
    w0, s0, b0 = params["conv"]
    feat = _ref_conv_bn_relu(x, w0, s0, b0, 2, 1)
    w1, s1, b1 = params["left0"]
    left = _ref_conv_bn_relu(feat, w1, s1, b1, 1, 0)
    w2, s2, b2 = params["left1"]
    left = _ref_conv_bn_relu(left, w2, s2, b2, 2, 1)
    right = _ref_maxpool(feat, 3, 2, 1)
    fused = jnp.concatenate([left, right], axis=-1)
    w3, s3, b3 = params["fuse"]
    return _ref_conv_bn_relu(fused, w3, s3, b3, 1, 1)


# ----------------------------------------------------------------------------
# deterministic parameter init (synthetic; eval-mode BN folded to scale/bias)
# ----------------------------------------------------------------------------
def init_conv_bn(key, cin, cout, k):
    k1, k2, k3, k4, k5 = jax.random.split(key, 5)
    fan_in = k * k * cin
    w = jax.random.normal(k1, (k, k, cin, cout), jnp.float32) / jnp.sqrt(float(fan_in))
    gamma = 1.0 + 0.1 * jax.random.normal(k2, (cout,), jnp.float32)
    beta = 0.1 * jax.random.normal(k3, (cout,), jnp.float32)
    running_mean = 0.1 * jax.random.normal(k4, (cout,), jnp.float32)
    running_var = jnp.abs(jax.random.normal(k5, (cout,), jnp.float32)) + 0.5
    eps = 1e-5
    scale = gamma / jnp.sqrt(running_var + eps)
    bias = beta - running_mean * scale
    return w, scale, bias


if __name__ == "__main__":
    key = jax.random.PRNGKey(0)
    kx, kp = jax.random.split(key)
    # NHWC input; equivalent to PyTorch NCHW (2, 3, 16, 16)
    x = jax.random.normal(kx, (_N, _H, _W, _CIN), jnp.float32)

    kc, kl0, kl1, kf = jax.random.split(kp, 4)
    params = {
        "conv": init_conv_bn(kc, 3, 16, 3),
        "left0": init_conv_bn(kl0, 16, 8, 1),
        "left1": init_conv_bn(kl1, 8, 16, 3),
        "fuse": init_conv_bn(kf, 32, 16, 3),
    }

    out = jax.block_until_ready(jax.jit(stem_block)(x, params))
    assert out.shape == (_N, _HO, _WO, 16), out.shape

    ref = jax.block_until_ready(stem_block_ref(x, params))
    np.testing.assert_allclose(np.asarray(out), np.asarray(ref),
                               rtol=1e-5, atol=1e-5)
    print("KERNEL_OK")
</pallas_src>

<mosaic_0001>
module attributes {stable_mosaic.version = 11 : i64} {
  func.func @_stem_kernel(%arg0: memref<32x243xf32, #tpu.memory_space<vmem>>, %arg1: memref<243x144xf32, #tpu.memory_space<vmem>>, %arg2: memref<2x144xf32, #tpu.memory_space<vmem>>, %arg3: memref<32x144xf32, #tpu.memory_space<vmem>>, %arg4: memref<144x72xf32, #tpu.memory_space<vmem>>, %arg5: memref<2x72xf32, #tpu.memory_space<vmem>>, %arg6: memref<32x72xf32, #tpu.memory_space<vmem>>, %arg7: memref<72x16xf32, #tpu.memory_space<vmem>>, %arg8: memref<2x16xf32, #tpu.memory_space<vmem>>, %arg9: memref<288x16xf32, #tpu.memory_space<vmem>>, %arg10: memref<2x16xf32, #tpu.memory_space<vmem>>, %arg11: memref<32x288xf32, #tpu.memory_space<vmem>>, %arg12: memref<32x16xf32, #tpu.memory_space<vmem>>) attributes {dimension_semantics = [], scalar_prefetch = 0 : i64, scratch_operands = 0 : i64, tpu.core_type = #tpu.core_type<tc>} {
    %c0 = arith.constant 0 : index
    %c0_0 = arith.constant 0 : index
    %0 = vector.load %arg0[%c0, %c0_0] : memref<32x243xf32, #tpu.memory_space<vmem>>, vector<32x243xf32>
    %c0_1 = arith.constant 0 : index
    %c0_2 = arith.constant 0 : index
    %1 = vector.load %arg1[%c0_1, %c0_2] : memref<243x144xf32, #tpu.memory_space<vmem>>, vector<243x144xf32>
    %cst = arith.constant dense<0.000000e+00> : vector<32x144xf32>
    %2 = tpu.matmul %0, %1, %cst {dimension_numbers = #tpu.dot_dimension_numbers<[1], [0], [0], [1], [0, 0, 1, 1], [], []>, precision = #tpu.contract_precision<fp32>} : vector<32x243xf32>, vector<243x144xf32>, vector<32x144xf32> -> vector<32x144xf32>
    %c0_3 = arith.constant 0 : index
    %c0_4 = arith.constant 0 : index
    %3 = vector.load %arg2[%c0_3, %c0_4] : memref<2x144xf32, #tpu.memory_space<vmem>>, vector<1x144xf32>
    %4 = vector.broadcast %3 : vector<1x144xf32> to vector<32x144xf32>
    %5 = arith.mulf %2, %4 : vector<32x144xf32>
    %c1 = arith.constant 1 : index
    %c0_5 = arith.constant 0 : index
    %6 = vector.load %arg2[%c1, %c0_5] : memref<2x144xf32, #tpu.memory_space<vmem>>, vector<1x144xf32>
    %7 = vector.broadcast %6 : vector<1x144xf32> to vector<32x144xf32>
    %8 = arith.addf %5, %7 : vector<32x144xf32>
    %cst_6 = arith.constant 0.000000e+00 : f32
    %9 = vector.broadcast %cst_6 : f32 to vector<32x144xf32>
    %10 = arith.maximumf %8, %9 : vector<32x144xf32>
    %c0_7 = arith.constant 0 : index
    %c0_8 = arith.constant 0 : index
    %11 = vector.load %arg3[%c0_7, %c0_8] : memref<32x144xf32, #tpu.memory_space<vmem>>, vector<32x144xf32>
    %12 = arith.mulf %10, %11 : vector<32x144xf32>
    %13 = vector.extract_strided_slice %12 {offsets = [0, 0], sizes = [32, 16], strides = [1, 1]} : vector<32x144xf32> to vector<32x16xf32>
    %14 = vector.extract_strided_slice %12 {offsets = [0, 16], sizes = [32, 16], strides = [1, 1]} : vector<32x144xf32> to vector<32x16xf32>
    %15 = arith.maximumf %13, %14 : vector<32x16xf32>
    %16 = vector.extract_strided_slice %12 {offsets = [0, 32], sizes = [32, 16], strides = [1, 1]} : vector<32x144xf32> to vector<32x16xf32>
    %17 = arith.maximumf %15, %16 : vector<32x16xf32>
    %18 = vector.extract_strided_slice %12 {offsets = [0, 48], sizes = [32, 16], strides = [1, 1]} : vector<32x144xf32> to vector<32x16xf32>
    %19 = arith.maximumf %17, %18 : vector<32x16xf32>
    %20 = vector.extract_strided_slice %12 {offsets = [0, 64], sizes = [32, 16], strides = [1, 1]} : vector<32x144xf32> to vector<32x16xf32>
    %21 = arith.maximumf %19, %20 : vector<32x16xf32>
    %22 = vector.extract_strided_slice %12 {offsets = [0, 80], sizes = [32, 16], strides = [1, 1]} : vector<32x144xf32> to vector<32x16xf32>
    %23 = arith.maximumf %21, %22 : vector<32x16xf32>
    %24 = vector.extract_strided_slice %12 {offsets = [0, 96], sizes = [32, 16], strides = [1, 1]} : vector<32x144xf32> to vector<32x16xf32>
    %25 = arith.maximumf %23, %24 : vector<32x16xf32>
    %26 = vector.extract_strided_slice %12 {offsets = [0, 112], sizes = [32, 16], strides = [1, 1]} : vector<32x144xf32> to vector<32x16xf32>
    %27 = arith.maximumf %25, %26 : vector<32x16xf32>
    %28 = vector.extract_strided_slice %12 {offsets = [0, 128], sizes = [32, 16], strides = [1, 1]} : vector<32x144xf32> to vector<32x16xf32>
    %29 = arith.maximumf %27, %28 : vector<32x16xf32>
    %c0_9 = arith.constant 0 : index
    %c0_10 = arith.constant 0 : index
    %30 = vector.load %arg4[%c0_9, %c0_10] : memref<144x72xf32, #tpu.memory_space<vmem>>, vector<144x72xf32>
    %cst_11 = arith.constant dense<0.000000e+00> : vector<32x72xf32>
    %31 = tpu.matmul %12, %30, %cst_11 {dimension_numbers = #tpu.dot_dimension_numbers<[1], [0], [0], [1], [0, 0, 1, 1], [], []>, precision = #tpu.contract_precision<fp32>} : vector<32x144xf32>, vector<144x72xf32>, vector<32x72xf32> -> vector<32x72xf32>
    %c0_12 = arith.constant 0 : index
    %c0_13 = arith.constant 0 : index
    %32 = vector.load %arg5[%c0_12, %c0_13] : memref<2x72xf32, #tpu.memory_space<vmem>>, vector<1x72xf32>
    %33 = vector.broadcast %32 : vector<1x72xf32> to vector<32x72xf32>
    %34 = arith.mulf %31, %33 : vector<32x72xf32>
    %c1_14 = arith.constant 1 : index
    %c0_15 = arith.constant 0 : index
    %35 = vector.load %arg5[%c1_14, %c0_15] : memref<2x72xf32, #tpu.memory_space<vmem>>, vector<1x72xf32>
    %36 = vector.broadcast %35 : vector<1x72xf32> to vector<32x72xf32>
    %37 = arith.addf %34, %36 : vector<32x72xf32>
    %cst_16 = arith.constant 0.000000e+00 : f32
    %38 = vector.broadcast %cst_16 : f32 to vector<32x72xf32>
    %39 = arith.maximumf %37, %38 : vector<32x72xf32>
    %c0_17 = arith.constant 0 : index
    %c0_18 = arith.constant 0 : index
    %40 = vector.load %arg6[%c0_17, %c0_18] : memref<32x72xf32, #tpu.memory_space<vmem>>, vector<32x72xf32>
    %41 = arith.mulf %39, %40 : vector<32x72xf32>
    %c0_19 = arith.constant 0 : index
    %c0_20 = arith.constant 0 : index
    %42 = vector.load %arg7[%c0_19, %c0_20] : memref<72x16xf32, #tpu.memory_space<vmem>>, vector<72x16xf32>
    %cst_21 = arith.constant dense<0.000000e+00> : vector<32x16xf32>
    %43 = tpu.matmul %41, %42, %cst_21 {dimension_numbers = #tpu.dot_dimension_numbers<[1], [0], [0], [1], [0, 0, 1, 1], [], []>, precision = #tpu.contract_precision<fp32>} : vector<32x72xf32>, vector<72x16xf32>, vector<32x16xf32> -> vector<32x16xf32>
    %c0_22 = arith.constant 0 : index
    %c0_23 = arith.constant 0 : index
    %44 = vector.load %arg8[%c0_22, %c0_23] : memref<2x16xf32, #tpu.memory_space<vmem>>, vector<1x16xf32>
    %45 = vector.broadcast %44 : vector<1x16xf32> to vector<32x16xf32>
    %46 = arith.mulf %43, %45 : vector<32x16xf32>
    %c1_24 = arith.constant 1 : index
    %c0_25 = arith.constant 0 : index
    %47 = vector.load %arg8[%c1_24, %c0_25] : memref<2x16xf32, #tpu.memory_space<vmem>>, vector<1x16xf32>
    %48 = vector.broadcast %47 : vector<1x16xf32> to vector<32x16xf32>
    %49 = arith.addf %46, %48 : vector<32x16xf32>
    %cst_26 = arith.constant 0.000000e+00 : f32
    %50 = vector.broadcast %cst_26 : f32 to vector<32x16xf32>
    %51 = arith.maximumf %49, %50 : vector<32x16xf32>
    %52 = tpu.concatenate %51, %29 in 1 : vector<32x16xf32>, vector<32x16xf32> -> vector<32x32xf32>
    %cst_27 = arith.constant 0.000000e+00 : f32
    %53 = vector.broadcast %cst_27 : f32 to vector<5x32xf32>
    %54 = tpu.concatenate %53, %52, %53 in 0 : vector<5x32xf32>, vector<32x32xf32>, vector<5x32xf32> -> vector<42x32xf32>
    %55 = vector.extract_strided_slice %54 {offsets = [0, 0], sizes = [32, 32], strides = [1, 1]} : vector<42x32xf32> to vector<32x32xf32>
    %56 = vector.extract_strided_slice %54 {offsets = [1, 0], sizes = [32, 32], strides = [1, 1]} : vector<42x32xf32> to vector<32x32xf32>
    %57 = vector.extract_strided_slice %54 {offsets = [2, 0], sizes = [32, 32], strides = [1, 1]} : vector<42x32xf32> to vector<32x32xf32>
    %58 = vector.extract_strided_slice %54 {offsets = [4, 0], sizes = [32, 32], strides = [1, 1]} : vector<42x32xf32> to vector<32x32xf32>
    %59 = vector.extract_strided_slice %54 {offsets = [5, 0], sizes = [32, 32], strides = [1, 1]} : vector<42x32xf32> to vector<32x32xf32>
    %60 = vector.extract_strided_slice %54 {offsets = [6, 0], sizes = [32, 32], strides = [1, 1]} : vector<42x32xf32> to vector<32x32xf32>
    %61 = vector.extract_strided_slice %54 {offsets = [8, 0], sizes = [32, 32], strides = [1, 1]} : vector<42x32xf32> to vector<32x32xf32>
    %62 = vector.extract_strided_slice %54 {offsets = [9, 0], sizes = [32, 32], strides = [1, 1]} : vector<42x32xf32> to vector<32x32xf32>
    %63 = vector.extract_strided_slice %54 {offsets = [10, 0], sizes = [32, 32], strides = [1, 1]} : vector<42x32xf32> to vector<32x32xf32>
    %64 = tpu.concatenate %55, %56, %57, %58, %59, %60, %61, %62, %63 in 1 : vector<32x32xf32>, vector<32x32xf32>, vector<32x32xf32>, vector<32x32xf32>, vector<32x32xf32>, vector<32x32xf32>, vector<32x32xf32>, vector<32x32xf32>, vector<32x32xf32> -> vector<32x288xf32>
    %c0_28 = arith.constant 0 : index
    %c0_29 = arith.constant 0 : index
    %65 = vector.load %arg11[%c0_28, %c0_29] : memref<32x288xf32, #tpu.memory_space<vmem>>, vector<32x288xf32>
    %66 = arith.mulf %64, %65 : vector<32x288xf32>
    %c0_30 = arith.constant 0 : index
    %c0_31 = arith.constant 0 : index
    %67 = vector.load %arg9[%c0_30, %c0_31] : memref<288x16xf32, #tpu.memory_space<vmem>>, vector<288x16xf32>
    %cst_32 = arith.constant dense<0.000000e+00> : vector<32x16xf32>
    %68 = tpu.matmul %66, %67, %cst_32 {dimension_numbers = #tpu.dot_dimension_numbers<[1], [0], [0], [1], [0, 0, 1, 1], [], []>, precision = #tpu.contract_precision<fp32>} : vector<32x288xf32>, vector<288x16xf32>, vector<32x16xf32> -> vector<32x16xf32>
    %c0_33 = arith.constant 0 : index
    %c0_34 = arith.constant 0 : index
    %69 = vector.load %arg10[%c0_33, %c0_34] : memref<2x16xf32, #tpu.memory_space<vmem>>, vector<1x16xf32>
    %70 = vector.broadcast %69 : vector<1x16xf32> to vector<32x16xf32>
    %71 = arith.mulf %68, %70 : vector<32x16xf32>
    %c1_35 = arith.constant 1 : index
    %c0_36 = arith.constant 0 : index
    %72 = vector.load %arg10[%c1_35, %c0_36] : memref<2x16xf32, #tpu.memory_space<vmem>>, vector<1x16xf32>
    %73 = vector.broadcast %72 : vector<1x16xf32> to vector<32x16xf32>
    %74 = arith.addf %71, %73 : vector<32x16xf32>
    %cst_37 = arith.constant 0.000000e+00 : f32
    %75 = vector.broadcast %cst_37 : f32 to vector<32x16xf32>
    %76 = arith.maximumf %74, %75 : vector<32x16xf32>
    %c0_38 = arith.constant 0 : index
    %c0_39 = arith.constant 0 : index
    %77 = vector.load %arg12[%c0_38, %c0_39] : memref<32x16xf32, #tpu.memory_space<vmem>>, vector<32x16xf32>
    tpu.vector_store %arg12[%c0_38, %c0_39], %76 {strides = array<i32>} : memref<32x16xf32, #tpu.memory_space<vmem>>, vector<32x16xf32>,
    return
  }
}

</mosaic_0001>

<llo_original>
// kernel: mul.4
$region0: #{mul.4}
  %s0 = inlined_call_operand.hbm [shape: f32[3,3,3,16], index: 0, kind: input, shape index: {}]
  %s1 = inlined_call_operand.vmem [shape: f32[27,16], index: 1, kind: output, shape index: {}]
  $region1: #{mul.4} parent=0
    #allocation0 [shape = 'u8[18432]{0}', space=vmem, size = 0x4800, scoped, tag = 'operand span for operand 0']
    #allocation1 [shape = 's32[1]{0}', space=sflag, size = 0x4, scoped, tag = 'scoped memory for mul.4']
    #allocation2 [shape = 'u8[36864]{0}', space=vmem, size = 0x9000, scoped, tag = 'scoped mem for input reshape']
    %2 = vsyncpa [#allocation1], 0
    %s4 = ssub.s32 576, 576
    %5 = vsyncadd [#allocation1], %s4
    %s7 = sshll.u32 [#allocation0], 4
    %s8 = int_to_ptr.vmem [resolvable:$true] %s7
    %10 = dma.hbm_to_vmem [thread:$0]  %s0, 576, %s8, [#allocation1]
    %11 = dma.done [#allocation1], 576
    %s13 = sshllo.u32 0, 4
    %s14 = smul.addr 4, 8
    %s15 = scalar_lea.vmem [#allocation0], %s14
    %v16 = vld [vmem:[%s15] sm:%s13]
    %s17 = scalar_lea.vmem [#allocation2], 64
    %18 = vst [vmem:[%s17] sm:%s13] %v16
    %s19 = smul.addr 4, 7
    %s20 = scalar_lea.vmem [#allocation0], %s19
    %v21 = vld [vmem:[%s20] sm:%s13]
    %s22 = scalar_lea.vmem [#allocation2], 56
    %23 = vst [vmem:[%s22] sm:%s13] %v21
    %s24 = smul.addr 4, 6
    %s25 = scalar_lea.vmem [#allocation0], %s24
    %v26 = vld [vmem:[%s25] sm:%s13]
    %s27 = scalar_lea.vmem [#allocation2], 48
    %28 = vst [vmem:[%s27] sm:%s13] %v26
    %s29 = smul.addr 4, 5
    %s30 = scalar_lea.vmem [#allocation0], %s29
    %v31 = vld [vmem:[%s30] sm:%s13]
    %s32 = scalar_lea.vmem [#allocation2], 40
    %33 = vst [vmem:[%s32] sm:%s13] %v31
    %s34 = smul.addr 4, 4
    %s35 = scalar_lea.vmem [#allocation0], %s34
    %v36 = vld [vmem:[%s35] sm:%s13]
    %s37 = scalar_lea.vmem [#allocation2], 32
    %38 = vst [vmem:[%s37] sm:%s13] %v36
    %s39 = smul.addr 4, 3
    %s40 = scalar_lea.vmem [#allocation0], %s39
    %v41 = vld [vmem:[%s40] sm:%s13]
    %s42 = scalar_lea.vmem [#allocation2], 24
    %43 = vst [vmem:[%s42] sm:%s13] %v41
    %s44 = smul.addr 4, 2
    %s45 = scalar_lea.vmem [#allocation0], %s44
    %v46 = vld [vmem:[%s45] sm:%s13]
    %s47 = scalar_lea.vmem [#allocation2], 16
    %48 = vst [vmem:[%s47] sm:%s13] %v46
    %s49 = scalar_lea.vmem [#allocation0], 4
    %v50 = vld [vmem:[%s49] sm:%s13]
    %s51 = scalar_lea.vmem [#allocation2], 8
    %52 = vst [vmem:[%s51] sm:%s13] %v50
    %v53 = vld [vmem:[#allocation0] sm:%s13]
    %54 = vst [vmem:[#allocation2] sm:%s13] %v53
    %v55 = vld [vmem:[#allocation2] sm:$0x7]
    %vm56 = vcmask 130048
    %57 = vst.msk [vmem:[%s1] sm:$0x7] %vm56, %v55
    %s58 = scalar_lea.vmem [#allocation2], 8
    %v59 = vld [vmem:[%s58] sm:$0x7]
    %vm60 = vcmask 130048
    %s61 = scalar_lea.vmem %s1, 3
    %62 = vst.msk [vmem:[%s61] sm:$0x7] %vm60, %v59
    %s63 = scalar_lea.vmem [#allocation2], 16
    %v64 = vld [vmem:[%s63] sm:$0x7]
    %vm65 = vcmask 130048
    %s66 = scalar_lea.vmem %s1, 6
    %67 = vst.msk [vmem:[%s66] sm:$0x7] %vm65, %v64
    %s68 = scalar_lea.vmem [#allocation2], 24
    %v69 = vld [vmem:[%s68] sm:$0x7]
    %vm70 = vcmask 130048
    %s71 = scalar_lea.vmem %s1, 9
    %72 = vst.msk [vmem:[%s71] sm:$0x7] %vm70, %v69
    %s73 = scalar_lea.vmem [#allocation2], 32
    %v74 = vld [vmem:[%s73] sm:$0x7]
    %vm75 = vcmask 130048
    %s76 = scalar_lea.vmem %s1, 12
    %77 = vst.msk [vmem:[%s76] sm:$0x7] %vm75, %v74
    %s78 = scalar_lea.vmem [#allocation2], 40
    %v79 = vld [vmem:[%s78] sm:$0x7]
    %vm80 = vcmask 130048
    %s81 = scalar_lea.vmem %s1, 15
    %82 = vst.msk [vmem:[%s81] sm:$0x7] %vm80, %v79
    %s83 = scalar_lea.vmem [#allocation2], 48
    %v84 = vld [vmem:[%s83] sm:$0x7]
    %vm85 = vcmask 130048
    %s86 = scalar_lea.vmem %s1, 18
    %87 = vst.msk [vmem:[%s86] sm:$0x7] %vm85, %v84
    %s88 = scalar_lea.vmem [#allocation2], 56
    %v89 = vld [vmem:[%s88] sm:$0x7]
    %vm90 = vcmask 130048
    %s91 = scalar_lea.vmem %s1, 21
    %92 = vst.msk [vmem:[%s91] sm:$0x7] %vm90, %v89
    %s93 = scalar_lea.vmem [#allocation2], 64
    %v94 = vld [vmem:[%s93] sm:$0x7]
    %vm95 = vcmask 130048
    %s96 = scalar_lea.vmem %s1, 24
    %97 = vst.msk [vmem:[%s96] sm:$0x7] %vm95, %v94
    %98 = vsyncpa [#allocation1], 1

// kernel: tile.27
$region0: #{tile.27}
  #allocation0 [shape = 's32[1]{0}', space=sflag, size = 0x4, scoped, tag = 'scoped memory for tile.27']
  %s0 = inlined_call_operand.vmem [shape: f32[16], index: 0, kind: input, shape index: {}]
  %s1 = inlined_call_operand.vmem [shape: f32[9,16], index: 1, kind: output, shape index: {}]
  // Predicated region
  $region2: #{tile.27} parent=0 // pred_check
    _
  $region3: #{tile.27} parent=0 // pred_check_branch
    %3 = sbr.rel (0) target = $region5
  $region4: #{tile.27} parent=0 // pred_region
    _
  $region5: #{tile.27} parent=0 // pred_fallthru
    _
  %v4 = vld [vmem:[%s0] ss:$0 sm:$0xff]
  %5 = vst [vmem:[%s1] sm:$0xff] %v4
  %s6 = scalar_lea.vmem %s1, 8
  %7 = vst [vmem:[%s6] sm:$0xff] %v4

// kernel: tile.32
$region0: #{tile.32}
  %s0 = inlined_call_operand.vmem [shape: f32[9,16], index: 0, kind: input, shape index: {}]
  %s1 = inlined_call_operand.vmem [shape: f32[1,144], index: 1, kind: output, shape index: {}]
  $region1: #{tile.32} parent=0
    #allocation0 [shape = 'u8[8192]{0}', space=vmem, size = 0x2000, scoped, tag = 'scoped mem for output reshape']
    %s2 = smov 3
    %v3 = vld [vmem:[%s0] ss:$8 sm:%s2]
    %vm4 = vcmask 130048
    %5 = vst.msk [vmem:[#allocation0] ss:$8 sm:$0x3] %vm4, %v3
    %s6 = scalar_lea.vmem %s0, 7
    %v7 = vld [vmem:[%s6] sm:$0x1]
    %8 = vrot.lane.b32.xlu0 %v7, 112
    %v9 = vpop.permute.xlu0 %8
    %vm10 = vcmask 1048448
    %11 = vst.msk [vmem:[#allocation0] sm:$0x1] %vm10, %v9
    %s12 = scalar_lea.vmem %s0, 6
    %v13 = vld [vmem:[%s12] sm:$0x1]
    %14 = vrot.lane.b32.xlu0 %v13, 96
    %v15 = vpop.permute.xlu0 %14
    %vm16 = vcmask 917248
    %17 = vst.msk [vmem:[#allocation0] sm:$0x1] %vm16, %v15
    %s18 = scalar_lea.vmem %s0, 5
    %v19 = vld [vmem:[%s18] sm:$0x1]
    %20 = vrot.lane.b32.xlu0 %v19, 80
    %v21 = vpop.permute.xlu0 %20
    %vm22 = vcmask 786048
    %23 = vst.msk [vmem:[#allocation0] sm:$0x1] %vm22, %v21
    %s24 = scalar_lea.vmem %s0, 4
    %v25 = vld [vmem:[%s24] sm:$0x1]
    %26 = vrot.lane.b32.xlu0 %v25, 64
    %v27 = vpop.permute.xlu0 %26
    %vm28 = vcmask 654848
    %29 = vst.msk [vmem:[#allocation0] sm:$0x1] %vm28, %v27
    %s30 = scalar_lea.vmem %s0, 3
    %v31 = vld [vmem:[%s30] sm:$0x1]
    %32 = vrot.lane.b32.xlu0 %v31, 48
    %v33 = vpop.permute.xlu0 %32
    %vm34 = vcmask 523648
    %35 = vst.msk [vmem:[#allocation0] sm:$0x1] %vm34, %v33
    %s36 = scalar_lea.vmem %s0, 2
    %v37 = vld [vmem:[%s36] sm:$0x1]
    %38 = vrot.lane.b32.xlu0 %v37, 32
    %v39 = vpop.permute.xlu0 %38
    %vm40 = vcmask 392448
    %41 = vst.msk [vmem:[#allocation0] sm:$0x1] %vm40, %v39
    %s42 = scalar_lea.vmem %s0, 1
    %v43 = vld [vmem:[%s42] sm:$0x1]
    %44 = vrot.lane.b32.xlu0 %v43, 16
    %v45 = vpop.permute.xlu0 %44
    %vm46 = vcmask 261248
    %47 = vst.msk [vmem:[#allocation0] sm:$0x1] %vm46, %v45
    %s49 = sshllo.u32 0, 1
    %v51 = vld [vmem:[#allocation0] sm:%s49]
    %s52 = sshllo.u32 0, 1
    %53 = vst [vmem:[%s1] sm:%s52] %v51
    %s54 = scalar_lea.vmem [#allocation0], 8
    %v55 = vld [vmem:[%s54] sm:%s49]
    %s56 = sshllo.u32 0, 1
    %s57 = scalar_lea.vmem %s1, 1
    %58 = vst [vmem:[%s57] sm:%s56] %v55

// kernel: tile.37
$region0: #{tile.37}
  #allocation0 [shape = 's32[1]{0}', space=sflag, size = 0x4, scoped, tag = 'scoped memory for tile.37']
  %s0 = inlined_call_operand.vmem [shape: f32[8], index: 0, kind: input, shape index: {}]
  %s1 = inlined_call_operand.vmem [shape: f32[9,8], index: 1, kind: output, shape index: {}]
  // Predicated region
  $region2: #{tile.37} parent=0 // pred_check
    _
  $region3: #{tile.37} parent=0 // pred_check_branch
    %3 = sbr.rel (0) target = $region5
  $region4: #{tile.37} parent=0 // pred_region
    _
  $region5: #{tile.37} parent=0 // pred_fallthru
    _
  %v4 = vld [vmem:[%s0] ss:$0 sm:$0xff]
  %5 = vst [vmem:[%s1] sm:$0xff] %v4
  %s6 = scalar_lea.vmem %s1, 8
  %7 = vst [vmem:[%s6] sm:$0xff] %v4

// kernel: tile.42
$region0: #{tile.42}
  %s0 = inlined_call_operand.vmem [shape: f32[9,8], index: 0, kind: input, shape index: {}]
  %s1 = inlined_call_operand.vmem [shape: f32[1,72], index: 1, kind: output, shape index: {}]
  $region1: #{tile.42} parent=0
    #allocation0 [shape = 'u8[4096]{0}', space=vmem, size = 0x1000, scoped, tag = 'scoped mem for output reshape']
    %v2 = vld [vmem:[%s0] sm:$0x1]
    %vm3 = vcmask 64512
    %4 = vst.msk [vmem:[#allocation0] sm:$0x1] %vm3, %v2
    %s5 = scalar_lea.vmem %s0, 8
    %v6 = vld [vmem:[%s5] sm:$0x1]
    %7 = vrot.lane.b32.xlu0 %v6, 64
    %v8 = vpop.permute.xlu0 %7
    %vm9 = vcmask 589312
    %10 = vst.msk [vmem:[#allocation0] sm:$0x1] %vm9, %v8
    %s11 = scalar_lea.vmem %s0, 7
    %v12 = vld [vmem:[%s11] sm:$0x1]
    %13 = vrot.lane.b32.xlu0 %v12, 56
    %v14 = vpop.permute.xlu0 %13
    %vm15 = vcmask 523712
    %16 = vst.msk [vmem:[#allocation0] sm:$0x1] %vm15, %v14
    %s17 = scalar_lea.vmem %s0, 6
    %v18 = vld [vmem:[%s17] sm:$0x1]
    %19 = vrot.lane.b32.xlu0 %v18, 48
    %v20 = vpop.permute.xlu0 %19
    %vm21 = vcmask 458112
    %22 = vst.msk [vmem:[#allocation0] sm:$0x1] %vm21, %v20
    %s23 = scalar_lea.vmem %s0, 5
    %v24 = vld [vmem:[%s23] sm:$0x1]
    %25 = vrot.lane.b32.xlu0 %v24, 40
    %v26 = vpop.permute.xlu0 %25
    %vm27 = vcmask 392512
    %28 = vst.msk [vmem:[#allocation0] sm:$0x1] %vm27, %v26
    %s29 = scalar_lea.vmem %s0, 4
    %v30 = vld [vmem:[%s29] sm:$0x1]
    %31 = vrot.lane.b32.xlu0 %v30, 32
    %v32 = vpop.permute.xlu0 %31
    %vm33 = vcmask 326912
    %34 = vst.msk [vmem:[#allocation0] sm:$0x1] %vm33, %v32
    %s35 = scalar_lea.vmem %s0, 3
    %v36 = vld [vmem:[%s35] sm:$0x1]
    %37 = vrot.lane.b32.xlu0 %v36, 24
    %v38 = vpop.permute.xlu0 %37
    %vm39 = vcmask 261312
    %40 = vst.msk [vmem:[#allocation0] sm:$0x1] %vm39, %v38
    %s41 = scalar_lea.vmem %s0, 2
    %v42 = vld [vmem:[%s41] sm:$0x1]
    %43 = vrot.lane.b32.xlu0 %v42, 16
    %v44 = vpop.permute.xlu0 %43
    %vm45 = vcmask 195712
    %46 = vst.msk [vmem:[#allocation0] sm:$0x1] %vm45, %v44
    %s47 = scalar_lea.vmem %s0, 1
    %v48 = vld [vmem:[%s47] sm:$0x1]
    %49 = vrot.lane.b32.xlu0 %v48, 8
    %v50 = vpop.permute.xlu0 %49
    %vm51 = vcmask 130112
    %52 = vst.msk [vmem:[#allocation0] sm:$0x1] %vm51, %v50
    %s54 = sshllo.u32 0, 1
    %v56 = vld [vmem:[#allocation0] sm:%s54]
    %s57 = sshllo.u32 0, 1
    %58 = vst [vmem:[%s1] sm:%s57] %v56

// kernel: stem_block.1
$region0: #{stem_block.1}
  #allocation0 [shape = 'u32[]', space=smem, size = 0x4, offset = 0x4, fixed_abs, tag = 'smem constant byte address 0x4 - core index']
  #allocation1 [shape = 'u32[144,128]{1,0:T(1,128)}', space=vmem, size = 0x12000, scoped, tag = 'internal scratch']
  %s0 = inlined_call_operand.vmem [shape: f32[32,243], index: 0, kind: input, shape index: {}]
  %s1 = inlined_call_operand.vmem [shape: f32[243,144], index: 1, kind: input, shape index: {}]
  %s2 = inlined_call_operand.vmem [shape: f32[2,144], index: 2, kind: input, shape index: {}]
  %s3 = inlined_call_operand.vmem [shape: f32[32,144], index: 3, kind: input, shape index: {}]
  %s4 = inlined_call_operand.vmem [shape: f32[144,72], index: 4, kind: input, shape index: {}]
  %s5 = inlined_call_operand.vmem [shape: f32[2,72], index: 5, kind: input, shape index: {}]
  %s6 = inlined_call_operand.vmem [shape: f32[32,72], index: 6, kind: input, shape index: {}]
  %s7 = inlined_call_operand.vmem [shape: f32[72,16], index: 7, kind: input, shape index: {}]
  %s8 = inlined_call_operand.vmem [shape: f32[2,16], index: 8, kind: input, shape index: {}]
  %s9 = inlined_call_operand.vmem [shape: f32[288,16], index: 9, kind: input, shape index: {}]
  %s10 = inlined_call_operand.vmem [shape: f32[2,16], index: 10, kind: input, shape index: {}]
  %s11 = inlined_call_operand.vmem [shape: f32[32,288], index: 11, kind: input, shape index: {}]
  %s12 = inlined_call_operand.hbm [shape: f32[32,16], index: 12, kind: output, shape index: {}]
  %s13 = sld [smem:[#allocation0]]
  $region58: #{stem_block.1} parent=0
    _
  %s15 = ssub.s32 1, %s13
  %s16 = scalar_select 0, %s15, %s13
  $region1: #{stem_block.1} parent=0
    #allocation2 [shape = 'u8[16384]{0}', space=vmem, size = 0x4000, scoped, tag = 'output window, operand 0, single buffered']
    #allocation3 [shape = 's32[1]{0}', space=sflag, size = 0x4, scoped, tag = 'scoped memory for stem_block.1']
    %17 = vsyncpa [#allocation3], 0
    // Predicated region
    $region2: #{stem_block.1} parent=1 // pred_check
      _
    $region3: #{stem_block.1} parent=1 // pred_check_branch
      %19 = sbr.rel (0) target = $region5
    $region4: #{stem_block.1} parent=1 // pred_region
      _
    $region5: #{stem_block.1} parent=1 // pred_fallthru
      _
    // Predicated region
    $region6: #{stem_block.1} parent=1 // pred_check
      _
    $region7: #{stem_block.1} parent=1 // pred_check_branch
      %21 = sbr.rel (0) target = $region9
    $region8: #{stem_block.1} parent=1 // pred_region
      _
    $region9: #{stem_block.1} parent=1 // pred_fallthru
      _
    // Predicated region
    $region10: #{stem_block.1} parent=1 // pred_check
      _
    $region11: #{stem_block.1} parent=1 // pred_check_branch
      %23 = sbr.rel (0) target = $region13
    $region12: #{stem_block.1} parent=1 // pred_region
      _
    $region13: #{stem_block.1} parent=1 // pred_fallthru
      _
    // Predicated region
    $region14: #{stem_block.1} parent=1 // pred_check
      _
    $region15: #{stem_block.1} parent=1 // pred_check_branch
      %25 = sbr.rel (0) target = $region17
    $region16: #{stem_block.1} parent=1 // pred_region
      _
    $region17: #{stem_block.1} parent=1 // pred_fallthru
      _
    // Predicated region
    $region18: #{stem_block.1} parent=1 // pred_check
      _
    $region19: #{stem_block.1} parent=1 // pred_check_branch
      %27 = sbr.rel (0) target = $region21
    $region20: #{stem_block.1} parent=1 // pred_region
      _
    $region21: #{stem_block.1} parent=1 // pred_fallthru
      _
    // Predicated region
    $region22: #{stem_block.1} parent=1 // pred_check
      _
    $region23: #{stem_block.1} parent=1 // pred_check_branch
      %29 = sbr.rel (0) target = $region25
    $region24: #{stem_block.1} parent=1 // pred_region
      _
    $region25: #{stem_block.1} parent=1 // pred_fallthru
      _
    // Predicated region
    $region26: #{stem_block.1} parent=1 // pred_check
      _
    $region27: #{stem_block.1} parent=1 // pred_check_branch
      %31 = sbr.rel (0) target = $region29
    $region28: #{stem_block.1} parent=1 // pred_region
      _
    $region29: #{stem_block.1} parent=1 // pred_fallthru
      _
    // Predicated region
    $region30: #{stem_block.1} parent=1 // pred_check
      _
    $region31: #{stem_block.1} parent=1 // pred_check_branch
      %33 = sbr.rel (0) target = $region33
    $region32: #{stem_block.1} parent=1 // pred_region
      _
    $region33: #{stem_block.1} parent=1 // pred_fallthru
      _
    // Predicated region
    $region34: #{stem_block.1} parent=1 // pred_check
      _
    $region35: #{stem_block.1} parent=1 // pred_check_branch
      %35 = sbr.rel (0) target = $region37
    $region36: #{stem_block.1} parent=1 // pred_region
      _
    $region37: #{stem_block.1} parent=1 // pred_fallthru
      _
    // Predicated region
    $region38: #{stem_block.1} parent=1 // pred_check
      _
    $region39: #{stem_block.1} parent=1 // pred_check_branch
      %37 = sbr.rel (0) target = $region41
    $region40: #{stem_block.1} parent=1 // pred_region
      _
    $region41: #{stem_block.1} parent=1 // pred_fallthru
      _
    // Predicated region
    $region42: #{stem_block.1} parent=1 // pred_check
      _
    $region43: #{stem_block.1} parent=1 // pred_check_branch
      %39 = sbr.rel (0) target = $region45
    $region44: #{stem_block.1} parent=1 // pred_region
      _
    $region45: #{stem_block.1} parent=1 // pred_fallthru
      _
    // Predicated region
    $region46: #{stem_block.1} parent=1 // pred_check
      _
    $region47: #{stem_block.1} parent=1 // pred_check_branch
      %41 = sbr.rel (0) target = $region49
    $region48: #{stem_block.1} parent=1 // pred_region
      _
    $region49: #{stem_block.1} parent=1 // pred_fallthru
      _
    %v42 = vld [vmem:[%s0] sm:$0xff]
    %v43 = vld [vmem:[%s0 + $0x8] sm:$0xff]
    %v44 = vld [vmem:[%s0 + $0x10] sm:$0xff]
    %v45 = vld [vmem:[%s0 + $0x18] sm:$0xff]
    %v46 = vld [vmem:[%s0 + $0x20] sm:$0xff]
    %v47 = vld [vmem:[%s0 + $0x28] sm:$0xff]
    %v48 = vld [vmem:[%s0 + $0x30] sm:$0xff]
    %v49 = vld [vmem:[%s0 + $0x38] sm:$0xff]
    %v50 = vld [vmem:[%s1] sm:$0xff]
    %v51 = vld [vmem:[%s1 + $0x8] sm:$0xff]
    %v52 = vld [vmem:[%s1 + $0x10] sm:$0xff]
    %v53 = vld [vmem:[%s1 + $0x18] sm:$0xff]
    %v54 = vld [vmem:[%s1 + $0x20] sm:$0xff]
    %v55 = vld [vmem:[%s1 + $0x28] sm:$0xff]
    %v56 = vld [vmem:[%s1 + $0x30] sm:$0xff]
    %v57 = vld [vmem:[%s1 + $0x38] sm:$0xff]
    %v58 = vld [vmem:[%s1 + $0x40] sm:$0xff]
    %v59 = vld [vmem:[%s1 + $0x48] sm:$0xff]
    %v60 = vld [vmem:[%s1 + $0x50] sm:$0xff]
    %v61 = vld [vmem:[%s1 + $0x58] sm:$0xff]
    %v62 = vld [vmem:[%s1 + $0x60] sm:$0xff]
    %v63 = vld [vmem:[%s1 + $0x68] sm:$0xff]
    %v64 = vld [vmem:[%s1 + $0x70] sm:$0xff]
    %v65 = vld [vmem:[%s1 + $0x78] sm:$0xff]
    %v66 = vld [vmem:[%s1 + $0x80] sm:$0xff]
    %v67 = vld [vmem:[%s1 + $0x88] sm:$0xff]
    %v68 = vld [vmem:[%s1 + $0x90] sm:$0xff]
    %v69 = vld [vmem:[%s1 + $0x98] sm:$0xff]
    %v70 = vld [vmem:[%s1 + $0xa0] sm:$0xff]
    %v71 = vld [vmem:[%s1 + $0xa8] sm:$0xff]
    %v72 = vld [vmem:[%s1 + $0xb0] sm:$0xff]
    %v73 = vld [vmem:[%s1 + $0xb8] sm:$0xff]
    %v74 = vld [vmem:[%s1 + $0xc0] sm:$0xff]
    %v75 = vld [vmem:[%s1 + $0xc8] sm:$0xff]
    %v76 = vld [vmem:[%s1 + $0xd0] sm:$0xff]
    %v77 = vld [vmem:[%s1 + $0xd8] sm:$0xff]
    %v78 = vld [vmem:[%s1 + $0xe0] sm:$0xff]
    %v79 = vld [vmem:[%s1 + $0xe8] sm:$0xff]
    %v80 = vld [vmem:[%s1 + $0xf0] sm:$0xff]
    %v81 = vld [vmem:[%s1 + $0xf8] sm:$0xff]
    %v82 = vld [vmem:[%s1 + $0x100] sm:$0xff]
    %v83 = vld [vmem:[%s1 + $0x108] sm:$0xff]
    %v84 = vld [vmem:[%s1 + $0x110] sm:$0xff]
    %v85 = vld [vmem:[%s1 + $0x118] sm:$0xff]
    %v86 = vld [vmem:[%s1 + $0x120] sm:$0xff]
    %v87 = vld [vmem:[%s1 + $0x128] sm:$0xff]
    %v88 = vld [vmem:[%s1 + $0x130] sm:$0xff]
    %v89 = vld [vmem:[%s1 + $0x138] sm:$0xff]
    %v90 = vld [vmem:[%s1 + $0x140] sm:$0xff]
    %v91 = vld [vmem:[%s1 + $0x148] sm:$0xff]
    %v92 = vld [vmem:[%s1 + $0x150] sm:$0xff]
    %v93 = vld [vmem:[%s1 + $0x158] sm:$0xff]
    %v94 = vld [vmem:[%s1 + $0x160] sm:$0xff]
    %v95 = vld [vmem:[%s1 + $0x168] sm:$0xff]
    %v96 = vld [vmem:[%s1 + $0x170] sm:$0xff]
    %v97 = vld [vmem:[%s1 + $0x178] sm:$0xff]
    %v98 = vld [vmem:[%s1 + $0x180] sm:$0xff]
    %v99 = vld [vmem:[%s1 + $0x188] sm:$0xff]
    %v100 = vld [vmem:[%s1 + $0x190] sm:$0xff]
    %v101 = vld [vmem:[%s1 + $0x198] sm:$0xff]
    %v102 = vld [vmem:[%s1 + $0x1a0] sm:$0xff]
    %v103 = vld [vmem:[%s1 + $0x1a8] sm:$0xff]
    %v104 = vld [vmem:[%s1 + $0x1b0] sm:$0xff]
    %v105 = vld [vmem:[%s1 + $0x1b8] sm:$0xff]
    %v106 = vld [vmem:[%s1 + $0x1c0] sm:$0xff]
    %v107 = vld [vmem:[%s1 + $0x1c8] sm:$0xff]
    %v108 = vld [vmem:[%s1 + $0x1d0] sm:$0xff]
    %v109 = vld [vmem:[%s1 + $0x1d8] sm:$0xff]
    %v110 = vld [vmem:[%s1 + $0x1e0] sm:$0x7]
    %v111 = vld [vmem:[%s1 + $0x1e8] sm:$0x7]
    %vm112 = vcmask 941056
    %v114 = vsel %vm112, %v43, 0
    %v117 = vsel %vm112, %v45, 0
    %v120 = vsel %vm112, %v47, 0
    %v123 = vsel %vm112, %v49, 0
    %vm125 = vcmask 1042432
    %v127 = vsel %vm125, %v110, 0
    %v130 = vsel %vm125, %v111, 0
    %v132 = vand.u32 %v51, 4294901760
    %133 = vmatprep.subr.mxu0 %v132
    %v134 = vand.u32 %v50, 4294901760
    %135 = vmatpush1.msra.mxu0 %v134
    %v136 = vand.u32 %v53, 4294901760
    %137 = vmatprep.subr.mxu0 %v136
    %v138 = vand.u32 %v52, 4294901760
    %139 = vmatpush1.msra.mxu0 %v138
    %v140 = vand.u32 %v55, 4294901760
    %141 = vmatprep.subr.mxu0 %v140
    %v142 = vand.u32 %v54, 4294901760
    %143 = vmatpush1.msra.mxu0 %v142
    %v144 = vand.u32 %v57, 4294901760
    %145 = vmatprep.subr.mxu0 %v144
    %v146 = vand.u32 %v56, 4294901760
    %147 = vmatpush1.msra.mxu0 %v146
    %v148 = vand.u32 %v59, 4294901760
    %149 = vmatprep.subr.mxu0 %v148
    %v150 = vand.u32 %v58, 4294901760
    %151 = vmatpush1.msra.mxu0 %v150
    %v152 = vand.u32 %v61, 4294901760
    %153 = vmatprep.subr.mxu0 %v152
    %v154 = vand.u32 %v60, 4294901760
    %155 = vmatpush1.msra.mxu0 %v154
    %v156 = vand.u32 %v63, 4294901760
    %157 = vmatprep.subr.mxu0 %v156
    %v158 = vand.u32 %v62, 4294901760
    %159 = vmatpush1.msra.mxu0 %v158
    %v160 = vand.u32 %v65, 4294901760
    %161 = vmatprep.subr.mxu0 %v160
    %v162 = vand.u32 %v64, 4294901760
    %163 = vmatpush1.msra.mxu0 %v162
    %v164 = vand.u32 %v67, 4294901760
    %165 = vmatprep.subr.mxu0 %v164
    %v166 = vand.u32 %v66, 4294901760
    %167 = vmatpush1.msra.mxu0 %v166
    %v168 = vand.u32 %v69, 4294901760
    %169 = vmatprep.subr.mxu0 %v168
    %v170 = vand.u32 %v68, 4294901760
    %171 = vmatpush1.msra.mxu0 %v170
    %v172 = vand.u32 %v71, 4294901760
    %173 = vmatprep.subr.mxu0 %v172
    %v174 = vand.u32 %v70, 4294901760
    %175 = vmatpush1.msra.mxu0 %v174
    %v176 = vand.u32 %v73, 4294901760
    %177 = vmatprep.subr.mxu0 %v176
    %v178 = vand.u32 %v72, 4294901760
    %179 = vmatpush1.msra.mxu0 %v178
    %v180 = vand.u32 %v75, 4294901760
    %181 = vmatprep.subr.mxu0 %v180
    %v182 = vand.u32 %v74, 4294901760
    %183 = vmatpush1.msra.mxu0 %v182
    %v184 = vand.u32 %v77, 4294901760
    %185 = vmatprep.subr.mxu0 %v184
    %v186 = vand.u32 %v76, 4294901760
    %187 = vmatpush1.msra.mxu0 %v186
    %v188 = vand.u32 %v79, 4294901760
    %189 = vmatprep.subr.mxu0 %v188
    %v190 = vand.u32 %v78, 4294901760
    %191 = vmatpush1.msra.mxu0 %v190
    %v192 = vand.u32 %v81, 4294901760
    %193 = vmatprep.subr.mxu0 %v192
    %v194 = vand.u32 %v80, 4294901760
    %195 = vmatpush1.msra.mxu0 %v194
    %v196 = vand.u32 %v83, 4294901760
    %197 = vmatprep.subr.mxu0 %v196
    %v198 = vand.u32 %v82, 4294901760
    %199 = vmatpush1.msra.mxu0 %v198
    %v200 = vand.u32 %v85, 4294901760
    %201 = vmatprep.subr.mxu0 %v200
    %v202 = vand.u32 %v84, 4294901760
    %203 = vmatpush1.msra.mxu0 %v202
    %v204 = vand.u32 %v87, 4294901760
    %205 = vmatprep.subr.mxu0 %v204
    %v206 = vand.u32 %v86, 4294901760
    %207 = vmatpush1.msra.mxu0 %v206
    %v208 = vand.u32 %v89, 4294901760
    %209 = vmatprep.subr.mxu0 %v208
    %v210 = vand.u32 %v88, 4294901760
    %211 = vmatpush1.msra.mxu0 %v210
    %v212 = vand.u32 %v91, 4294901760
    %213 = vmatprep.subr.mxu0 %v212
    %v214 = vand.u32 %v90, 4294901760
    %215 = vmatpush1.msra.mxu0 %v214
    %v216 = vand.u32 %v93, 4294901760
    %217 = vmatprep.subr.mxu0 %v216
    %v218 = vand.u32 %v92, 4294901760
    %219 = vmatpush1.msra.mxu0 %v218
    %v220 = vand.u32 %v95, 4294901760
    %221 = vmatprep.subr.mxu0 %v220
    %v222 = vand.u32 %v94, 4294901760
    %223 = vmatpush1.msra.mxu0 %v222
    %v224 = vand.u32 %v97, 4294901760
    %225 = vmatprep.subr.mxu0 %v224
    %v226 = vand.u32 %v96, 4294901760
    %227 = vmatpush1.msra.mxu0 %v226
    %v228 = vand.u32 %v99, 4294901760
    %229 = vmatprep.subr.mxu0 %v228
    %v230 = vand.u32 %v98, 4294901760
    %231 = vmatpush1.msra.mxu0 %v230
    %v232 = vand.u32 %v101, 4294901760
    %233 = vmatprep.subr.mxu0 %v232
    %v234 = vand.u32 %v100, 4294901760
    %235 = vmatpush1.msra.mxu0 %v234
    %v236 = vand.u32 %v103, 4294901760
    %237 = vmatprep.subr.mxu0 %v236
    %v238 = vand.u32 %v102, 4294901760
    %239 = vmatpush1.msra.mxu0 %v238
    %v240 = vand.u32 %v105, 4294901760
    %241 = vmatprep.subr.mxu0 %v240
    %v242 = vand.u32 %v104, 4294901760
    %243 = vmatpush1.msra.mxu0 %v242
    %v244 = vand.u32 %v107, 4294901760
    %245 = vmatprep.subr.mxu0 %v244
    %v246 = vand.u32 %v106, 4294901760
    %247 = vmatpush1.msra.mxu0 %v246
    %v248 = vand.u32 %v109, 4294901760
    %249 = vmatprep.subr.mxu0 %v248
    %v250 = vand.u32 %v108, 4294901760
    %251 = vmatpush1.msra.mxu0 %v250
    %v252 = vand.u32 %v130, 4294901760
    %253 = vmatprep.subr.mxu0 %v252
    %v254 = vand.u32 %v127, 4294901760
    %255 = vmatpush1.msra.mxu0 %v254
    %256 = vmatprep.subr.mxu0 0.0
    %257 = vmatpush1.msra.mxu0 0.0
    %v258 = vand.u32 %v114, 4294901760
    %v259 = vsub.f32 %v114, %v258
    %v260 = vand.u32 %v259, 4294901760
    %v261 = vsub.f32 %v259, %v260
    %v262 = vand.u32 %v261, 4294901760
    %263 = vmatprep.mubr.f32.mxu0 %v262
    %v264 = vand.u32 %v42, 4294901760
    %v265 = vsub.f32 %v42, %v264
    %v266 = vand.u32 %v265, 4294901760
    %v267 = vsub.f32 %v265, %v266
    %v268 = vand.u32 %v267, 4294901760
    %269 = vmatmul.mubr.f32.gmra.mrb[0].mxu0 %v268
    %v270 = vpop.f32.mrb[0].mxu0
    %v271 = vadd.f32 0.0, %v270
    %v272 = vpop.f32.mrb[0].mxu0
    %v273 = vadd.f32 0.0, %v272
    %v274 = vand.u32 %v117, 4294901760
    %v275 = vsub.f32 %v117, %v274
    %v276 = vand.u32 %v275, 4294901760
    %v277 = vsub.f32 %v275, %v276
    %v278 = vand.u32 %v277, 4294901760
    %279 = vmatprep.mubr.f32.mxu0 %v278
    %v280 = vand.u32 %v44, 4294901760
    %v281 = vsub.f32 %v44, %v280
    %v282 = vand.u32 %v281, 4294901760
    %v283 = vsub.f32 %v281, %v282
    %v284 = vand.u32 %v283, 4294901760
    %285 = vmatmul.mubr.f32.gmra.mrb[0].mxu0 %v284
    %v286 = vpop.f32.mrb[0].mxu0
    %v287 = vadd.f32 0.0, %v286
    %v288 = vpop.f32.mrb[0].mxu0
    %v289 = vadd.f32 0.0, %v288
    %v290 = vand.u32 %v120, 4294901760
    %v291 = vsub.f32 %v120, %v290
    %v292 = vand.u32 %v291, 4294901760
    %v293 = vsub.f32 %v291, %v292
    %v294 = vand.u32 %v293, 4294901760
    %295 = vmatprep.mubr.f32.mxu0 %v294
    %v296 = vand.u32 %v46, 4294901760
    %v297 = vsub.f32 %v46, %v296
    %v298 = vand.u32 %v297, 4294901760
    %v299 = vsub.f32 %v297, %v298
    %v300 = vand.u32 %v299, 4294901760
    %301 = vmatmul.mubr.f32.gmra.mrb[0].mxu0 %v300
    %v302 = vpop.f32.mrb[0].mxu0
    %v303 = vadd.f32 0.0, %v302
    %v304 = vpop.f32.mrb[0].mxu0
    %v305 = vadd.f32 0.0, %v304
    %v306 = vand.u32 %v123, 4294901760
    %v307 = vsub.f32 %v123, %v306
    %v308 = vand.u32 %v307, 4294901760
    %v309 = vsub.f32 %v307, %v308
    %v310 = vand.u32 %v309, 4294901760
    %311 = vmatprep.mubr.f32.mxu0 %v310
    %v312 = vand.u32 %v48, 4294901760
    %v313 = vsub.f32 %v48, %v312
    %v314 = vand.u32 %v313, 4294901760
    %v315 = vsub.f32 %v313, %v314
    %v316 = vand.u32 %v315, 4294901760
    %317 = vmatmul.mubr.f32.gmra.mrb[0].mxu0 %v316
    %v318 = vpop.f32.mrb[0].mxu0
    %v319 = vadd.f32 0.0, %v318
    %v320 = vpop.f32.mrb[0].mxu0
    %v321 = vadd.f32 0.0, %v320
    %322 = vdwg.mxu0
    %v323 = vand.u32 %v51, 4294901760
    %v324 = vsub.f32 %v51, %v323
    %v325 = vand.u32 %v324, 4294901760
    %v326 = vsub.f32 %v324, %v325
    %v327 = vand.u32 %v326, 4294901760
    %328 = vmatprep.subr.mxu0 %v327
    %v329 = vand.u32 %v50, 4294901760
    %v330 = vsub.f32 %v50, %v329
    %v331 = vand.u32 %v330, 4294901760
    %v332 = vsub.f32 %v330, %v331
    %v333 = vand.u32 %v332, 4294901760
    %334 = vmatpush1.msra.mxu0 %v333
    %v335 = vand.u32 %v53, 4294901760
    %v336 = vsub.f32 %v53, %v335
    %v337 = vand.u32 %v336, 4294901760
    %v338 = vsub.f32 %v336, %v337
    %v339 = vand.u32 %v338, 4294901760
    %340 = vmatprep.subr.mxu0 %v339
    %v341 = vand.u32 %v52, 4294901760
    %v342 = vsub.f32 %v52, %v341
    %v343 = vand.u32 %v342, 4294901760
    %v344 = vsub.f32 %v342, %v343
    %v345 = vand.u32 %v344, 4294901760
    %346 = vmatpush1.msra.mxu0 %v345
    %v347 = vand.u32 %v55, 4294901760
    %v348 = vsub.f32 %v55, %v347
    %v349 = vand.u32 %v348, 4294901760
    %v350 = vsub.f32 %v348, %v349
    %v351 = vand.u32 %v350, 4294901760
    %352 = vmatprep.subr.mxu0 %v351
    %v353 = vand.u32 %v54, 4294901760
    %v354 = vsub.f32 %v54, %v353
    %v355 = vand.u32 %v354, 4294901760
    %v356 = vsub.f32 %v354, %v355
    %v357 = vand.u32 %v356, 4294901760
    %358 = vmatpush1.msra.mxu0 %v357
    %v359 = vand.u32 %v57, 4294901760
    %v360 = vsub.f32 %v57, %v359
    %v361 = vand.u32 %v360, 4294901760
    %v362 = vsub.f32 %v360, %v361
    %v363 = vand.u32 %v362, 4294901760
    %364 = vmatprep.subr.mxu0 %v363
    %v365 = vand.u32 %v56, 4294901760
    %v366 = vsub.f32 %v56, %v365
    %v367 = vand.u32 %v366, 4294901760
    %v368 = vsub.f32 %v366, %v367
    %v369 = vand.u32 %v368, 4294901760
    %370 = vmatpush1.msra.mxu0 %v369
    %v371 = vand.u32 %v59, 4294901760
    %v372 = vsub.f32 %v59, %v371
    %v373 = vand.u32 %v372, 4294901760
    %v374 = vsub.f32 %v372, %v373
    %v375 = vand.u32 %v374, 4294901760
    %376 = vmatprep.subr.mxu0 %v375
    %v377 = vand.u32 %v58, 4294901760
    %v378 = vsub.f32 %v58, %v377
    %v379 = vand.u32 %v378, 4294901760
    %v380 = vsub.f32 %v378, %v379
    %v381 = vand.u32 %v380, 4294901760
    %382 = vmatpush1.msra.mxu0 %v381
    %v383 = vand.u32 %v61, 4294901760
    %v384 = vsub.f32 %v61, %v383
    %v385 = vand.u32 %v384, 4294901760
    %v386 = vsub.f32 %v384, %v385
    %v387 = vand.u32 %v386, 4294901760
    %388 = vmatprep.subr.mxu0 %v387
    %v389 = vand.u32 %v60, 4294901760
    %v390 = vsub.f32 %v60, %v389
    %v391 = vand.u32 %v390, 4294901760
    %v392 = vsub.f32 %v390, %v391
    %v393 = vand.u32 %v392, 4294901760
    %394 = vmatpush1.msra.mxu0 %v393
    %v395 = vand.u32 %v63, 4294901760
    %v396 = vsub.f32 %v63, %v395
    %v397 = vand.u32 %v396, 4294901760
    %v398 = vsub.f32 %v396, %v397
    %v399 = vand.u32 %v398, 4294901760
    %400 = vmatprep.subr.mxu0 %v399
    %v401 = vand.u32 %v62, 4294901760
    %v402 = vsub.f32 %v62, %v401
    %v403 = vand.u32 %v402, 4294901760
    %v404 = vsub.f32 %v402, %v403
    %v405 = vand.u32 %v404, 4294901760
    %406 = vmatpush1.msra.mxu0 %v405
    %v407 = vand.u32 %v65, 4294901760
    %v408 = vsub.f32 %v65, %v407
    %v409 = vand.u32 %v408, 4294901760
    %v410 = vsub.f32 %v408, %v409
    %v411 = vand.u32 %v410, 4294901760
    %412 = vmatprep.subr.mxu0 %v411
    %v413 = vand.u32 %v64, 4294901760
    %v414 = vsub.f32 %v64, %v413
    %v415 = vand.u32 %v414, 4294901760
    %v416 = vsub.f32 %v414, %v415
    %v417 = vand.u32 %v416, 4294901760
    %418 = vmatpush1.msra.mxu0 %v417
    %v419 = vand.u32 %v67, 4294901760
    %v420 = vsub.f32 %v67, %v419
    %v421 = vand.u32 %v420, 4294901760
    %v422 = vsub.f32 %v420, %v421
    %v423 = vand.u32 %v422, 4294901760
    %424 = vmatprep.subr.mxu0 %v423
    %v425 = vand.u32 %v66, 4294901760
    %v426 = vsub.f32 %v66, %v425
    %v427 = vand.u32 %v426, 4294901760
    %v428 = vsub.f32 %v426, %v427
    %v429 = vand.u32 %v428, 4294901760
    %430 = vmatpush1.msra.mxu0 %v429
    %v431 = vand.u32 %v69, 4294901760
    %v432 = vsub.f32 %v69, %v431
    %v433 = vand.u32 %v432, 4294901760
    %v434 = vsub.f32 %v432, %v433
    %v435 = vand.u32 %v434, 4294901760
    %436 = vmatprep.subr.mxu0 %v435
    %v437 = vand.u32 %v68, 4294901760
    %v438 = vsub.f32 %v68, %v437
    %v439 = vand.u32 %v438, 4294901760
    %v440 = vsub.f32 %v438, %v439
    %v441 = vand.u32 %v440, 4294901760
    %442 = vmatpush1.msra.mxu0 %v441
    %v443 = vand.u32 %v71, 4294901760
    %v444 = vsub.f32 %v71, %v443
    %v445 = vand.u32 %v444, 4294901760
    %v446 = vsub.f32 %v444, %v445
    %v447 = vand.u32 %v446, 4294901760
    %448 = vmatprep.subr.mxu0 %v447
    %v449 = vand.u32 %v70, 4294901760
    %v450 = vsub.f32 %v70, %v449
    %v451 = vand.u32 %v450, 4294901760
    %v452 = vsub.f32 %v450, %v451
    %v453 = vand.u32 %v452, 4294901760
    %454 = vmatpush1.msra.mxu0 %v453
    %v455 = vand.u32 %v73, 4294901760
    %v456 = vsub.f32 %v73, %v455
    %v457 = vand.u32 %v456, 4294901760
    %v458 = vsub.f32 %v456, %v457
    %v459 = vand.u32 %v458, 4294901760
    %460 = vmatprep.subr.mxu0 %v459
    %v461 = vand.u32 %v72, 4294901760
    %v462 = vsub.f32 %v72, %v461
    %v463 = vand.u32 %v462, 4294901760
    %v464 = vsub.f32 %v462, %v463
    %v465 = vand.u32 %v464, 4294901760
    %466 = vmatpush1.msra.mxu0 %v465
    %v467 = vand.u32 %v75, 4294901760
    %v468 = vsub.f32 %v75, %v467
    %v469 = vand.u32 %v468, 4294901760
    %v470 = vsub.f32 %v468, %v469
    %v471 = vand.u32 %v470, 4294901760
    %472 = vmatprep.subr.mxu0 %v471
    %v473 = vand.u32 %v74, 4294901760
    %v474 = vsub.f32 %v74, %v473
    %v475 = vand.u32 %v474, 4294901760
    %v476 = vsub.f32 %v474, %v475
    %v477 = vand.u32 %v476, 4294901760
    %478 = vmatpush1.msra.mxu0 %v477
    %v479 = vand.u32 %v77, 4294901760
    %v480 = vsub.f32 %v77, %v479
    %v481 = vand.u32 %v480, 4294901760
    %v482 = vsub.f32 %v480, %v481
    %v483 = vand.u32 %v482, 4294901760
    %484 = vmatprep.subr.mxu0 %v483
    %v485 = vand.u32 %v76, 4294901760
    %v486 = vsub.f32 %v76, %v485
    %v487 = vand.u32 %v486, 4294901760
    %v488 = vsub.f32 %v486, %v487
    %v489 = vand.u32 %v488, 4294901760
    %490 = vmatpush1.msra.mxu0 %v489
    %v491 = vand.u32 %v79, 4294901760
    %v492 = vsub.f32 %v79, %v491
    %v493 = vand.u32 %v492, 4294901760
    %v494 = vsub.f32 %v492, %v493
    %v495 = vand.u32 %v494, 4294901760
    %496 = vmatprep.subr.mxu0 %v495
    %v497 = vand.u32 %v78, 4294901760
    %v498 = vsub.f32 %v78, %v497
    %v499 = vand.u32 %v498, 4294901760
    %v500 = vsub.f32 %v498, %v499
    %v501 = vand.u32 %v500, 4294901760
    %502 = vmatpush1.msra.mxu0 %v501
    %v503 = vand.u32 %v81, 4294901760
    %v504 = vsub.f32 %v81, %v503
    %v505 = vand.u32 %v504, 4294901760
    %v506 = vsub.f32 %v504, %v505
    %v507 = vand.u32 %v506, 4294901760
    %508 = vmatprep.subr.mxu0 %v507
    %v509 = vand.u32 %v80, 4294901760
    %v510 = vsub.f32 %v80, %v509
    %v511 = vand.u32 %v510, 4294901760
    %v512 = vsub.f32 %v510, %v511
    %v513 = vand.u32 %v512, 4294901760
    %514 = vmatpush1.msra.mxu0 %v513
    %v515 = vand.u32 %v83, 4294901760
    %v516 = vsub.f32 %v83, %v515
    %v517 = vand.u32 %v516, 4294901760
    %v518 = vsub.f32 %v516, %v517
    %v519 = vand.u32 %v518, 4294901760
    %520 = vmatprep.subr.mxu0 %v519
    %v521 = vand.u32 %v82, 4294901760
    %v522 = vsub.f32 %v82, %v521
    %v523 = vand.u32 %v522, 4294901760
    %v524 = vsub.f32 %v522, %v523
    %v525 = vand.u32 %v524, 4294901760
    %526 = vmatpush1.msra.mxu0 %v525
    %v527 = vand.u32 %v85, 4294901760
    %v528 = vsub.f32 %v85, %v527
    %v529 = vand.u32 %v528, 4294901760
    %v530 = vsub.f32 %v528, %v529
    %v531 = vand.u32 %v530, 4294901760
    %532 = vmatprep.subr.mxu0 %v531
    %v533 = vand.u32 %v84, 4294901760
    %v534 = vsub.f32 %v84, %v533
    %v535 = vand.u32 %v534, 4294901760
    %v536 = vsub.f32 %v534, %v535
    %v537 = vand.u32 %v536, 4294901760
    %538 = vmatpush1.msra.mxu0 %v537
    %v539 = vand.u32 %v87, 4294901760
    %v540 = vsub.f32 %v87, %v539
    %v541 = vand.u32 %v540, 4294901760
    %v542 = vsub.f32 %v540, %v541
    %v543 = vand.u32 %v542, 4294901760
    %544 = vmatprep.subr.mxu0 %v543
    %v545 = vand.u32 %v86, 4294901760
    %v546 = vsub.f32 %v86, %v545
    %v547 = vand.u32 %v546, 4294901760
    %v548 = vsub.f32 %v546, %v547
    %v549 = vand.u32 %v548, 4294901760
    %550 = vmatpush1.msra.mxu0 %v549
    %v551 = vand.u32 %v89, 4294901760
    %v552 = vsub.f32 %v89, %v551
    %v553 = vand.u32 %v552, 4294901760
    %v554 = vsub.f32 %v552, %v553
    %v555 = vand.u32 %v554, 4294901760
    %556 = vmatprep.subr.mxu0 %v555
    %v557 = vand.u32 %v88, 4294901760
    %v558 = vsub.f32 %v88, %v557
    %v559 = vand.u32 %v558, 4294901760
    %v560 = vsub.f32 %v558, %v559
    %v561 = vand.u32 %v560, 4294901760
    %562 = vmatpush1.msra.mxu0 %v561
    %v563 = vand.u32 %v91, 4294901760
    %v564 = vsub.f32 %v91, %v563
    %v565 = vand.u32 %v564, 4294901760
    %v566 = vsub.f32 %v564, %v565
    %v567 = vand.u32 %v566, 4294901760
    %568 = vmatprep.subr.mxu0 %v567
    %v569 = vand.u32 %v90, 4294901760
    %v570 = vsub.f32 %v90, %v569
    %v571 = vand.u32 %v570, 4294901760
    %v572 = vsub.f32 %v570, %v571
    %v573 = vand.u32 %v572, 4294901760
    %574 = vmatpush1.msra.mxu0 %v573
    %v575 = vand.u32 %v93, 4294901760
    %v576 = vsub.f32 %v93, %v575
    %v577 = vand.u32 %v576, 4294901760
    %v578 = vsub.f32 %v576, %v577
    %v579 = vand.u32 %v578, 4294901760
    %580 = vmatprep.subr.mxu0 %v579
    %v581 = vand.u32 %v92, 4294901760
    %v582 = vsub.f32 %v92, %v581
    %v583 = vand.u32 %v582, 4294901760
    %v584 = vsub.f32 %v582, %v583
    %v585 = vand.u32 %v584, 4294901760
    %586 = vmatpush1.msra.mxu0 %v585
    %v587 = vand.u32 %v95, 4294901760
    %v588 = vsub.f32 %v95, %v587
    %v589 = vand.u32 %v588, 4294901760
    %v590 = vsub.f32 %v588, %v589
    %v591 = vand.u32 %v590, 4294901760
    %592 = vmatprep.subr.mxu0 %v591
    %v593 = vand.u32 %v94, 4294901760
    %v594 = vsub.f32 %v94, %v593
    %v595 = vand.u32 %v594, 4294901760
    %v596 = vsub.f32 %v594, %v595
    %v597 = vand.u32 %v596, 4294901760
    %598 = vmatpush1.msra.mxu0 %v597
    %v599 = vand.u32 %v97, 4294901760
    %v600 = vsub.f32 %v97, %v599
    %v601 = vand.u32 %v600, 4294901760
    %v602 = vsub.f32 %v600, %v601
    %v603 = vand.u32 %v602, 4294901760
    %604 = vmatprep.subr.mxu0 %v603
    %v605 = vand.u32 %v96, 4294901760
    %v606 = vsub.f32 %v96, %v605
    %v607 = vand.u32 %v606, 4294901760
    %v608 = vsub.f32 %v606, %v607
    %v609 = vand.u32 %v608, 4294901760
    %610 = vmatpush1.msra.mxu0 %v609
    %v611 = vand.u32 %v99, 4294901760
    %v612 = vsub.f32 %v99, %v611
    %v613 = vand.u32 %v612, 4294901760
    %v614 = vsub.f32 %v612, %v613
    %v615 = vand.u32 %v614, 4294901760
    %616 = vmatprep.subr.mxu0 %v615
    %v617 = vand.u32 %v98, 4294901760
    %v618 = vsub.f32 %v98, %v617
    %v619 = vand.u32 %v618, 4294901760
    %v620 = vsub.f32 %v618, %v619
    %v621 = vand.u32 %v620, 4294901760
    %622 = vmatpush1.msra.mxu0 %v621
    %v623 = vand.u32 %v101, 4294901760
    %v624 = vsub.f32 %v101, %v623
    %v625 = vand.u32 %v624, 4294901760
    %v626 = vsub.f32 %v624, %v625
    %v627 = vand.u32 %v626, 4294901760
    %628 = vmatprep.subr.mxu0 %v627
    %v629 = vand.u32 %v100, 4294901760
    %v630 = vsub.f32 %v100, %v629
    %v631 = vand.u32 %v630, 4294901760
    %v632 = vsub.f32 %v630, %v631
    %v633 = vand.u32 %v632, 4294901760
    %634 = vmatpush1.msra.mxu0 %v633
    %v635 = vand.u32 %v103, 4294901760
    %v636 = vsub.f32 %v103, %v635
    %v637 = vand.u32 %v636, 4294901760
    %v638 = vsub.f32 %v636, %v637
    %v639 = vand.u32 %v638, 4294901760
    %640 = vmatprep.subr.mxu0 %v639
    %v641 = vand.u32 %v102, 4294901760
    %v642 = vsub.f32 %v102, %v641
    %v643 = vand.u32 %v642, 4294901760
    %v644 = vsub.f32 %v642, %v643
    %v645 = vand.u32 %v644, 4294901760
    %646 = vmatpush1.msra.mxu0 %v645
    %v647 = vand.u32 %v105, 4294901760
    %v648 = vsub.f32 %v105, %v647
    %v649 = vand.u32 %v648, 4294901760
    %v650 = vsub.f32 %v648, %v649
    %v651 = vand.u32 %v650, 4294901760
    %652 = vmatprep.subr.mxu0 %v651
    %v653 = vand.u32 %v104, 4294901760
    %v654 = vsub.f32 %v104, %v653
    %v655 = vand.u32 %v654, 4294901760
    %v656 = vsub.f32 %v654, %v655
    %v657 = vand.u32 %v656, 4294901760
    %658 = vmatpush1.msra.mxu0 %v657
    %v659 = vand.u32 %v107, 4294901760
    %v660 = vsub.f32 %v107, %v659
    %v661 = vand.u32 %v660, 4294901760
    %v662 = vsub.f32 %v660, %v661
    %v663 = vand.u32 %v662, 4294901760
    %664 = vmatprep.subr.mxu0 %v663
    %v665 = vand.u32 %v106, 4294901760
    %v666 = vsub.f32 %v106, %v665
    %v667 = vand.u32 %v666, 4294901760
    %v668 = vsub.f32 %v666, %v667
    %v669 = vand.u32 %v668, 4294901760
    %670 = vmatpush1.msra.mxu0 %v669
    %v671 = vand.u32 %v109, 4294901760
    %v672 = vsub.f32 %v109, %v671
    %v673 = vand.u32 %v672, 4294901760
    %v674 = vsub.f32 %v672, %v673
    %v675 = vand.u32 %v674, 4294901760
    %676 = vmatprep.subr.mxu0 %v675
    %v677 = vand.u32 %v108, 4294901760
    %v678 = vsub.f32 %v108, %v677
    %v679 = vand.u32 %v678, 4294901760
    %v680 = vsub.f32 %v678, %v679
    %v681 = vand.u32 %v680, 4294901760
    %682 = vmatpush1.msra.mxu0 %v681
    %v683 = vand.u32 %v130, 4294901760
    %v684 = vsub.f32 %v130, %v683
    %v685 = vand.u32 %v684, 4294901760
    %v686 = vsub.f32 %v684, %v685
    %v687 = vand.u32 %v686, 4294901760
    %688 = vmatprep.subr.mxu0 %v687
    %v689 = vand.u32 %v127, 4294901760
    %v690 = vsub.f32 %v127, %v689
    %v691 = vand.u32 %v690, 4294901760
    %v692 = vsub.f32 %v690, %v691
    %v693 = vand.u32 %v692, 4294901760
    %694 = vmatpush1.msra.mxu0 %v693
    %695 = vmatprep.subr.mxu0 0.0
    %696 = vmatpush1.msra.mxu0 0.0
    %v697 = vand.u32 %v114, 4294901760
    %698 = vmatprep.mubr.f32.mxu0 %v697
    %v699 = vand.u32 %v42, 4294901760
    %700 = vmatmul.mubr.f32.gmra.mrb[0].mxu0 %v699
    %v701 = vpop.f32.mrb[0].mxu0
    %v702 = vadd.f32 %v271, %v701
    %v703 = vpop.f32.mrb[0].mxu0
    %v704 = vadd.f32 %v273, %v703
    %v705 = vand.u32 %v117, 4294901760
    %706 = vmatprep.mubr.f32.mxu0 %v705
    %v707 = vand.u32 %v44, 4294901760
    %708 = vmatmul.mubr.f32.gmra.mrb[0].mxu0 %v707
    %v709 = vpop.f32.mrb[0].mxu0
    %v710 = vadd.f32 %v287, %v709
    %v711 = vpop.f32.mrb[0].mxu0
    %v712 = vadd.f32 %v289, %v711
    %v713 = vand.u32 %v120, 4294901760
    %714 = vmatprep.mubr.f32.mxu0 %v713
    %v715 = vand.u32 %v46, 4294901760
    %716 = vmatmul.mubr.f32.gmra.mrb[0].mxu0 %v715
    %v717 = vpop.f32.mrb[0].mxu0
    %v718 = vadd.f32 %v303, %v717
    %v719 = vpop.f32.mrb[0].mxu0
    %v720 = vadd.f32 %v305, %v719
    %v721 = vand.u32 %v123, 4294901760
    %722 = vmatprep.mubr.f32.mxu0 %v721
    %v723 = vand.u32 %v48, 4294901760
    %724 = vmatmul.mubr.f32.gmra.mrb[0].mxu0 %v723
    %v725 = vpop.f32.mrb[0].mxu0
    %v726 = vadd.f32 %v319, %v725
    %v727 = vpop.f32.mrb[0].mxu0
    %v728 = vadd.f32 %v321, %v727
    %729 = vdwg.mxu0
    %v730 = vand.u32 %v51, 4294901760
    %v731 = vsub.f32 %v51, %v730
    %732 = vmatprep.subr.mxu0 %v731
    %v733 = vand.u32 %v50, 4294901760
    %v734 = vsub.f32 %v50, %v733
    %735 = vmatpush1.msra.mxu0 %v734
    %v736 = vand.u32 %v53, 4294901760
    %v737 = vsub.f32 %v53, %v736
    %738 = vmatprep.subr.mxu0 %v737
    %v739 = vand.u32 %v52, 4294901760
    %v740 = vsub.f32 %v52, %v739
    %741 = vmatpush1.msra.mxu0 %v740
    %v742 = vand.u32 %v55, 4294901760
    %v743 = vsub.f32 %v55, %v742
    %744 = vmatprep.subr.mxu0 %v743
    %v745 = vand.u32 %v54, 4294901760
    %v746 = vsub.f32 %v54, %v745
    %747 = vmatpush1.msra.mxu0 %v746
    %v748 = vand.u32 %v57, 4294901760
    %v749 = vsub.f32 %v57, %v748
    %750 = vmatprep.subr.mxu0 %v749
    %v751 = vand.u32 %v56, 4294901760
    %v752 = vsub.f32 %v56, %v751
    %753 = vmatpush1.msra.mxu0 %v752
    %v754 = vand.u32 %v59, 4294901760
    %v755 = vsub.f32 %v59, %v754
    %756 = vmatprep.subr.mxu0 %v755
    %v757 = vand.u32 %v58, 4294901760
    %v758 = vsub.f32 %v58, %v757
    %759 = vmatpush1.msra.mxu0 %v758
    %v760 = vand.u32 %v61, 4294901760
    %v761 = vsub.f32 %v61, %v760
    %762 = vmatprep.subr.mxu0 %v761
    %v763 = vand.u32 %v60, 4294901760
    %v764 = vsub.f32 %v60, %v763
    %765 = vmatpush1.msra.mxu0 %v764
    %v766 = vand.u32 %v63, 4294901760
    %v767 = vsub.f32 %v63, %v766
    %768 = vmatprep.subr.mxu0 %v767
    %v769 = vand.u32 %v62, 4294901760
    %v770 = vsub.f32 %v62, %v769
    %771 = vmatpush1.msra.mxu0 %v770
    %v772 = vand.u32 %v65, 4294901760
    %v773 = vsub.f32 %v65, %v772
    %774 = vmatprep.subr.mxu0 %v773
    %v775 = vand.u32 %v64, 4294901760
    %v776 = vsub.f32 %v64, %v775
    %777 = vmatpush1.msra.mxu0 %v776
    %v778 = vand.u32 %v67, 4294901760
    %v779 = vsub.f32 %v67, %v778
    %780 = vmatprep.subr.mxu0 %v779
    %v781 = vand.u32 %v66, 4294901760
    %v782 = vsub.f32 %v66, %v781
    %783 = vmatpush1.msra.mxu0 %v782
    %v784 = vand.u32 %v69, 4294901760
    %v785 = vsub.f32 %v69, %v784
    %786 = vmatprep.subr.mxu0 %v785
    %v787 = vand.u32 %v68, 4294901760
    %v788 = vsub.f32 %v68, %v787
    %789 = vmatpush1.msra.mxu0 %v788
    %v790 = vand.u32 %v71, 4294901760
    %v791 = vsub.f32 %v71, %v790
    %792 = vmatprep.subr.mxu0 %v791
    %v793 = vand.u32 %v70, 4294901760
    %v794 = vsub.f32 %v70, %v793
    %795 = vmatpush1.msra.mxu0 %v794
    %v796 = vand.u32 %v73, 4294901760
    %v797 = vsub.f32 %v73, %v796
    %798 = vmatprep.subr.mxu0 %v797
    %v799 = vand.u32 %v72, 4294901760
    %v800 = vsub.f32 %v72, %v799
    %801 = vmatpush1.msra.mxu0 %v800
    %v802 = vand.u32 %v75, 4294901760
    %v803 = vsub.f32 %v75, %v802
    %804 = vmatprep.subr.mxu0 %v803
    %v805 = vand.u32 %v74, 4294901760
    %v806 = vsub.f32 %v74, %v805
    %807 = vmatpush1.msra.mxu0 %v806
    %v808 = vand.u32 %v77, 4294901760
    %v809 = vsub.f32 %v77, %v808
    %810 = vmatprep.subr.mxu0 %v809
    %v811 = vand.u32 %v76, 4294901760
    %v812 = vsub.f32 %v76, %v811
    %813 = vmatpush1.msra.mxu0 %v812
    %v814 = vand.u32 %v79, 4294901760
    %v815 = vsub.f32 %v79, %v814
    %816 = vmatprep.subr.mxu0 %v815
    %v817 = vand.u32 %v78, 4294901760
    %v818 = vsub.f32 %v78, %v817
    %819 = vmatpush1.msra.mxu0 %v818
    %v820 = vand.u32 %v81, 4294901760
    %v821 = vsub.f32 %v81, %v820
    %822 = vmatprep.subr.mxu0 %v821
    %v823 = vand.u32 %v80, 4294901760
    %v824 = vsub.f32 %v80, %v823
    %825 = vmatpush1.msra.mxu0 %v824
    %v826 = vand.u32 %v83, 4294901760
    %v827 = vsub.f32 %v83, %v826
    %828 = vmatprep.subr.mxu0 %v827
    %v829 = vand.u32 %v82, 4294901760
    %v830 = vsub.f32 %v82, %v829
    %831 = vmatpush1.msra.mxu0 %v830
    %v832 = vand.u32 %v85, 4294901760
    %v833 = vsub.f32 %v85, %v832
    %834 = vmatprep.subr.mxu0 %v833
    %v835 = vand.u32 %v84, 4294901760
    %v836 = vsub.f32 %v84, %v835
    %837 = vmatpush1.msra.mxu0 %v836
    %v838 = vand.u32 %v87, 4294901760
    %v839 = vsub.f32 %v87, %v838
    %840 = vmatprep.subr.mxu0 %v839
    %v841 = vand.u32 %v86, 4294901760
    %v842 = vsub.f32 %v86, %v841
    %843 = vmatpush1.msra.mxu0 %v842
    %v844 = vand.u32 %v89, 4294901760
    %v845 = vsub.f32 %v89, %v844
    %846 = vmatprep.subr.mxu0 %v845
    %v847 = vand.u32 %v88, 4294901760
    %v848 = vsub.f32 %v88, %v847
    %849 = vmatpush1.msra.mxu0 %v848
    %v850 = vand.u32 %v91, 4294901760
    %v851 = vsub.f32 %v91, %v850
    %852 = vmatprep.subr.mxu0 %v851
    %v853 = vand.u32 %v90, 4294901760
    %v854 = vsub.f32 %v90, %v853
    %855 = vmatpush1.msra.mxu0 %v854
    %v856 = vand.u32 %v93, 4294901760
    %v857 = vsub.f32 %v93, %v856
    %858 = vmatprep.subr.mxu0 %v857
    %v859 = vand.u32 %v92, 4294901760
    %v860 = vsub.f32 %v92, %v859
    %861 = vmatpush1.msra.mxu0 %v860
    %v862 = vand.u32 %v95, 4294901760
    %v863 = vsub.f32 %v95, %v862
    %864 = vmatprep.subr.mxu0 %v863
    %v865 = vand.u32 %v94, 4294901760
    %v866 = vsub.f32 %v94, %v865
    %867 = vmatpush1.msra.mxu0 %v866
    %v868 = vand.u32 %v97, 4294901760
    %v869 = vsub.f32 %v97, %v868
    %870 = vmatprep.subr.mxu0 %v869
    %v871 = vand.u32 %v96, 4294901760
    %v872 = vsub.f32 %v96, %v871
    %873 = vmatpush1.msra.mxu0 %v872
    %v874 = vand.u32 %v99, 4294901760
    %v875 = vsub.f32 %v99, %v874
    %876 = vmatprep.subr.mxu0 %v875
    %v877 = vand.u32 %v98, 4294901760
    %v878 = vsub.f32 %v98, %v877
    %879 = vmatpush1.msra.mxu0 %v878
    %v880 = vand.u32 %v101, 4294901760
    %v881 = vsub.f32 %v101, %v880
    %882 = vmatprep.subr.mxu0 %v881
    %v883 = vand.u32 %v100, 4294901760
    %v884 = vsub.f32 %v100, %v883
    %885 = vmatpush1.msra.mxu0 %v884
    %v886 = vand.u32 %v103, 4294901760
    %v887 = vsub.f32 %v103, %v886
    %888 = vmatprep.subr.mxu0 %v887
    %v889 = vand.u32 %v102, 4294901760
    %v890 = vsub.f32 %v102, %v889
    %891 = vmatpush1.msra.mxu0 %v890
    %v892 = vand.u32 %v105, 4294901760
    %v893 = vsub.f32 %v105, %v892
    %894 = vmatprep.subr.mxu0 %v893
    %v895 = vand.u32 %v104, 4294901760
    %v896 = vsub.f32 %v104, %v895
    %897 = vmatpush1.msra.mxu0 %v896
    %v898 = vand.u32 %v107, 4294901760
    %v899 = vsub.f32 %v107, %v898
    %900 = vmatprep.subr.mxu0 %v899
    %v901 = vand.u32 %v106, 4294901760
    %v902 = vsub.f32 %v106, %v901
    %903 = vmatpush1.msra.mxu0 %v902
    %v904 = vand.u32 %v109, 4294901760
    %v905 = vsub.f32 %v109, %v904
    %906 = vmatprep.subr.mxu0 %v905
    %v907 = vand.u32 %v108, 4294901760
    %v908 = vsub.f32 %v108, %v907
    %909 = vmatpush1.msra.mxu0 %v908
    %v910 = vand.u32 %v130, 4294901760
    %v911 = vsub.f32 %v130, %v910
    %912 = vmatprep.subr.mxu0 %v911
    %v913 = vand.u32 %v127, 4294901760
    %v914 = vsub.f32 %v127, %v913
    %915 = vmatpush1.msra.mxu0 %v914
    %916 = vmatprep.subr.mxu0 0.0
    %917 = vmatpush1.msra.mxu0 0.0
    %v918 = vand.u32 %v114, 4294901760
    %v919 = vsub.f32 %v114, %v918
    %920 = vmatprep.mubr.f32.mxu0 %v919
    %v921 = vand.u32 %v42, 4294901760
    %v922 = vsub.f32 %v42, %v921
    %923 = vmatmul.mubr.f32.gmra.mrb[0].mxu0 %v922
    %v924 = vpop.f32.mrb[0].mxu0
    %v925 = vadd.f32 %v702, %v924
    %v926 = vpop.f32.mrb[0].mxu0
    %v927 = vadd.f32 %v704, %v926
    %v928 = vand.u32 %v117, 4294901760
    %v929 = vsub.f32 %v117, %v928
    %930 = vmatprep.mubr.f32.mxu0 %v929
    %v931 = vand.u32 %v44, 4294901760
    %v932 = vsub.f32 %v44, %v931
    %933 = vmatmul.mubr.f32.gmra.mrb[0].mxu0 %v932
    %v934 = vpop.f32.mrb[0].mxu0
    %v935 = vadd.f32 %v710, %v934
    %v936 = vpop.f32.mrb[0].mxu0
    %v937 = vadd.f32 %v712, %v936
    %v938 = vand.u32 %v120, 4294901760
    %v939 = vsub.f32 %v120, %v938
    %940 = vmatprep.mubr.f32.mxu0 %v939
    %v941 = vand.u32 %v46, 4294901760
    %v942 = vsub.f32 %v46, %v941
    %943 = vmatmul.mubr.f32.gmra.mrb[0].mxu0 %v942
    %v944 = vpop.f32.mrb[0].mxu0
    %v945 = vadd.f32 %v718, %v944
    %v946 = vpop.f32.mrb[0].mxu0
    %v947 = vadd.f32 %v720, %v946
    %v948 = vand.u32 %v123, 4294901760
    %v949 = vsub.f32 %v123, %v948
    %950 = vmatprep.mubr.f32.mxu0 %v949
    %v951 = vand.u32 %v48, 4294901760
    %v952 = vsub.f32 %v48, %v951
    %953 = vmatmul.mubr.f32.gmra.mrb[0].mxu0 %v952
    %v954 = vpop.f32.mrb[0].mxu0
    %v955 = vadd.f32 %v726, %v954
    %v956 = vpop.f32.mrb[0].mxu0
    %v957 = vadd.f32 %v728, %v956
    %958 = vdwg.mxu0
    %v959 = vand.u32 %v51, 4294901760
    %960 = vmatprep.subr.mxu0 %v959
    %v961 = vand.u32 %v50, 4294901760
    %962 = vmatpush1.msra.mxu0 %v961
    %v963 = vand.u32 %v53, 4294901760
    %964 = vmatprep.subr.mxu0 %v963
    %v965 = vand.u32 %v52, 4294901760
    %966 = vmatpush1.msra.mxu0 %v965
    %v967 = vand.u32 %v55, 4294901760
    %968 = vmatprep.subr.mxu0 %v967
    %v969 = vand.u32 %v54, 4294901760
    %970 = vmatpush1.msra.mxu0 %v969
    %v971 = vand.u32 %v57, 4294901760
    %972 = vmatprep.subr.mxu0 %v971
    %v973 = vand.u32 %v56, 4294901760
    %974 = vmatpush1.msra.mxu0 %v973
    %v975 = vand.u32 %v59, 4294901760
    %976 = vmatprep.subr.mxu0 %v975
    %v977 = vand.u32 %v58, 4294901760
    %978 = vmatpush1.msra.mxu0 %v977
    %v979 = vand.u32 %v61, 4294901760
    %980 = vmatprep.subr.mxu0 %v979
    %v981 = vand.u32 %v60, 4294901760
    %982 = vmatpush1.msra.mxu0 %v981
    %v983 = vand.u32 %v63, 4294901760
    %984 = vmatprep.subr.mxu0 %v983
    %v985 = vand.u32 %v62, 4294901760
    %986 = vmatpush1.msra.mxu0 %v985
    %v987 = vand.u32 %v65, 4294901760
    %988 = vmatprep.subr.mxu0 %v987
    %v989 = vand.u32 %v64, 4294901760
    %990 = vmatpush1.msra.mxu0 %v989
    %v991 = vand.u32 %v67, 4294901760
    %992 = vmatprep.subr.mxu0 %v991
    %v993 = vand.u32 %v66, 4294901760
    %994 = vmatpush1.msra.mxu0 %v993
    %v995 = vand.u32 %v69, 4294901760
    %996 = vmatprep.subr.mxu0 %v995
    %v997 = vand.u32 %v68, 4294901760
    %998 = vmatpush1.msra.mxu0 %v997
    %v999 = vand.u32 %v71, 4294901760
    %1000 = vmatprep.subr.mxu0 %v999
    %v1001 = vand.u32 %v70, 4294901760
    %1002 = vmatpush1.msra.mxu0 %v1001
    %v1003 = vand.u32 %v73, 4294901760
    %1004 = vmatprep.subr.mxu0 %v1003
    %v1005 = vand.u32 %v72, 4294901760
    %1006 = vmatpush1.msra.mxu0 %v1005
    %v1007 = vand.u32 %v75, 4294901760
    %1008 = vmatprep.subr.mxu0 %v1007
    %v1009 = vand.u32 %v74, 4294901760
    %1010 = vmatpush1.msra.mxu0 %v1009
    %v1011 = vand.u32 %v77, 4294901760
    %1012 = vmatprep.subr.mxu0 %v1011
    %v1013 = vand.u32 %v76, 4294901760
    %1014 = vmatpush1.msra.mxu0 %v1013
    %v1015 = vand.u32 %v79, 4294901760
    %1016 = vmatprep.subr.mxu0 %v1015
    %v1017 = vand.u32 %v78, 4294901760
    %1018 = vmatpush1.msra.mxu0 %v1017
    %v1019 = vand.u32 %v81, 4294901760
    %1020 = vmatprep.subr.mxu0 %v1019
    %v1021 = vand.u32 %v80, 4294901760
    %1022 = vmatpush1.msra.mxu0 %v1021
    %v1023 = vand.u32 %v83, 4294901760
    %1024 = vmatprep.subr.mxu0 %v1023
    %v1025 = vand.u32 %v82, 4294901760
    %1026 = vmatpush1.msra.mxu0 %v1025
    %v1027 = vand.u32 %v85, 4294901760
    %1028 = vmatprep.subr.mxu0 %v1027
    %v1029 = vand.u32 %v84, 4294901760
    %1030 = vmatpush1.msra.mxu0 %v1029
    %v1031 = vand.u32 %v87, 4294901760
    %1032 = vmatprep.subr.mxu0 %v1031
    %v1033 = vand.u32 %v86, 4294901760
    %1034 = vmatpush1.msra.mxu0 %v1033
    %v1035 = vand.u32 %v89, 4294901760
    %1036 = vmatprep.subr.mxu0 %v1035
    %v1037 = vand.u32 %v88, 4294901760
    %1038 = vmatpush1.msra.mxu0 %v1037
    %v1039 = vand.u32 %v91, 4294901760
    %1040 = vmatprep.subr.mxu0 %v1039
    %v1041 = vand.u32 %v90, 4294901760
    %1042 = vmatpush1.msra.mxu0 %v1041
    %v1043 = vand.u32 %v93, 4294901760
    %1044 = vmatprep.subr.mxu0 %v1043
    %v1045 = vand.u32 %v92, 4294901760
    %1046 = vmatpush1.msra.mxu0 %v1045
    %v1047 = vand.u32 %v95, 4294901760
    %1048 = vmatprep.subr.mxu0 %v1047
    %v1049 = vand.u32 %v94, 4294901760
    %1050 = vmatpush1.msra.mxu0 %v1049
    %v1051 = vand.u32 %v97, 4294901760
    %1052 = vmatprep.subr.mxu0 %v1051
    %v1053 = vand.u32 %v96, 4294901760
    %1054 = vmatpush1.msra.mxu0 %v1053
    %v1055 = vand.u32 %v99, 4294901760
    %1056 = vmatprep.subr.mxu0 %v1055
    %v1057 = vand.u32 %v98, 4294901760
    %1058 = vmatpush1.msra.mxu0 %v1057
    %v1059 = vand.u32 %v101, 4294901760
    %1060 = vmatprep.subr.mxu0 %v1059
    %v1061 = vand.u32 %v100, 4294901760
    %1062 = vmatpush1.msra.mxu0 %v1061
    %v1063 = vand.u32 %v103, 4294901760
    %1064 = vmatprep.subr.mxu0 %v1063
    %v1065 = vand.u32 %v102, 4294901760
    %1066 = vmatpush1.msra.mxu0 %v1065
    %v1067 = vand.u32 %v105, 4294901760
    %1068 = vmatprep.subr.mxu0 %v1067
    %v1069 = vand.u32 %v104, 4294901760
    %1070 = vmatpush1.msra.mxu0 %v1069
    %v1071 = vand.u32 %v107, 4294901760
    %1072 = vmatprep.subr.mxu0 %v1071
    %v1073 = vand.u32 %v106, 4294901760
    %1074 = vmatpush1.msra.mxu0 %v1073
    %v1075 = vand.u32 %v109, 4294901760
    %1076 = vmatprep.subr.mxu0 %v1075
    %v1077 = vand.u32 %v108, 4294901760
    %1078 = vmatpush1.msra.mxu0 %v1077
    %v1079 = vand.u32 %v130, 4294901760
    %1080 = vmatprep.subr.mxu0 %v1079
    %v1081 = vand.u32 %v127, 4294901760
    %1082 = vmatpush1.msra.mxu0 %v1081
    %1083 = vmatprep.subr.mxu0 0.0
    %1084 = vmatpush1.msra.mxu0 0.0
    %v1085 = vand.u32 %v114, 4294901760
    %v1086 = vsub.f32 %v114, %v1085
    %v1087 = vand.u32 %v1086, 4294901760
    %1088 = vmatprep.mubr.f32.mxu0 %v1087
    %v1089 = vand.u32 %v42, 4294901760
    %v1090 = vsub.f32 %v42, %v1089
    %v1091 = vand.u32 %v1090, 4294901760
    %1092 = vmatmul.mubr.f32.gmra.mrb[0].mxu0 %v1091
    %v1093 = vpop.f32.mrb[0].mxu0
    %v1094 = vadd.f32 %v925, %v1093
    %v1095 = vpop.f32.mrb[0].mxu0
    %v1096 = vadd.f32 %v927, %v1095
    %v1097 = vand.u32 %v117, 4294901760
    %v1098 = vsub.f32 %v117, %v1097
    %v1099 = vand.u32 %v1098, 4294901760
    %1100 = vmatprep.mubr.f32.mxu0 %v1099
    %v1101 = vand.u32 %v44, 4294901760
    %v1102 = vsub.f32 %v44, %v1101
    %v1103 = vand.u32 %v1102, 4294901760
    %1104 = vmatmul.mubr.f32.gmra.mrb[0].mxu0 %v1103
    %v1105 = vpop.f32.mrb[0].mxu0
    %v1106 = vadd.f32 %v935, %v1105
    %v1107 = vpop.f32.mrb[0].mxu0
    %v1108 = vadd.f32 %v937, %v1107
    %v1109 = vand.u32 %v120, 4294901760
    %v1110 = vsub.f32 %v120, %v1109
    %v1111 = vand.u32 %v1110, 4294901760
    %1112 = vmatprep.mubr.f32.mxu0 %v1111
    %v1113 = vand.u32 %v46, 4294901760
    %v1114 = vsub.f32 %v46, %v1113
    %v1115 = vand.u32 %v1114, 4294901760
    %1116 = vmatmul.mubr.f32.gmra.mrb[0].mxu0 %v1115
    %v1117 = vpop.f32.mrb[0].mxu0
    %v1118 = vadd.f32 %v945, %v1117
    %v1119 = vpop.f32.mrb[0].mxu0
    %v1120 = vadd.f32 %v947, %v1119
    %v1121 = vand.u32 %v123, 4294901760
    %v1122 = vsub.f32 %v123, %v1121
    %v1123 = vand.u32 %v1122, 4294901760
    %1124 = vmatprep.mubr.f32.mxu0 %v1123
    %v1125 = vand.u32 %v48, 4294901760
    %v1126 = vsub.f32 %v48, %v1125
    %v1127 = vand.u32 %v1126, 4294901760
    %1128 = vmatmul.mubr.f32.gmra.mrb[0].mxu0 %v1127
    %v1129 = vpop.f32.mrb[0].mxu0
    %v1130 = vadd.f32 %v955, %v1129
    %v1131 = vpop.f32.mrb[0].mxu0
    %v1132 = vadd.f32 %v957, %v1131
    %1133 = vdwg.mxu0
    %v1134 = vand.u32 %v51, 4294901760
    %v1135 = vsub.f32 %v51, %v1134
    %v1136 = vand.u32 %v1135, 4294901760
    %1137 = vmatprep.subr.mxu0 %v1136
    %v1138 = vand.u32 %v50, 4294901760
    %v1139 = vsub.f32 %v50, %v1138
    %v1140 = vand.u32 %v1139, 4294901760
    %1141 = vmatpush1.msra.mxu0 %v1140
    %v1142 = vand.u32 %v53, 4294901760
    %v1143 = vsub.f32 %v53, %v1142
    %v1144 = vand.u32 %v1143, 4294901760
    %1145 = vmatprep.subr.mxu0 %v1144
    %v1146 = vand.u32 %v52, 4294901760
    %v1147 = vsub.f32 %v52, %v1146
    %v1148 = vand.u32 %v1147, 4294901760
    %1149 = vmatpush1.msra.mxu0 %v1148
    %v1150 = vand.u32 %v55, 4294901760
    %v1151 = vsub.f32 %v55, %v1150
    %v1152 = vand.u32 %v1151, 4294901760
    %1153 = vmatprep.subr.mxu0 %v1152
    %v1154 = vand.u32 %v54, 4294901760
    %v1155 = vsub.f32 %v54, %v1154
    %v1156 = vand.u32 %v1155, 4294901760
    %1157 = vmatpush1.msra.mxu0 %v1156
    %v1158 = vand.u32 %v57, 4294901760
    %v1159 = vsub.f32 %v57, %v1158
    %v1160 = vand.u32 %v1159, 4294901760
    %1161 = vmatprep.subr.mxu0 %v1160
    %v1162 = vand.u32 %v56, 4294901760
    %v1163 = vsub.f32 %v56, %v1162
    %v1164 = vand.u32 %v1163, 4294901760
    %1165 = vmatpush1.msra.mxu0 %v1164
    %v1166 = vand.u32 %v59, 4294901760
    %v1167 = vsub.f32 %v59, %v1166
    %v1168 = vand.u32 %v1167, 4294901760
    %1169 = vmatprep.subr.mxu0 %v1168
    %v1170 = vand.u32 %v58, 4294901760
    %v1171 = vsub.f32 %v58, %v1170
    %v1172 = vand.u32 %v1171, 4294901760
    %1173 = vmatpush1.msra.mxu0 %v1172
    %v1174 = vand.u32 %v61, 4294901760
    %v1175 = vsub.f32 %v61, %v1174
    %v1176 = vand.u32 %v1175, 4294901760
    %1177 = vmatprep.subr.mxu0 %v1176
    %v1178 = vand.u32 %v60, 4294901760
    %v1179 = vsub.f32 %v60, %v1178
    %v1180 = vand.u32 %v1179, 4294901760
    %1181 = vmatpush1.msra.mxu0 %v1180
    %v1182 = vand.u32 %v63, 4294901760
    %v1183 = vsub.f32 %v63, %v1182
    %v1184 = vand.u32 %v1183, 4294901760
    %1185 = vmatprep.subr.mxu0 %v1184
    %v1186 = vand.u32 %v62, 4294901760
    %v1187 = vsub.f32 %v62, %v1186
    %v1188 = vand.u32 %v1187, 4294901760
    %1189 = vmatpush1.msra.mxu0 %v1188
    %v1190 = vand.u32 %v65, 4294901760
    %v1191 = vsub.f32 %v65, %v1190
    %v1192 = vand.u32 %v1191, 4294901760
    %1193 = vmatprep.subr.mxu0 %v1192
    %v1194 = vand.u32 %v64, 4294901760
    %v1195 = vsub.f32 %v64, %v1194
    %v1196 = vand.u32 %v1195, 4294901760
    %1197 = vmatpush1.msra.mxu0 %v1196
    %v1198 = vand.u32 %v67, 4294901760
    %v1199 = vsub.f32 %v67, %v1198
    %v1200 = vand.u32 %v1199, 4294901760
    %1201 = vmatprep.subr.mxu0 %v1200
    %v1202 = vand.u32 %v66, 4294901760
    %v1203 = vsub.f32 %v66, %v1202
    %v1204 = vand.u32 %v1203, 4294901760
    %1205 = vmatpush1.msra.mxu0 %v1204
    %v1206 = vand.u32 %v69, 4294901760
    %v1207 = vsub.f32 %v69, %v1206
    %v1208 = vand.u32 %v1207, 4294901760
    %1209 = vmatprep.subr.mxu0 %v1208
    %v1210 = vand.u32 %v68, 4294901760
    %v1211 = vsub.f32 %v68, %v1210
    %v1212 = vand.u32 %v1211, 4294901760
    %1213 = vmatpush1.msra.mxu0 %v1212
    %v1214 = vand.u32 %v71, 4294901760
    %v1215 = vsub.f32 %v71, %v1214
    %v1216 = vand.u32 %v1215, 4294901760
    %1217 = vmatprep.subr.mxu0 %v1216
    %v1218 = vand.u32 %v70, 4294901760
    %v1219 = vsub.f32 %v70, %v1218
    %v1220 = vand.u32 %v1219, 4294901760
    %1221 = vmatpush1.msra.mxu0 %v1220
    %v1222 = vand.u32 %v73, 4294901760
    %v1223 = vsub.f32 %v73, %v1222
    %v1224 = vand.u32 %v1223, 4294901760
    %1225 = vmatprep.subr.mxu0 %v1224
    %v1226 = vand.u32 %v72, 4294901760
    %v1227 = vsub.f32 %v72, %v1226
    %v1228 = vand.u32 %v1227, 4294901760
    %1229 = vmatpush1.msra.mxu0 %v1228
    %v1230 = vand.u32 %v75, 4294901760
    %v1231 = vsub.f32 %v75, %v1230
    %v1232 = vand.u32 %v1231, 4294901760
    %1233 = vmatprep.subr.mxu0 %v1232
    %v1234 = vand.u32 %v74, 4294901760
    %v1235 = vsub.f32 %v74, %v1234
    %v1236 = vand.u32 %v1235, 4294901760
    %1237 = vmatpush1.msra.mxu0 %v1236
    %v1238 = vand.u32 %v77, 4294901760
    %v1239 = vsub.f32 %v77, %v1238
    %v1240 = vand.u32 %v1239, 4294901760
    %1241 = vmatprep.subr.mxu0 %v1240
    %v1242 = vand.u32 %v76, 4294901760
    %v1243 = vsub.f32 %v76, %v1242
    %v1244 = vand.u32 %v1243, 4294901760
    %1245 = vmatpush1.msra.mxu0 %v1244
    %v1246 = vand.u32 %v79, 4294901760
    %v1247 = vsub.f32 %v79, %v1246
    %v1248 = vand.u32 %v1247, 4294901760
    %1249 = vmatprep.subr.mxu0 %v1248
    %v1250 = vand.u32 %v78, 4294901760
    %v1251 = vsub.f32 %v78, %v1250
    %v1252 = vand.u32 %v1251, 4294901760
    %1253 = vmatpush1.msra.mxu0 %v1252
    %v1254 = vand.u32 %v81, 4294901760
    %v1255 = vsub.f32 %v81, %v1254
    %v1256 = vand.u32 %v1255, 4294901760
    %1257 = vmatprep.subr.mxu0 %v1256
    %v1258 = vand.u32 %v80, 4294901760
    %v1259 = vsub.f32 %v80, %v1258
    %v1260 = vand.u32 %v1259, 4294901760
    %1261 = vmatpush1.msra.mxu0 %v1260
    %v1262 = vand.u32 %v83, 4294901760
    %v1263 = vsub.f32 %v83, %v1262
    %v1264 = vand.u32 %v1263, 4294901760
    %1265 = vmatprep.subr.mxu0 %v1264
    %v1266 = vand.u32 %v82, 4294901760
    %v1267 = vsub.f32 %v82, %v1266
    %v1268 = vand.u32 %v1267, 4294901760
    %1269 = vmatpush1.msra.mxu0 %v1268
    %v1270 = vand.u32 %v85, 4294901760
    %v1271 = vsub.f32 %v85, %v1270
    %v1272 = vand.u32 %v1271, 4294901760
    %1273 = vmatprep.subr.mxu0 %v1272
    %v1274 = vand.u32 %v84, 4294901760
    %v1275 = vsub.f32 %v84, %v1274
    %v1276 = vand.u32 %v1275, 4294901760
    %1277 = vmatpush1.msra.mxu0 %v1276
    %v1278 = vand.u32 %v87, 4294901760
    %v1279 = vsub.f32 %v87, %v1278
    %v1280 = vand.u32 %v1279, 4294901760
    %1281 = vmatprep.subr.mxu0 %v1280
    %v1282 = vand.u32 %v86, 4294901760
    %v1283 = vsub.f32 %v86, %v1282
    %v1284 = vand.u32 %v1283, 4294901760
    %1285 = vmatpush1.msra.mxu0 %v1284
    %v1286 = vand.u32 %v89, 4294901760
    %v1287 = vsub.f32 %v89, %v1286
    %v1288 = vand.u32 %v1287, 4294901760
    %1289 = vmatprep.subr.mxu0 %v1288
    %v1290 = vand.u32 %v88, 4294901760
    %v1291 = vsub.f32 %v88, %v1290
    %v1292 = vand.u32 %v1291, 4294901760
    %1293 = vmatpush1.msra.mxu0 %v1292
    %v1294 = vand.u32 %v91, 4294901760
    %v1295 = vsub.f32 %v91, %v1294
    %v1296 = vand.u32 %v1295, 4294901760
    %1297 = vmatprep.subr.mxu0 %v1296
    %v1298 = vand.u32 %v90, 4294901760
    %v1299 = vsub.f32 %v90, %v1298
    %v1300 = vand.u32 %v1299, 4294901760
    %1301 = vmatpush1.msra.mxu0 %v1300
    %v1302 = vand.u32 %v93, 4294901760
    %v1303 = vsub.f32 %v93, %v1302
    %v1304 = vand.u32 %v1303, 4294901760
    %1305 = vmatprep.subr.mxu0 %v1304
    %v1306 = vand.u32 %v92, 4294901760
    %v1307 = vsub.f32 %v92, %v1306
    %v1308 = vand.u32 %v1307, 4294901760
    %1309 = vmatpush1.msra.mxu0 %v1308
    %v1310 = vand.u32 %v95, 4294901760
    %v1311 = vsub.f32 %v95, %v1310
    %v1312 = vand.u32 %v1311, 4294901760
    %1313 = vmatprep.subr.mxu0 %v1312
    %v1314 = vand.u32 %v94, 4294901760
    %v1315 = vsub.f32 %v94, %v1314
    %v1316 = vand.u32 %v1315, 4294901760
    %1317 = vmatpush1.msra.mxu0 %v1316
    %v1318 = vand.u32 %v97, 4294901760
    %v1319 = vsub.f32 %v97, %v1318
    %v1320 = vand.u32 %v1319, 4294901760
    %1321 = vmatprep.subr.mxu0 %v1320
    %v1322 = vand.u32 %v96, 4294901760
    %v1323 = vsub.f32 %v96, %v1322
    %v1324 = vand.u32 %v1323, 4294901760
    %1325 = vmatpush1.msra.mxu0 %v1324
    %v1326 = vand.u32 %v99, 4294901760
    %v1327 = vsub.f32 %v99, %v1326
    %v1328 = vand.u32 %v1327, 4294901760
    %1329 = vmatprep.subr.mxu0 %v1328
    %v1330 = vand.u32 %v98, 4294901760
    %v1331 = vsub.f32 %v98, %v1330
    %v1332 = vand.u32 %v1331, 4294901760
    %1333 = vmatpush1.msra.mxu0 %v1332
    %v1334 = vand.u32 %v101, 4294901760
    %v1335 = vsub.f32 %v101, %v1334
    %v1336 = vand.u32 %v1335, 4294901760
    %1337 = vmatprep.subr.mxu0 %v1336
    %v1338 = vand.u32 %v100, 4294901760
    %v1339 = vsub.f32 %v100, %v1338
    %v1340 = vand.u32 %v1339, 4294901760
    %1341 = vmatpush1.msra.mxu0 %v1340
    %v1342 = vand.u32 %v103, 4294901760
    %v1343 = vsub.f32 %v103, %v1342
    %v1344 = vand.u32 %v1343, 4294901760
    %1345 = vmatprep.subr.mxu0 %v1344
    %v1346 = vand.u32 %v102, 4294901760
    %v1347 = vsub.f32 %v102, %v1346
    %v1348 = vand.u32 %v1347, 4294901760
    %1349 = vmatpush1.msra.mxu0 %v1348
    %v1350 = vand.u32 %v105, 4294901760
    %v1351 = vsub.f32 %v105, %v1350
    %v1352 = vand.u32 %v1351, 4294901760
    %1353 = vmatprep.subr.mxu0 %v1352
    %v1354 = vand.u32 %v104, 4294901760
    %v1355 = vsub.f32 %v104, %v1354
    %v1356 = vand.u32 %v1355, 4294901760
    %1357 = vmatpush1.msra.mxu0 %v1356
    %v1358 = vand.u32 %v107, 4294901760
    %v1359 = vsub.f32 %v107, %v1358
    %v1360 = vand.u32 %v1359, 4294901760
    %1361 = vmatprep.subr.mxu0 %v1360
    %v1362 = vand.u32 %v106, 4294901760
    %v1363 = vsub.f32 %v106, %v1362
    %v1364 = vand.u32 %v1363, 4294901760
    %1365 = vmatpush1.msra.mxu0 %v1364
    %v1366 = vand.u32 %v109, 4294901760
    %v1367 = vsub.f32 %v109, %v1366
    %v1368 = vand.u32 %v1367, 4294901760
    %1369 = vmatprep.subr.mxu0 %v1368
    %v1370 = vand.u32 %v108, 4294901760
    %v1371 = vsub.f32 %v108, %v1370
    %v1372 = vand.u32 %v1371, 4294901760
    %1373 = vmatpush1.msra.mxu0 %v1372
    %v1374 = vand.u32 %v130, 4294901760
    %v1375 = vsub.f32 %v130, %v1374
    %v1376 = vand.u32 %v1375, 4294901760
    %1377 = vmatprep.subr.mxu0 %v1376
    %v1378 = vand.u32 %v127, 4294901760
    %v1379 = vsub.f32 %v127, %v1378
    %v1380 = vand.u32 %v1379, 4294901760
    %1381 = vmatpush1.msra.mxu0 %v1380
    %1382 = vmatprep.subr.mxu0 0.0
    %1383 = vmatpush1.msra.mxu0 0.0
    %v1384 = vand.u32 %v114, 4294901760
    %1385 = vmatprep.mubr.f32.mxu0 %v1384
    %v1386 = vand.u32 %v42, 4294901760
    %1387 = vmatmul.mubr.f32.gmra.mrb[0].mxu0 %v1386
    %v1388 = vpop.f32.mrb[0].mxu0
    %v1389 = vadd.f32 %v1094, %v1388
    %v1390 = vpop.f32.mrb[0].mxu0
    %v1391 = vadd.f32 %v1096, %v1390
    %v1392 = vand.u32 %v117, 4294901760
    %1393 = vmatprep.mubr.f32.mxu0 %v1392
    %v1394 = vand.u32 %v44, 4294901760
    %1395 = vmatmul.mubr.f32.gmra.mrb[0].mxu0 %v1394
    %v1396 = vpop.f32.mrb[0].mxu0
    %v1397 = vadd.f32 %v1106, %v1396
    %v1398 = vpop.f32.mrb[0].mxu0
    %v1399 = vadd.f32 %v1108, %v1398
    %v1400 = vand.u32 %v120, 4294901760
    %1401 = vmatprep.mubr.f32.mxu0 %v1400
    %v1402 = vand.u32 %v46, 4294901760
    %1403 = vmatmul.mubr.f32.gmra.mrb[0].mxu0 %v1402
    %v1404 = vpop.f32.mrb[0].mxu0
    %v1405 = vadd.f32 %v1118, %v1404
    %v1406 = vpop.f32.mrb[0].mxu0
    %v1407 = vadd.f32 %v1120, %v1406
    %v1408 = vand.u32 %v123, 4294901760
    %1409 = vmatprep.mubr.f32.mxu0 %v1408
    %v1410 = vand.u32 %v48, 4294901760
    %1411 = vmatmul.mubr.f32.gmra.mrb[0].mxu0 %v1410
    %v1412 = vpop.f32.mrb[0].mxu0
    %v1413 = vadd.f32 %v1130, %v1412
    %v1414 = vpop.f32.mrb[0].mxu0
    %v1415 = vadd.f32 %v1132, %v1414
    %1416 = vdwg.mxu0
    %v1417 = vand.u32 %v51, 4294901760
    %1418 = vmatprep.subr.mxu0 %v1417
    %v1419 = vand.u32 %v50, 4294901760
    %1420 = vmatpush1.msra.mxu0 %v1419
    %v1421 = vand.u32 %v53, 4294901760
    %1422 = vmatprep.subr.mxu0 %v1421
    %v1423 = vand.u32 %v52, 4294901760
    %1424 = vmatpush1.msra.mxu0 %v1423
    %v1425 = vand.u32 %v55, 4294901760
    %1426 = vmatprep.subr.mxu0 %v1425
    %v1427 = vand.u32 %v54, 4294901760
    %1428 = vmatpush1.msra.mxu0 %v1427
    %v1429 = vand.u32 %v57, 4294901760
    %1430 = vmatprep.subr.mxu0 %v1429
    %v1431 = vand.u32 %v56, 4294901760
    %1432 = vmatpush1.msra.mxu0 %v1431
    %v1433 = vand.u32 %v59, 4294901760
    %1434 = vmatprep.subr.mxu0 %v1433
    %v1435 = vand.u32 %v58, 4294901760
    %1436 = vmatpush1.msra.mxu0 %v1435
    %v1437 = vand.u32 %v61, 4294901760
    %1438 = vmatprep.subr.mxu0 %v1437
    %v1439 = vand.u32 %v60, 4294901760
    %1440 = vmatpush1.msra.mxu0 %v1439
    %v1441 = vand.u32 %v63, 4294901760
    %1442 = vmatprep.subr.mxu0 %v1441
    %v1443 = vand.u32 %v62, 4294901760
    %1444 = vmatpush1.msra.mxu0 %v1443
    %v1445 = vand.u32 %v65, 4294901760
    %1446 = vmatprep.subr.mxu0 %v1445
    %v1447 = vand.u32 %v64, 4294901760
    %1448 = vmatpush1.msra.mxu0 %v1447
    %v1449 = vand.u32 %v67, 4294901760
    %1450 = vmatprep.subr.mxu0 %v1449
    %v1451 = vand.u32 %v66, 4294901760
    %1452 = vmatpush1.msra.mxu0 %v1451
    %v1453 = vand.u32 %v69, 4294901760
    %1454 = vmatprep.subr.mxu0 %v1453
    %v1455 = vand.u32 %v68, 4294901760
    %1456 = vmatpush1.msra.mxu0 %v1455
    %v1457 = vand.u32 %v71, 4294901760
    %1458 = vmatprep.subr.mxu0 %v1457
    %v1459 = vand.u32 %v70, 4294901760
    %1460 = vmatpush1.msra.mxu0 %v1459
    %v1461 = vand.u32 %v73, 4294901760
    %1462 = vmatprep.subr.mxu0 %v1461
    %v1463 = vand.u32 %v72, 4294901760
    %1464 = vmatpush1.msra.mxu0 %v1463
    %v1465 = vand.u32 %v75, 4294901760
    %1466 = vmatprep.subr.mxu0 %v1465
    %v1467 = vand.u32 %v74, 4294901760
    %1468 = vmatpush1.msra.mxu0 %v1467
    %v1469 = vand.u32 %v77, 4294901760
    %1470 = vmatprep.subr.mxu0 %v1469
    %v1471 = vand.u32 %v76, 4294901760
    %1472 = vmatpush1.msra.mxu0 %v1471
    %v1473 = vand.u32 %v79, 4294901760
    %1474 = vmatprep.subr.mxu0 %v1473
    %v1475 = vand.u32 %v78, 4294901760
    %1476 = vmatpush1.msra.mxu0 %v1475
    %v1477 = vand.u32 %v81, 4294901760
    %1478 = vmatprep.subr.mxu0 %v1477
    %v1479 = vand.u32 %v80, 4294901760
    %1480 = vmatpush1.msra.mxu0 %v1479
    %v1481 = vand.u32 %v83, 4294901760
    %1482 = vmatprep.subr.mxu0 %v1481
    %v1483 = vand.u32 %v82, 4294901760
    %1484 = vmatpush1.msra.mxu0 %v1483
    %v1485 = vand.u32 %v85, 4294901760
    %1486 = vmatprep.subr.mxu0 %v1485
    %v1487 = vand.u32 %v84, 4294901760
    %1488 = vmatpush1.msra.mxu0 %v1487
    %v1489 = vand.u32 %v87, 4294901760
    %1490 = vmatprep.subr.mxu0 %v1489
    %v1491 = vand.u32 %v86, 4294901760
    %1492 = vmatpush1.msra.mxu0 %v1491
    %v1493 = vand.u32 %v89, 4294901760
    %1494 = vmatprep.subr.mxu0 %v1493
    %v1495 = vand.u32 %v88, 4294901760
    %1496 = vmatpush1.msra.mxu0 %v1495
    %v1497 = vand.u32 %v91, 4294901760
    %1498 = vmatprep.subr.mxu0 %v1497
    %v1499 = vand.u32 %v90, 4294901760
    %1500 = vmatpush1.msra.mxu0 %v1499
    %v1501 = vand.u32 %v93, 4294901760
    %1502 = vmatprep.subr.mxu0 %v1501
    %v1503 = vand.u32 %v92, 4294901760
    %1504 = vmatpush1.msra.mxu0 %v1503
    %v1505 = vand.u32 %v95, 4294901760
    %1506 = vmatprep.subr.mxu0 %v1505
    %v1507 = vand.u32 %v94, 4294901760
    %1508 = vmatpush1.msra.mxu0 %v1507
    %v1509 = vand.u32 %v97, 4294901760
    %1510 = vmatprep.subr.mxu0 %v1509
    %v1511 = vand.u32 %v96, 4294901760
    %1512 = vmatpush1.msra.mxu0 %v1511
    %v1513 = vand.u32 %v99, 4294901760
    %1514 = vmatprep.subr.mxu0 %v1513
    %v1515 = vand.u32 %v98, 4294901760
    %1516 = vmatpush1.msra.mxu0 %v1515
    %v1517 = vand.u32 %v101, 4294901760
    %1518 = vmatprep.subr.mxu0 %v1517
    %v1519 = vand.u32 %v100, 4294901760
    %1520 = vmatpush1.msra.mxu0 %v1519
    %v1521 = vand.u32 %v103, 4294901760
    %1522 = vmatprep.subr.mxu0 %v1521
    %v1523 = vand.u32 %v102, 4294901760
    %1524 = vmatpush1.msra.mxu0 %v1523
    %v1525 = vand.u32 %v105, 4294901760
    %1526 = vmatprep.subr.mxu0 %v1525
    %v1527 = vand.u32 %v104, 4294901760
    %1528 = vmatpush1.msra.mxu0 %v1527
    %v1529 = vand.u32 %v107, 4294901760
    %1530 = vmatprep.subr.mxu0 %v1529
    %v1531 = vand.u32 %v106, 4294901760
    %1532 = vmatpush1.msra.mxu0 %v1531
    %v1533 = vand.u32 %v109, 4294901760
    %1534 = vmatprep.subr.mxu0 %v1533
    %v1535 = vand.u32 %v108, 4294901760
    %1536 = vmatpush1.msra.mxu0 %v1535
    %v1537 = vand.u32 %v130, 4294901760
    %1538 = vmatprep.subr.mxu0 %v1537
    %v1539 = vand.u32 %v127, 4294901760
    %1540 = vmatpush1.msra.mxu0 %v1539
    %1541 = vmatprep.subr.mxu0 0.0
    %1542 = vmatpush1.msra.mxu0 0.0
    %v1543 = vand.u32 %v114, 4294901760
    %1544 = vmatprep.mubr.f32.mxu0 %v1543
    %v1545 = vand.u32 %v42, 4294901760
    %1546 = vmatmul.mubr.f32.gmra.mrb[0].mxu0 %v1545
    %v1547 = vpop.f32.mrb[0].mxu0
    %v1548 = vadd.f32 %v1389, %v1547
    %v1549 = vpop.f32.mrb[0].mxu0
    %v1550 = vadd.f32 %v1391, %v1549
    %v1551 = vand.u32 %v117, 4294901760
    %1552 = vmatprep.mubr.f32.mxu0 %v1551
    %v1553 = vand.u32 %v44, 4294901760
    %1554 = vmatmul.mubr.f32.gmra.mrb[0].mxu0 %v1553
    %v1555 = vpop.f32.mrb[0].mxu0
    %v1556 = vadd.f32 %v1397, %v1555
    %v1557 = vpop.f32.mrb[0].mxu0
    %v1558 = vadd.f32 %v1399, %v1557
    %v1559 = vand.u32 %v120, 4294901760
    %1560 = vmatprep.mubr.f32.mxu0 %v1559
    %v1561 = vand.u32 %v46, 4294901760
    %1562 = vmatmul.mubr.f32.gmra.mrb[0].mxu0 %v1561
    %v1563 = vpop.f32.mrb[0].mxu0
    %v1564 = vadd.f32 %v1405, %v1563
    %v1565 = vpop.f32.mrb[0].mxu0
    %v1566 = vadd.f32 %v1407, %v1565
    %v1567 = vand.u32 %v123, 4294901760
    %1568 = vmatprep.mubr.f32.mxu0 %v1567
    %v1569 = vand.u32 %v48, 4294901760
    %1570 = vmatmul.mubr.f32.gmra.mrb[0].mxu0 %v1569
    %v1571 = vpop.f32.mrb[0].mxu0
    %v1572 = vadd.f32 %v1413, %v1571
    %v1573 = vpop.f32.mrb[0].mxu0
    %v1574 = vadd.f32 %v1415, %v1573
    %1575 = vdwg.mxu0
    %v1576 = vld [vmem:[%s2] ss:$2 sm:$0x3]
    %v1578 = vlaneseq
    %v1579 = vshrl.u32 %v1578, 7
    %v1580 = vsub.s32 0, %v1579
    %v1581 = vrot.slane %v1576, %v1580
    %v1582 = vlaneseq
    %v1583 = vshrl.u32 %v1582, 7
    %v1584 = vsub.s32 1, %v1583
    %v1585 = vrot.slane %v1576, %v1584
    %v1588 = vmul.f32 %v1548, %v1581
    %v1589 = vmul.f32 %v1550, %v1585
    %v1590 = vmul.f32 %v1556, %v1581
    %v1591 = vmul.f32 %v1558, %v1585
    %v1592 = vmul.f32 %v1564, %v1581
    %v1593 = vmul.f32 %v1566, %v1585
    %v1594 = vmul.f32 %v1572, %v1581
    %v1595 = vmul.f32 %v1574, %v1585
    %s1596 = scalar_lea.vmem %s2, 1
    %v1597 = vld [vmem:[%s1596] ss:$2 sm:$0x3]
    %v1599 = vlaneseq
    %v1600 = vshrl.u32 %v1599, 7
    %v1601 = vsub.s32 0, %v1600
    %v1602 = vrot.slane %v1597, %v1601
    %v1603 = vlaneseq
    %v1604 = vshrl.u32 %v1603, 7
    %v1605 = vsub.s32 1, %v1604
    %v1606 = vrot.slane %v1597, %v1605
    %v1609 = vadd.f32 %v1588, %v1602
    %v1610 = vadd.f32 %v1589, %v1606
    %v1611 = vadd.f32 %v1590, %v1602
    %v1612 = vadd.f32 %v1591, %v1606
    %v1613 = vadd.f32 %v1592, %v1602
    %v1614 = vadd.f32 %v1593, %v1606
    %v1615 = vadd.f32 %v1594, %v1602
    %v1616 = vadd.f32 %v1595, %v1606
    %v1617 = vmax.f32 %v1609, 0.0
    %v1618 = vmax.f32 %v1610, 0.0
    %v1619 = vmax.f32 %v1611, 0.0
    %v1620 = vmax.f32 %v1612, 0.0
    %v1621 = vmax.f32 %v1613, 0.0
    %v1622 = vmax.f32 %v1614, 0.0
    %v1623 = vmax.f32 %v1615, 0.0
    %v1624 = vmax.f32 %v1616, 0.0
    %v1625 = vld [vmem:[%s3] sm:$0xff]
    %v1626 = vld [vmem:[%s3 + $0x8] sm:$0xff]
    %v1627 = vld [vmem:[%s3 + $0x10] sm:$0xff]
    %v1628 = vld [vmem:[%s3 + $0x18] sm:$0xff]
    %v1629 = vld [vmem:[%s3 + $0x20] sm:$0xff]
    %v1630 = vld [vmem:[%s3 + $0x28] sm:$0xff]
    %v1631 = vld [vmem:[%s3 + $0x30] sm:$0xff]
    %v1632 = vld [vmem:[%s3 + $0x38] sm:$0xff]
    %v1633 = vmul.f32 %v1617, %v1625
    %v1634 = vmul.f32 %v1618, %v1626
    %v1635 = vmul.f32 %v1619, %v1627
    %v1636 = vmul.f32 %v1620, %v1628
    %v1637 = vmul.f32 %v1621, %v1629
    %v1638 = vmul.f32 %v1622, %v1630
    %v1639 = vmul.f32 %v1623, %v1631
    %v1640 = vmul.f32 %v1624, %v1632
    %1645 = vrot.lane.b32.xlu0 %v1633, 112
    %v1646 = vpop.permute.xlu0 %1645
    %1647 = vrot.lane.b32.xlu0 %v1635, 112
    %v1648 = vpop.permute.xlu0 %1647
    %1649 = vrot.lane.b32.xlu0 %v1637, 112
    %v1650 = vpop.permute.xlu0 %1649
    %1651 = vrot.lane.b32.xlu0 %v1639, 112
    %v1652 = vpop.permute.xlu0 %1651
    %v1657 = vmax.f32 %v1633, %v1646
    %v1658 = vmax.f32 %v1635, %v1648
    %v1659 = vmax.f32 %v1637, %v1650
    %v1660 = vmax.f32 %v1639, %v1652
    %1661 = vrot.lane.b32.xlu0 %v1633, 96
    %v1662 = vpop.permute.xlu0 %1661
    %1663 = vrot.lane.b32.xlu0 %v1635, 96
    %v1664 = vpop.permute.xlu0 %1663
    %1665 = vrot.lane.b32.xlu0 %v1637, 96
    %v1666 = vpop.permute.xlu0 %1665
    %1667 = vrot.lane.b32.xlu0 %v1639, 96
    %v1668 = vpop.permute.xlu0 %1667
    %v1673 = vmax.f32 %v1657, %v1662
    %v1674 = vmax.f32 %v1658, %v1664
    %v1675 = vmax.f32 %v1659, %v1666
    %v1676 = vmax.f32 %v1660, %v1668
    %1677 = vrot.lane.b32.xlu0 %v1633, 80
    %v1678 = vpop.permute.xlu0 %1677
    %1679 = vrot.lane.b32.xlu0 %v1635, 80
    %v1680 = vpop.permute.xlu0 %1679
    %1681 = vrot.lane.b32.xlu0 %v1637, 80
    %v1682 = vpop.permute.xlu0 %1681
    %1683 = vrot.lane.b32.xlu0 %v1639, 80
    %v1684 = vpop.permute.xlu0 %1683
    %v1689 = vmax.f32 %v1673, %v1678
    %v1690 = vmax.f32 %v1674, %v1680
    %v1691 = vmax.f32 %v1675, %v1682
    %v1692 = vmax.f32 %v1676, %v1684
    %1693 = vrot.lane.b32.xlu0 %v1633, 64
    %v1694 = vpop.permute.xlu0 %1693
    %1695 = vrot.lane.b32.xlu0 %v1635, 64
    %v1696 = vpop.permute.xlu0 %1695
    %1697 = vrot.lane.b32.xlu0 %v1637, 64
    %v1698 = vpop.permute.xlu0 %1697
    %1699 = vrot.lane.b32.xlu0 %v1639, 64
    %v1700 = vpop.permute.xlu0 %1699
    %v1705 = vmax.f32 %v1689, %v1694
    %v1706 = vmax.f32 %v1690, %v1696
    %v1707 = vmax.f32 %v1691, %v1698
    %v1708 = vmax.f32 %v1692, %v1700
    %1709 = vrot.lane.b32.xlu0 %v1633, 48
    %v1710 = vpop.permute.xlu0 %1709
    %1711 = vrot.lane.b32.xlu0 %v1635, 48
    %v1712 = vpop.permute.xlu0 %1711
    %1713 = vrot.lane.b32.xlu0 %v1637, 48
    %v1714 = vpop.permute.xlu0 %1713
    %1715 = vrot.lane.b32.xlu0 %v1639, 48
    %v1716 = vpop.permute.xlu0 %1715
    %v1721 = vmax.f32 %v1705, %v1710
    %v1722 = vmax.f32 %v1706, %v1712
    %v1723 = vmax.f32 %v1707, %v1714
    %v1724 = vmax.f32 %v1708, %v1716
    %1725 = vrot.lane.b32.xlu0 %v1633, 32
    %v1726 = vpop.permute.xlu0 %1725
    %1727 = vrot.lane.b32.xlu0 %v1635, 32
    %v1728 = vpop.permute.xlu0 %1727
    %1729 = vrot.lane.b32.xlu0 %v1637, 32
    %v1730 = vpop.permute.xlu0 %1729
    %1731 = vrot.lane.b32.xlu0 %v1639, 32
    %v1732 = vpop.permute.xlu0 %1731
    %v1737 = vmax.f32 %v1721, %v1726
    %v1738 = vmax.f32 %v1722, %v1728
    %v1739 = vmax.f32 %v1723, %v1730
    %v1740 = vmax.f32 %v1724, %v1732
    %1741 = vrot.lane.b32.xlu0 %v1633, 16
    %v1742 = vpop.permute.xlu0 %1741
    %1743 = vrot.lane.b32.xlu0 %v1635, 16
    %v1744 = vpop.permute.xlu0 %1743
    %1745 = vrot.lane.b32.xlu0 %v1637, 16
    %v1746 = vpop.permute.xlu0 %1745
    %1747 = vrot.lane.b32.xlu0 %v1639, 16
    %v1748 = vpop.permute.xlu0 %1747
    %v1753 = vmax.f32 %v1737, %v1742
    %v1754 = vmax.f32 %v1738, %v1744
    %v1755 = vmax.f32 %v1739, %v1746
    %v1756 = vmax.f32 %v1740, %v1748
    %v1757 = vmax.f32 %v1753, %v1634
    %v1758 = vmax.f32 %v1754, %v1636
    %v1759 = vmax.f32 %v1755, %v1638
    %v1760 = vmax.f32 %v1756, %v1640
    %v1761 = vld [vmem:[%s4] sm:$0xff]
    %v1762 = vld [vmem:[%s4 + $0x8] sm:$0xff]
    %v1763 = vld [vmem:[%s4 + $0x10] sm:$0xff]
    %v1764 = vld [vmem:[%s4 + $0x18] sm:$0xff]
    %v1765 = vld [vmem:[%s4 + $0x20] sm:$0xff]
    %v1766 = vld [vmem:[%s4 + $0x28] sm:$0xff]
    %v1767 = vld [vmem:[%s4 + $0x30] sm:$0xff]
    %v1768 = vld [vmem:[%s4 + $0x38] sm:$0xff]
    %v1769 = vld [vmem:[%s4 + $0x40] sm:$0xff]
    %v1770 = vld [vmem:[%s4 + $0x48] sm:$0xff]
    %v1771 = vld [vmem:[%s4 + $0x50] sm:$0xff]
    %v1772 = vld [vmem:[%s4 + $0x58] sm:$0xff]
    %v1773 = vld [vmem:[%s4 + $0x60] sm:$0xff]
    %v1774 = vld [vmem:[%s4 + $0x68] sm:$0xff]
    %v1775 = vld [vmem:[%s4 + $0x70] sm:$0xff]
    %v1776 = vld [vmem:[%s4 + $0x78] sm:$0xff]
    %v1777 = vld [vmem:[%s4 + $0x80] sm:$0xff]
    %v1778 = vld [vmem:[%s4 + $0x88] sm:$0xff]
    %vm1779 = vcmask 130048
    %v1781 = vsel %vm1779, %v1634, 0
    %v1784 = vsel %vm1779, %v1636, 0
    %v1787 = vsel %vm1779, %v1638, 0
    %v1790 = vsel %vm1779, %v1640, 0
    %1792 = vmatprep.subr.mxu0 0.0
    %v1793 = vand.u32 %v1761, 4294901760
    %1794 = vmatpush1.msra.mxu0 %v1793
    %1795 = vmatprep.subr.mxu0 0.0
    %v1796 = vand.u32 %v1762, 4294901760
    %1797 = vmatpush1.msra.mxu0 %v1796
    %1798 = vmatprep.subr.mxu0 0.0
    %v1799 = vand.u32 %v1763, 4294901760
    %1800 = vmatpush1.msra.mxu0 %v1799
    %1801 = vmatprep.subr.mxu0 0.0
    %v1802 = vand.u32 %v1764, 4294901760
    %1803 = vmatpush1.msra.mxu0 %v1802
    %1804 = vmatprep.subr.mxu0 0.0
    %v1805 = vand.u32 %v1765, 4294901760
    %1806 = vmatpush1.msra.mxu0 %v1805
    %1807 = vmatprep.subr.mxu0 0.0
    %v1808 = vand.u32 %v1766, 4294901760
    %1809 = vmatpush1.msra.mxu0 %v1808
    %1810 = vmatprep.subr.mxu0 0.0
    %v1811 = vand.u32 %v1767, 4294901760
    %1812 = vmatpush1.msra.mxu0 %v1811
    %1813 = vmatprep.subr.mxu0 0.0
    %v1814 = vand.u32 %v1768, 4294901760
    %1815 = vmatpush1.msra.mxu0 %v1814
    %1816 = vmatprep.subr.mxu0 0.0
    %v1817 = vand.u32 %v1769, 4294901760
    %1818 = vmatpush1.msra.mxu0 %v1817
    %1819 = vmatprep.subr.mxu0 0.0
    %v1820 = vand.u32 %v1770, 4294901760
    %1821 = vmatpush1.msra.mxu0 %v1820
    %1822 = vmatprep.subr.mxu0 0.0
    %v1823 = vand.u32 %v1771, 4294901760
    %1824 = vmatpush1.msra.mxu0 %v1823
    %1825 = vmatprep.subr.mxu0 0.0
    %v1826 = vand.u32 %v1772, 4294901760
    %1827 = vmatpush1.msra.mxu0 %v1826
    %1828 = vmatprep.subr.mxu0 0.0
    %v1829 = vand.u32 %v1773, 4294901760
    %1830 = vmatpush1.msra.mxu0 %v1829
    %1831 = vmatprep.subr.mxu0 0.0
    %v1832 = vand.u32 %v1774, 4294901760
    %1833 = vmatpush1.msra.mxu0 %v1832
    %1834 = vmatprep.subr.mxu0 0.0
    %v1835 = vand.u32 %v1775, 4294901760
    %1836 = vmatpush1.msra.mxu0 %v1835
    %1837 = vmatprep.subr.mxu0 0.0
    %v1838 = vand.u32 %v1776, 4294901760
    %1839 = vmatpush1.msra.mxu0 %v1838
    %1840 = vmatprep.subr.mxu0 0.0
    %v1841 = vand.u32 %v1777, 4294901760
    %1842 = vmatpush1.msra.mxu0 %v1841
    %1843 = vmatprep.subr.mxu0 0.0
    %v1844 = vand.u32 %v1778, 4294901760
    %1845 = vmatpush1.msra.mxu0 %v1844
    %1846 = vmatprep.subr.mxu0 0.0
    %1847 = vmatpush1.msra.mxu0 0.0
    %1848 = vmatprep.subr.mxu0 0.0
    %1849 = vmatpush1.msra.mxu0 0.0
    %1850 = vmatprep.subr.mxu0 0.0
    %1851 = vmatpush1.msra.mxu0 0.0
    %1852 = vmatprep.subr.mxu0 0.0
    %1853 = vmatpush1.msra.mxu0 0.0
    %1854 = vmatprep.subr.mxu0 0.0
    %1855 = vmatpush1.msra.mxu0 0.0
    %1856 = vmatprep.subr.mxu0 0.0
    %1857 = vmatpush1.msra.mxu0 0.0
    %1858 = vmatprep.subr.mxu0 0.0
    %1859 = vmatpush1.msra.mxu0 0.0
    %1860 = vmatprep.subr.mxu0 0.0
    %1861 = vmatpush1.msra.mxu0 0.0
    %1862 = vmatprep.subr.mxu0 0.0
    %1863 = vmatpush1.msra.mxu0 0.0
    %1864 = vmatprep.subr.mxu0 0.0
    %1865 = vmatpush1.msra.mxu0 0.0
    %1866 = vmatprep.subr.mxu0 0.0
    %1867 = vmatpush1.msra.mxu0 0.0
    %1868 = vmatprep.subr.mxu0 0.0
    %1869 = vmatpush1.msra.mxu0 0.0
    %1870 = vmatprep.subr.mxu0 0.0
    %1871 = vmatpush1.msra.mxu0 0.0
    %1872 = vmatprep.subr.mxu0 0.0
    %1873 = vmatpush1.msra.mxu0 0.0
    %v1874 = vand.u32 %v1781, 4294901760
    %v1875 = vsub.f32 %v1781, %v1874
    %v1876 = vand.u32 %v1875, 4294901760
    %v1877 = vsub.f32 %v1875, %v1876
    %v1878 = vand.u32 %v1877, 4294901760
    %1879 = vmatprep.mubr.f32.mxu0 %v1878
    %v1880 = vand.u32 %v1633, 4294901760
    %v1881 = vsub.f32 %v1633, %v1880
    %v1882 = vand.u32 %v1881, 4294901760
    %v1883 = vsub.f32 %v1881, %v1882
    %v1884 = vand.u32 %v1883, 4294901760
    %1885 = vmatmul.mubr.f32.gmra.mrb[0].mxu0 %v1884
    %v1886 = vpop.f32.mrb[0].mxu0
    %v1887 = vadd.f32 0.0, %v1886
    %v1888 = vpop.f32.mrb[0].mxu0
    %v1889 = vand.u32 %v1784, 4294901760
    %v1890 = vsub.f32 %v1784, %v1889
    %v1891 = vand.u32 %v1890, 4294901760
    %v1892 = vsub.f32 %v1890, %v1891
    %v1893 = vand.u32 %v1892, 4294901760
    %1894 = vmatprep.mubr.f32.mxu0 %v1893
    %v1895 = vand.u32 %v1635, 4294901760
    %v1896 = vsub.f32 %v1635, %v1895
    %v1897 = vand.u32 %v1896, 4294901760
    %v1898 = vsub.f32 %v1896, %v1897
    %v1899 = vand.u32 %v1898, 4294901760
    %1900 = vmatmul.mubr.f32.gmra.mrb[0].mxu0 %v1899
    %v1901 = vpop.f32.mrb[0].mxu0
    %v1902 = vadd.f32 0.0, %v1901
    %v1903 = vpop.f32.mrb[0].mxu0
    %v1904 = vand.u32 %v1787, 4294901760
    %v1905 = vsub.f32 %v1787, %v1904
    %v1906 = vand.u32 %v1905, 4294901760
    %v1907 = vsub.f32 %v1905, %v1906
    %v1908 = vand.u32 %v1907, 4294901760
    %1909 = vmatprep.mubr.f32.mxu0 %v1908
    %v1910 = vand.u32 %v1637, 4294901760
    %v1911 = vsub.f32 %v1637, %v1910
    %v1912 = vand.u32 %v1911, 4294901760
    %v1913 = vsub.f32 %v1911, %v1912
    %v1914 = vand.u32 %v1913, 4294901760
    %1915 = vmatmul.mubr.f32.gmra.mrb[0].mxu0 %v1914
    %v1916 = vpop.f32.mrb[0].mxu0
    %v1917 = vadd.f32 0.0, %v1916
    %v1918 = vpop.f32.mrb[0].mxu0
    %v1919 = vand.u32 %v1790, 4294901760
    %v1920 = vsub.f32 %v1790, %v1919
    %v1921 = vand.u32 %v1920, 4294901760
    %v1922 = vsub.f32 %v1920, %v1921
    %v1923 = vand.u32 %v1922, 4294901760
    %1924 = vmatprep.mubr.f32.mxu0 %v1923
    %v1925 = vand.u32 %v1639, 4294901760
    %v1926 = vsub.f32 %v1639, %v1925
    %v1927 = vand.u32 %v1926, 4294901760
    %v1928 = vsub.f32 %v1926, %v1927
    %v1929 = vand.u32 %v1928, 4294901760
    %1930 = vmatmul.mubr.f32.gmra.mrb[0].mxu0 %v1929
    %v1931 = vpop.f32.mrb[0].mxu0
    %v1932 = vadd.f32 0.0, %v1931
    %v1933 = vpop.f32.mrb[0].mxu0
    %1934 = vdwg.mxu0
    %1935 = vmatprep.subr.mxu0 0.0
    %v1936 = vand.u32 %v1761, 4294901760
    %v1937 = vsub.f32 %v1761, %v1936
    %v1938 = vand.u32 %v1937, 4294901760
    %v1939 = vsub.f32 %v1937, %v1938
    %v1940 = vand.u32 %v1939, 4294901760
    %1941 = vmatpush1.msra.mxu0 %v1940
    %1942 = vmatprep.subr.mxu0 0.0
    %v1943 = vand.u32 %v1762, 4294901760
    %v1944 = vsub.f32 %v1762, %v1943
    %v1945 = vand.u32 %v1944, 4294901760
    %v1946 = vsub.f32 %v1944, %v1945
    %v1947 = vand.u32 %v1946, 4294901760
    %1948 = vmatpush1.msra.mxu0 %v1947
    %1949 = vmatprep.subr.mxu0 0.0
    %v1950 = vand.u32 %v1763, 4294901760
    %v1951 = vsub.f32 %v1763, %v1950
    %v1952 = vand.u32 %v1951, 4294901760
    %v1953 = vsub.f32 %v1951, %v1952
    %v1954 = vand.u32 %v1953, 4294901760
    %1955 = vmatpush1.msra.mxu0 %v1954
    %1956 = vmatprep.subr.mxu0 0.0
    %v1957 = vand.u32 %v1764, 4294901760
    %v1958 = vsub.f32 %v1764, %v1957
    %v1959 = vand.u32 %v1958, 4294901760
    %v1960 = vsub.f32 %v1958, %v1959
    %v1961 = vand.u32 %v1960, 4294901760
    %1962 = vmatpush1.msra.mxu0 %v1961
    %1963 = vmatprep.subr.mxu0 0.0
    %v1964 = vand.u32 %v1765, 4294901760
    %v1965 = vsub.f32 %v1765, %v1964
    %v1966 = vand.u32 %v1965, 4294901760
    %v1967 = vsub.f32 %v1965, %v1966
    %v1968 = vand.u32 %v1967, 4294901760
    %1969 = vmatpush1.msra.mxu0 %v1968
    %1970 = vmatprep.subr.mxu0 0.0
    %v1971 = vand.u32 %v1766, 4294901760
    %v1972 = vsub.f32 %v1766, %v1971
    %v1973 = vand.u32 %v1972, 4294901760
    %v1974 = vsub.f32 %v1972, %v1973
    %v1975 = vand.u32 %v1974, 4294901760
    %1976 = vmatpush1.msra.mxu0 %v1975
    %1977 = vmatprep.subr.mxu0 0.0
    %v1978 = vand.u32 %v1767, 4294901760
    %v1979 = vsub.f32 %v1767, %v1978
    %v1980 = vand.u32 %v1979, 4294901760
    %v1981 = vsub.f32 %v1979, %v1980
    %v1982 = vand.u32 %v1981, 4294901760
    %1983 = vmatpush1.msra.mxu0 %v1982
    %1984 = vmatprep.subr.mxu0 0.0
    %v1985 = vand.u32 %v1768, 4294901760
    %v1986 = vsub.f32 %v1768, %v1985
    %v1987 = vand.u32 %v1986, 4294901760
    %v1988 = vsub.f32 %v1986, %v1987
    %v1989 = vand.u32 %v1988, 4294901760
    %1990 = vmatpush1.msra.mxu0 %v1989
    %1991 = vmatprep.subr.mxu0 0.0
    %v1992 = vand.u32 %v1769, 4294901760
    %v1993 = vsub.f32 %v1769, %v1992
    %v1994 = vand.u32 %v1993, 4294901760
    %v1995 = vsub.f32 %v1993, %v1994
    %v1996 = vand.u32 %v1995, 4294901760
    %1997 = vmatpush1.msra.mxu0 %v1996
    %1998 = vmatprep.subr.mxu0 0.0
    %v1999 = vand.u32 %v1770, 4294901760
    %v2000 = vsub.f32 %v1770, %v1999
    %v2001 = vand.u32 %v2000, 4294901760
    %v2002 = vsub.f32 %v2000, %v2001
    %v2003 = vand.u32 %v2002, 4294901760
    %2004 = vmatpush1.msra.mxu0 %v2003
    %2005 = vmatprep.subr.mxu0 0.0
    %v2006 = vand.u32 %v1771, 4294901760
    %v2007 = vsub.f32 %v1771, %v2006
    %v2008 = vand.u32 %v2007, 4294901760
    %v2009 = vsub.f32 %v2007, %v2008
    %v2010 = vand.u32 %v2009, 4294901760
    %2011 = vmatpush1.msra.mxu0 %v2010
    %2012 = vmatprep.subr.mxu0 0.0
    %v2013 = vand.u32 %v1772, 4294901760
    %v2014 = vsub.f32 %v1772, %v2013
    %v2015 = vand.u32 %v2014, 4294901760
    %v2016 = vsub.f32 %v2014, %v2015
    %v2017 = vand.u32 %v2016, 4294901760
    %2018 = vmatpush1.msra.mxu0 %v2017
    %2019 = vmatprep.subr.mxu0 0.0
    %v2020 = vand.u32 %v1773, 4294901760
    %v2021 = vsub.f32 %v1773, %v2020
    %v2022 = vand.u32 %v2021, 4294901760
    %v2023 = vsub.f32 %v2021, %v2022
    %v2024 = vand.u32 %v2023, 4294901760
    %2025 = vmatpush1.msra.mxu0 %v2024
    %2026 = vmatprep.subr.mxu0 0.0
    %v2027 = vand.u32 %v1774, 4294901760
    %v2028 = vsub.f32 %v1774, %v2027
    %v2029 = vand.u32 %v2028, 4294901760
    %v2030 = vsub.f32 %v2028, %v2029
    %v2031 = vand.u32 %v2030, 4294901760
    %2032 = vmatpush1.msra.mxu0 %v2031
    %2033 = vmatprep.subr.mxu0 0.0
    %v2034 = vand.u32 %v1775, 4294901760
    %v2035 = vsub.f32 %v1775, %v2034
    %v2036 = vand.u32 %v2035, 4294901760
    %v2037 = vsub.f32 %v2035, %v2036
    %v2038 = vand.u32 %v2037, 4294901760
    %2039 = vmatpush1.msra.mxu0 %v2038
    %2040 = vmatprep.subr.mxu0 0.0
    %v2041 = vand.u32 %v1776, 4294901760
    %v2042 = vsub.f32 %v1776, %v2041
    %v2043 = vand.u32 %v2042, 4294901760
    %v2044 = vsub.f32 %v2042, %v2043
    %v2045 = vand.u32 %v2044, 4294901760
    %2046 = vmatpush1.msra.mxu0 %v2045
    %2047 = vmatprep.subr.mxu0 0.0
    %v2048 = vand.u32 %v1777, 4294901760
    %v2049 = vsub.f32 %v1777, %v2048
    %v2050 = vand.u32 %v2049, 4294901760
    %v2051 = vsub.f32 %v2049, %v2050
    %v2052 = vand.u32 %v2051, 4294901760
    %2053 = vmatpush1.msra.mxu0 %v2052
    %2054 = vmatprep.subr.mxu0 0.0
    %v2055 = vand.u32 %v1778, 4294901760
    %v2056 = vsub.f32 %v1778, %v2055
    %v2057 = vand.u32 %v2056, 4294901760
    %v2058 = vsub.f32 %v2056, %v2057
    %v2059 = vand.u32 %v2058, 4294901760
    %2060 = vmatpush1.msra.mxu0 %v2059
    %2061 = vmatprep.subr.mxu0 0.0
    %2062 = vmatpush1.msra.mxu0 0.0
    %2063 = vmatprep.subr.mxu0 0.0
    %2064 = vmatpush1.msra.mxu0 0.0
    %2065 = vmatprep.subr.mxu0 0.0
    %2066 = vmatpush1.msra.mxu0 0.0
    %2067 = vmatprep.subr.mxu0 0.0
    %2068 = vmatpush1.msra.mxu0 0.0
    %2069 = vmatprep.subr.mxu0 0.0
    %2070 = vmatpush1.msra.mxu0 0.0
    %2071 = vmatprep.subr.mxu0 0.0
    %2072 = vmatpush1.msra.mxu0 0.0
    %2073 = vmatprep.subr.mxu0 0.0
    %2074 = vmatpush1.msra.mxu0 0.0
    %2075 = vmatprep.subr.mxu0 0.0
    %2076 = vmatpush1.msra.mxu0 0.0
    %2077 = vmatprep.subr.mxu0 0.0
    %2078 = vmatpush1.msra.mxu0 0.0
    %2079 = vmatprep.subr.mxu0 0.0
    %2080 = vmatpush1.msra.mxu0 0.0
    %2081 = vmatprep.subr.mxu0 0.0
    %2082 = vmatpush1.msra.mxu0 0.0
    %2083 = vmatprep.subr.mxu0 0.0
    %2084 = vmatpush1.msra.mxu0 0.0
    %2085 = vmatprep.subr.mxu0 0.0
    %2086 = vmatpush1.msra.mxu0 0.0
    %2087 = vmatprep.subr.mxu0 0.0
    %2088 = vmatpush1.msra.mxu0 0.0
    %v2089 = vand.u32 %v1781, 4294901760
    %2090 = vmatprep.mubr.f32.mxu0 %v2089
    %v2091 = vand.u32 %v1633, 4294901760
    %2092 = vmatmul.mubr.f32.gmra.mrb[0].mxu0 %v2091
    %v2093 = vpop.f32.mrb[0].mxu0
    %v2094 = vadd.f32 %v1887, %v2093
    %v2095 = vpop.f32.mrb[0].mxu0
    %v2096 = vand.u32 %v1784, 4294901760
    %2097 = vmatprep.mubr.f32.mxu0 %v2096
    %v2098 = vand.u32 %v1635, 4294901760
    %2099 = vmatmul.mubr.f32.gmra.mrb[0].mxu0 %v2098
    %v2100 = vpop.f32.mrb[0].mxu0
    %v2101 = vadd.f32 %v1902, %v2100
    %v2102 = vpop.f32.mrb[0].mxu0
    %v2103 = vand.u32 %v1787, 4294901760
    %2104 = vmatprep.mubr.f32.mxu0 %v2103
    %v2105 = vand.u32 %v1637, 4294901760
    %2106 = vmatmul.mubr.f32.gmra.mrb[0].mxu0 %v2105
    %v2107 = vpop.f32.mrb[0].mxu0
    %v2108 = vadd.f32 %v1917, %v2107
    %v2109 = vpop.f32.mrb[0].mxu0
    %v2110 = vand.u32 %v1790, 4294901760
    %2111 = vmatprep.mubr.f32.mxu0 %v2110
    %v2112 = vand.u32 %v1639, 4294901760
    %2113 = vmatmul.mubr.f32.gmra.mrb[0].mxu0 %v2112
    %v2114 = vpop.f32.mrb[0].mxu0
    %v2115 = vadd.f32 %v1932, %v2114
    %v2116 = vpop.f32.mrb[0].mxu0
    %2117 = vdwg.mxu0
    %2118 = vmatprep.subr.mxu0 0.0
    %v2119 = vand.u32 %v1761, 4294901760
    %v2120 = vsub.f32 %v1761, %v2119
    %2121 = vmatpush1.msra.mxu0 %v2120
    %2122 = vmatprep.subr.mxu0 0.0
    %v2123 = vand.u32 %v1762, 4294901760
    %v2124 = vsub.f32 %v1762, %v2123
    %2125 = vmatpush1.msra.mxu0 %v2124
    %2126 = vmatprep.subr.mxu0 0.0
    %v2127 = vand.u32 %v1763, 4294901760
    %v2128 = vsub.f32 %v1763, %v2127
    %2129 = vmatpush1.msra.mxu0 %v2128
    %2130 = vmatprep.subr.mxu0 0.0
    %v2131 = vand.u32 %v1764, 4294901760
    %v2132 = vsub.f32 %v1764, %v2131
    %2133 = vmatpush1.msra.mxu0 %v2132
    %2134 = vmatprep.subr.mxu0 0.0
    %v2135 = vand.u32 %v1765, 4294901760
    %v2136 = vsub.f32 %v1765, %v2135
    %2137 = vmatpush1.msra.mxu0 %v2136
    %2138 = vmatprep.subr.mxu0 0.0
    %v2139 = vand.u32 %v1766, 4294901760
    %v2140 = vsub.f32 %v1766, %v2139
    %2141 = vmatpush1.msra.mxu0 %v2140
    %2142 = vmatprep.subr.mxu0 0.0
    %v2143 = vand.u32 %v1767, 4294901760
    %v2144 = vsub.f32 %v1767, %v2143
    %2145 = vmatpush1.msra.mxu0 %v2144
    %2146 = vmatprep.subr.mxu0 0.0
    %v2147 = vand.u32 %v1768, 4294901760
    %v2148 = vsub.f32 %v1768, %v2147
    %2149 = vmatpush1.msra.mxu0 %v2148
    %2150 = vmatprep.subr.mxu0 0.0
    %v2151 = vand.u32 %v1769, 4294901760
    %v2152 = vsub.f32 %v1769, %v2151
    %2153 = vmatpush1.msra.mxu0 %v2152
    %2154 = vmatprep.subr.mxu0 0.0
    %v2155 = vand.u32 %v1770, 4294901760
    %v2156 = vsub.f32 %v1770, %v2155
    %2157 = vmatpush1.msra.mxu0 %v2156
    %2158 = vmatprep.subr.mxu0 0.0
    %v2159 = vand.u32 %v1771, 4294901760
    %v2160 = vsub.f32 %v1771, %v2159
    %2161 = vmatpush1.msra.mxu0 %v2160
    %2162 = vmatprep.subr.mxu0 0.0
    %v2163 = vand.u32 %v1772, 4294901760
    %v2164 = vsub.f32 %v1772, %v2163
    %2165 = vmatpush1.msra.mxu0 %v2164
    %2166 = vmatprep.subr.mxu0 0.0
    %v2167 = vand.u32 %v1773, 4294901760
    %v2168 = vsub.f32 %v1773, %v2167
    %2169 = vmatpush1.msra.mxu0 %v2168
    %2170 = vmatprep.subr.mxu0 0.0
    %v2171 = vand.u32 %v1774, 4294901760
    %v2172 = vsub.f32 %v1774, %v2171
    %2173 = vmatpush1.msra.mxu0 %v2172
    %2174 = vmatprep.subr.mxu0 0.0
    %v2175 = vand.u32 %v1775, 4294901760
    %v2176 = vsub.f32 %v1775, %v2175
    %2177 = vmatpush1.msra.mxu0 %v2176
    %2178 = vmatprep.subr.mxu0 0.0
    %v2179 = vand.u32 %v1776, 4294901760
    %v2180 = vsub.f32 %v1776, %v2179
    %2181 = vmatpush1.msra.mxu0 %v2180
    %2182 = vmatprep.subr.mxu0 0.0
    %v2183 = vand.u32 %v1777, 4294901760
    %v2184 = vsub.f32 %v1777, %v2183
    %2185 = vmatpush1.msra.mxu0 %v2184
    %2186 = vmatprep.subr.mxu0 0.0
    %v2187 = vand.u32 %v1778, 4294901760
    %v2188 = vsub.f32 %v1778, %v2187
    %2189 = vmatpush1.msra.mxu0 %v2188
    %2190 = vmatprep.subr.mxu0 0.0
    %2191 = vmatpush1.msra.mxu0 0.0
    %2192 = vmatprep.subr.mxu0 0.0
    %2193 = vmatpush1.msra.mxu0 0.0
    %2194 = vmatprep.subr.mxu0 0.0
    %2195 = vmatpush1.msra.mxu0 0.0
    %2196 = vmatprep.subr.mxu0 0.0
    %2197 = vmatpush1.msra.mxu0 0.0
    %2198 = vmatprep.subr.mxu0 0.0
    %2199 = vmatpush1.msra.mxu0 0.0
    %2200 = vmatprep.subr.mxu0 0.0
    %2201 = vmatpush1.msra.mxu0 0.0
    %2202 = vmatprep.subr.mxu0 0.0
    %2203 = vmatpush1.msra.mxu0 0.0
    %2204 = vmatprep.subr.mxu0 0.0
    %2205 = vmatpush1.msra.mxu0 0.0
    %2206 = vmatprep.subr.mxu0 0.0
    %2207 = vmatpush1.msra.mxu0 0.0
    %2208 = vmatprep.subr.mxu0 0.0
    %2209 = vmatpush1.msra.mxu0 0.0
    %2210 = vmatprep.subr.mxu0 0.0
    %2211 = vmatpush1.msra.mxu0 0.0
    %2212 = vmatprep.subr.mxu0 0.0
    %2213 = vmatpush1.msra.mxu0 0.0
    %2214 = vmatprep.subr.mxu0 0.0
    %2215 = vmatpush1.msra.mxu0 0.0
    %2216 = vmatprep.subr.mxu0 0.0
    %2217 = vmatpush1.msra.mxu0 0.0
    %v2218 = vand.u32 %v1781, 4294901760
    %v2219 = vsub.f32 %v1781, %v2218
    %2220 = vmatprep.mubr.f32.mxu0 %v2219
    %v2221 = vand.u32 %v1633, 4294901760
    %v2222 = vsub.f32 %v1633, %v2221
    %2223 = vmatmul.mubr.f32.gmra.mrb[0].mxu0 %v2222
    %v2224 = vpop.f32.mrb[0].mxu0
    %v2225 = vadd.f32 %v2094, %v2224
    %v2226 = vpop.f32.mrb[0].mxu0
    %v2227 = vand.u32 %v1784, 4294901760
    %v2228 = vsub.f32 %v1784, %v2227
    %2229 = vmatprep.mubr.f32.mxu0 %v2228
    %v2230 = vand.u32 %v1635, 4294901760
    %v2231 = vsub.f32 %v1635, %v2230
    %2232 = vmatmul.mubr.f32.gmra.mrb[0].mxu0 %v2231
    %v2233 = vpop.f32.mrb[0].mxu0
    %v2234 = vadd.f32 %v2101, %v2233
    %v2235 = vpop.f32.mrb[0].mxu0
    %v2236 = vand.u32 %v1787, 4294901760
    %v2237 = vsub.f32 %v1787, %v2236
    %2238 = vmatprep.mubr.f32.mxu0 %v2237
    %v2239 = vand.u32 %v1637, 4294901760
    %v2240 = vsub.f32 %v1637, %v2239
    %2241 = vmatmul.mubr.f32.gmra.mrb[0].mxu0 %v2240
    %v2242 = vpop.f32.mrb[0].mxu0
    %v2243 = vadd.f32 %v2108, %v2242
    %v2244 = vpop.f32.mrb[0].mxu0
    %v2245 = vand.u32 %v1790, 4294901760
    %v2246 = vsub.f32 %v1790, %v2245
    %2247 = vmatprep.mubr.f32.mxu0 %v2246
    %v2248 = vand.u32 %v1639, 4294901760
    %v2249 = vsub.f32 %v1639, %v2248
    %2250 = vmatmul.mubr.f32.gmra.mrb[0].mxu0 %v2249
    %v2251 = vpop.f32.mrb[0].mxu0
    %v2252 = vadd.f32 %v2115, %v2251
    %v2253 = vpop.f32.mrb[0].mxu0
    %2254 = vdwg.mxu0
    %2255 = vmatprep.subr.mxu0 0.0
    %v2256 = vand.u32 %v1761, 4294901760
    %2257 = vmatpush1.msra.mxu0 %v2256
    %2258 = vmatprep.subr.mxu0 0.0
    %v2259 = vand.u32 %v1762, 4294901760
    %2260 = vmatpush1.msra.mxu0 %v2259
    %2261 = vmatprep.subr.mxu0 0.0
    %v2262 = vand.u32 %v1763, 4294901760
    %2263 = vmatpush1.msra.mxu0 %v2262
    %2264 = vmatprep.subr.mxu0 0.0
    %v2265 = vand.u32 %v1764, 4294901760
    %2266 = vmatpush1.msra.mxu0 %v2265
    %2267 = vmatprep.subr.mxu0 0.0
    %v2268 = vand.u32 %v1765, 4294901760
    %2269 = vmatpush1.msra.mxu0 %v2268
    %2270 = vmatprep.subr.mxu0 0.0
    %v2271 = vand.u32 %v1766, 4294901760
    %2272 = vmatpush1.msra.mxu0 %v2271
    %2273 = vmatprep.subr.mxu0 0.0
    %v2274 = vand.u32 %v1767, 4294901760
    %2275 = vmatpush1.msra.mxu0 %v2274
    %2276 = vmatprep.subr.mxu0 0.0
    %v2277 = vand.u32 %v1768, 4294901760
    %2278 = vmatpush1.msra.mxu0 %v2277
    %2279 = vmatprep.subr.mxu0 0.0
    %v2280 = vand.u32 %v1769, 4294901760
    %2281 = vmatpush1.msra.mxu0 %v2280
    %2282 = vmatprep.subr.mxu0 0.0
    %v2283 = vand.u32 %v1770, 4294901760
    %2284 = vmatpush1.msra.mxu0 %v2283
    %2285 = vmatprep.subr.mxu0 0.0
    %v2286 = vand.u32 %v1771, 4294901760
    %2287 = vmatpush1.msra.mxu0 %v2286
    %2288 = vmatprep.subr.mxu0 0.0
    %v2289 = vand.u32 %v1772, 4294901760
    %2290 = vmatpush1.msra.mxu0 %v2289
    %2291 = vmatprep.subr.mxu0 0.0
    %v2292 = vand.u32 %v1773, 4294901760
    %2293 = vmatpush1.msra.mxu0 %v2292
    %2294 = vmatprep.subr.mxu0 0.0
    %v2295 = vand.u32 %v1774, 4294901760
    %2296 = vmatpush1.msra.mxu0 %v2295
    %2297 = vmatprep.subr.mxu0 0.0
    %v2298 = vand.u32 %v1775, 4294901760
    %2299 = vmatpush1.msra.mxu0 %v2298
    %2300 = vmatprep.subr.mxu0 0.0
    %v2301 = vand.u32 %v1776, 4294901760
    %2302 = vmatpush1.msra.mxu0 %v2301
    %2303 = vmatprep.subr.mxu0 0.0
    %v2304 = vand.u32 %v1777, 4294901760
    %2305 = vmatpush1.msra.mxu0 %v2304
    %2306 = vmatprep.subr.mxu0 0.0
    %v2307 = vand.u32 %v1778, 4294901760
    %2308 = vmatpush1.msra.mxu0 %v2307
    %2309 = vmatprep.subr.mxu0 0.0
    %2310 = vmatpush1.msra.mxu0 0.0
    %2311 = vmatprep.subr.mxu0 0.0
    %2312 = vmatpush1.msra.mxu0 0.0
    %2313 = vmatprep.subr.mxu0 0.0
    %2314 = vmatpush1.msra.mxu0 0.0
    %2315 = vmatprep.subr.mxu0 0.0
    %2316 = vmatpush1.msra.mxu0 0.0
    %2317 = vmatprep.subr.mxu0 0.0
    %2318 = vmatpush1.msra.mxu0 0.0
    %2319 = vmatprep.subr.mxu0 0.0
    %2320 = vmatpush1.msra.mxu0 0.0
    %2321 = vmatprep.subr.mxu0 0.0
    %2322 = vmatpush1.msra.mxu0 0.0
    %2323 = vmatprep.subr.mxu0 0.0
    %2324 = vmatpush1.msra.mxu0 0.0
    %2325 = vmatprep.subr.mxu0 0.0
    %2326 = vmatpush1.msra.mxu0 0.0
    %2327 = vmatprep.subr.mxu0 0.0
    %2328 = vmatpush1.msra.mxu0 0.0
    %2329 = vmatprep.subr.mxu0 0.0
    %2330 = vmatpush1.msra.mxu0 0.0
    %2331 = vmatprep.subr.mxu0 0.0
    %2332 = vmatpush1.msra.mxu0 0.0
    %2333 = vmatprep.subr.mxu0 0.0
    %2334 = vmatpush1.msra.mxu0 0.0
    %2335 = vmatprep.subr.mxu0 0.0
    %2336 = vmatpush1.msra.mxu0 0.0
    %v2337 = vand.u32 %v1781, 4294901760
    %v2338 = vsub.f32 %v1781, %v2337
    %v2339 = vand.u32 %v2338, 4294901760
    %2340 = vmatprep.mubr.f32.mxu0 %v2339
    %v2341 = vand.u32 %v1633, 4294901760
    %v2342 = vsub.f32 %v1633, %v2341
    %v2343 = vand.u32 %v2342, 4294901760
    %2344 = vmatmul.mubr.f32.gmra.mrb[0].mxu0 %v2343
    %v2345 = vpop.f32.mrb[0].mxu0
    %v2346 = vadd.f32 %v2225, %v2345
    %v2347 = vpop.f32.mrb[0].mxu0
    %v2348 = vand.u32 %v1784, 4294901760
    %v2349 = vsub.f32 %v1784, %v2348
    %v2350 = vand.u32 %v2349, 4294901760
    %2351 = vmatprep.mubr.f32.mxu0 %v2350
    %v2352 = vand.u32 %v1635, 4294901760
    %v2353 = vsub.f32 %v1635, %v2352
    %v2354 = vand.u32 %v2353, 4294901760
    %2355 = vmatmul.mubr.f32.gmra.mrb[0].mxu0 %v2354
    %v2356 = vpop.f32.mrb[0].mxu0
    %v2357 = vadd.f32 %v2234, %v2356
    %v2358 = vpop.f32.mrb[0].mxu0
    %v2359 = vand.u32 %v1787, 4294901760
    %v2360 = vsub.f32 %v1787, %v2359
    %v2361 = vand.u32 %v2360, 4294901760
    %2362 = vmatprep.mubr.f32.mxu0 %v2361
    %v2363 = vand.u32 %v1637, 4294901760
    %v2364 = vsub.f32 %v1637, %v2363
    %v2365 = vand.u32 %v2364, 4294901760
    %2366 = vmatmul.mubr.f32.gmra.mrb[0].mxu0 %v2365
    %v2367 = vpop.f32.mrb[0].mxu0
    %v2368 = vadd.f32 %v2243, %v2367
    %v2369 = vpop.f32.mrb[0].mxu0
    %v2370 = vand.u32 %v1790, 4294901760
    %v2371 = vsub.f32 %v1790, %v2370
    %v2372 = vand.u32 %v2371, 4294901760
    %2373 = vmatprep.mubr.f32.mxu0 %v2372
    %v2374 = vand.u32 %v1639, 4294901760
    %v2375 = vsub.f32 %v1639, %v2374
    %v2376 = vand.u32 %v2375, 4294901760
    %2377 = vmatmul.mubr.f32.gmra.mrb[0].mxu0 %v2376
    %v2378 = vpop.f32.mrb[0].mxu0
    %v2379 = vadd.f32 %v2252, %v2378
    %v2380 = vpop.f32.mrb[0].mxu0
    %2381 = vdwg.mxu0
    %2382 = vmatprep.subr.mxu0 0.0
    %v2383 = vand.u32 %v1761, 4294901760
    %v2384 = vsub.f32 %v1761, %v2383
    %v2385 = vand.u32 %v2384, 4294901760
    %2386 = vmatpush1.msra.mxu0 %v2385
    %2387 = vmatprep.subr.mxu0 0.0
    %v2388 = vand.u32 %v1762, 4294901760
    %v2389 = vsub.f32 %v1762, %v2388
    %v2390 = vand.u32 %v2389, 4294901760
    %2391 = vmatpush1.msra.mxu0 %v2390
    %2392 = vmatprep.subr.mxu0 0.0
    %v2393 = vand.u32 %v1763, 4294901760
    %v2394 = vsub.f32 %v1763, %v2393
    %v2395 = vand.u32 %v2394, 4294901760
    %2396 = vmatpush1.msra.mxu0 %v2395
    %2397 = vmatprep.subr.mxu0 0.0
    %v2398 = vand.u32 %v1764, 4294901760
    %v2399 = vsub.f32 %v1764, %v2398
    %v2400 = vand.u32 %v2399, 4294901760
    %2401 = vmatpush1.msra.mxu0 %v2400
    %2402 = vmatprep.subr.mxu0 0.0
    %v2403 = vand.u32 %v1765, 4294901760
    %v2404 = vsub.f32 %v1765, %v2403
    %v2405 = vand.u32 %v2404, 4294901760
    %2406 = vmatpush1.msra.mxu0 %v2405
    %2407 = vmatprep.subr.mxu0 0.0
    %v2408 = vand.u32 %v1766, 4294901760
    %v2409 = vsub.f32 %v1766, %v2408
    %v2410 = vand.u32 %v2409, 4294901760
    %2411 = vmatpush1.msra.mxu0 %v2410
    %2412 = vmatprep.subr.mxu0 0.0
    %v2413 = vand.u32 %v1767, 4294901760
    %v2414 = vsub.f32 %v1767, %v2413
    %v2415 = vand.u32 %v2414, 4294901760
    %2416 = vmatpush1.msra.mxu0 %v2415
    %2417 = vmatprep.subr.mxu0 0.0
    %v2418 = vand.u32 %v1768, 4294901760
    %v2419 = vsub.f32 %v1768, %v2418
    %v2420 = vand.u32 %v2419, 4294901760
    %2421 = vmatpush1.msra.mxu0 %v2420
    %2422 = vmatprep.subr.mxu0 0.0
    %v2423 = vand.u32 %v1769, 4294901760
    %v2424 = vsub.f32 %v1769, %v2423
    %v2425 = vand.u32 %v2424, 4294901760
    %2426 = vmatpush1.msra.mxu0 %v2425
    %2427 = vmatprep.subr.mxu0 0.0
    %v2428 = vand.u32 %v1770, 4294901760
    %v2429 = vsub.f32 %v1770, %v2428
    %v2430 = vand.u32 %v2429, 4294901760
    %2431 = vmatpush1.msra.mxu0 %v2430
    %2432 = vmatprep.subr.mxu0 0.0
    %v2433 = vand.u32 %v1771, 4294901760
    %v2434 = vsub.f32 %v1771, %v2433
    %v2435 = vand.u32 %v2434, 4294901760
    %2436 = vmatpush1.msra.mxu0 %v2435
    %2437 = vmatprep.subr.mxu0 0.0
    %v2438 = vand.u32 %v1772, 4294901760
    %v2439 = vsub.f32 %v1772, %v2438
    %v2440 = vand.u32 %v2439, 4294901760
    %2441 = vmatpush1.msra.mxu0 %v2440
    %2442 = vmatprep.subr.mxu0 0.0
    %v2443 = vand.u32 %v1773, 4294901760
    %v2444 = vsub.f32 %v1773, %v2443
    %v2445 = vand.u32 %v2444, 4294901760
    %2446 = vmatpush1.msra.mxu0 %v2445
    %2447 = vmatprep.subr.mxu0 0.0
    %v2448 = vand.u32 %v1774, 4294901760
    %v2449 = vsub.f32 %v1774, %v2448
    %v2450 = vand.u32 %v2449, 4294901760
    %2451 = vmatpush1.msra.mxu0 %v2450
    %2452 = vmatprep.subr.mxu0 0.0
    %v2453 = vand.u32 %v1775, 4294901760
    %v2454 = vsub.f32 %v1775, %v2453
    %v2455 = vand.u32 %v2454, 4294901760
    %2456 = vmatpush1.msra.mxu0 %v2455
    %2457 = vmatprep.subr.mxu0 0.0
    %v2458 = vand.u32 %v1776, 4294901760
    %v2459 = vsub.f32 %v1776, %v2458
    %v2460 = vand.u32 %v2459, 4294901760
    %2461 = vmatpush1.msra.mxu0 %v2460
    %2462 = vmatprep.subr.mxu0 0.0
    %v2463 = vand.u32 %v1777, 4294901760
    %v2464 = vsub.f32 %v1777, %v2463
    %v2465 = vand.u32 %v2464, 4294901760
    %2466 = vmatpush1.msra.mxu0 %v2465
    %2467 = vmatprep.subr.mxu0 0.0
    %v2468 = vand.u32 %v1778, 4294901760
    %v2469 = vsub.f32 %v1778, %v2468
    %v2470 = vand.u32 %v2469, 4294901760
    %2471 = vmatpush1.msra.mxu0 %v2470
    %2472 = vmatprep.subr.mxu0 0.0
    %2473 = vmatpush1.msra.mxu0 0.0
    %2474 = vmatprep.subr.mxu0 0.0
    %2475 = vmatpush1.msra.mxu0 0.0
    %2476 = vmatprep.subr.mxu0 0.0
    %2477 = vmatpush1.msra.mxu0 0.0
    %2478 = vmatprep.subr.mxu0 0.0
    %2479 = vmatpush1.msra.mxu0 0.0
    %2480 = vmatprep.subr.mxu0 0.0
    %2481 = vmatpush1.msra.mxu0 0.0
    %2482 = vmatprep.subr.mxu0 0.0
    %2483 = vmatpush1.msra.mxu0 0.0
    %2484 = vmatprep.subr.mxu0 0.0
    %2485 = vmatpush1.msra.mxu0 0.0
    %2486 = vmatprep.subr.mxu0 0.0
    %2487 = vmatpush1.msra.mxu0 0.0
    %2488 = vmatprep.subr.mxu0 0.0
    %2489 = vmatpush1.msra.mxu0 0.0
    %2490 = vmatprep.subr.mxu0 0.0
    %2491 = vmatpush1.msra.mxu0 0.0
    %2492 = vmatprep.subr.mxu0 0.0
    %2493 = vmatpush1.msra.mxu0 0.0
    %2494 = vmatprep.subr.mxu0 0.0
    %2495 = vmatpush1.msra.mxu0 0.0
    %2496 = vmatprep.subr.mxu0 0.0
    %2497 = vmatpush1.msra.mxu0 0.0
    %2498 = vmatprep.subr.mxu0 0.0
    %2499 = vmatpush1.msra.mxu0 0.0
    %v2500 = vand.u32 %v1781, 4294901760
    %2501 = vmatprep.mubr.f32.mxu0 %v2500
    %v2502 = vand.u32 %v1633, 4294901760
    %2503 = vmatmul.mubr.f32.gmra.mrb[0].mxu0 %v2502
    %v2504 = vpop.f32.mrb[0].mxu0
    %v2505 = vadd.f32 %v2346, %v2504
    %v2506 = vpop.f32.mrb[0].mxu0
    %v2507 = vand.u32 %v1784, 4294901760
    %2508 = vmatprep.mubr.f32.mxu0 %v2507
    %v2509 = vand.u32 %v1635, 4294901760
    %2510 = vmatmul.mubr.f32.gmra.mrb[0].mxu0 %v2509
    %v2511 = vpop.f32.mrb[0].mxu0
    %v2512 = vadd.f32 %v2357, %v2511
    %v2513 = vpop.f32.mrb[0].mxu0
    %v2514 = vand.u32 %v1787, 4294901760
    %2515 = vmatprep.mubr.f32.mxu0 %v2514
    %v2516 = vand.u32 %v1637, 4294901760
    %2517 = vmatmul.mubr.f32.gmra.mrb[0].mxu0 %v2516
    %v2518 = vpop.f32.mrb[0].mxu0
    %v2519 = vadd.f32 %v2368, %v2518
    %v2520 = vpop.f32.mrb[0].mxu0
    %v2521 = vand.u32 %v1790, 4294901760
    %2522 = vmatprep.mubr.f32.mxu0 %v2521
    %v2523 = vand.u32 %v1639, 4294901760
    %2524 = vmatmul.mubr.f32.gmra.mrb[0].mxu0 %v2523
    %v2525 = vpop.f32.mrb[0].mxu0
    %v2526 = vadd.f32 %v2379, %v2525
    %v2527 = vpop.f32.mrb[0].mxu0
    %2528 = vdwg.mxu0
    %2529 = vmatprep.subr.mxu0 0.0
    %v2530 = vand.u32 %v1761, 4294901760
    %2531 = vmatpush1.msra.mxu0 %v2530
    %2532 = vmatprep.subr.mxu0 0.0
    %v2533 = vand.u32 %v1762, 4294901760
    %2534 = vmatpush1.msra.mxu0 %v2533
    %2535 = vmatprep.subr.mxu0 0.0
    %v2536 = vand.u32 %v1763, 4294901760
    %2537 = vmatpush1.msra.mxu0 %v2536
    %2538 = vmatprep.subr.mxu0 0.0
    %v2539 = vand.u32 %v1764, 4294901760
    %2540 = vmatpush1.msra.mxu0 %v2539
    %2541 = vmatprep.subr.mxu0 0.0
    %v2542 = vand.u32 %v1765, 4294901760
    %2543 = vmatpush1.msra.mxu0 %v2542
    %2544 = vmatprep.subr.mxu0 0.0
    %v2545 = vand.u32 %v1766, 4294901760
    %2546 = vmatpush1.msra.mxu0 %v2545
    %2547 = vmatprep.subr.mxu0 0.0
    %v2548 = vand.u32 %v1767, 4294901760
    %2549 = vmatpush1.msra.mxu0 %v2548
    %2550 = vmatprep.subr.mxu0 0.0
    %v2551 = vand.u32 %v1768, 4294901760
    %2552 = vmatpush1.msra.mxu0 %v2551
    %2553 = vmatprep.subr.mxu0 0.0
    %v2554 = vand.u32 %v1769, 4294901760
    %2555 = vmatpush1.msra.mxu0 %v2554
    %2556 = vmatprep.subr.mxu0 0.0
    %v2557 = vand.u32 %v1770, 4294901760
    %2558 = vmatpush1.msra.mxu0 %v2557
    %2559 = vmatprep.subr.mxu0 0.0
    %v2560 = vand.u32 %v1771, 4294901760
    %2561 = vmatpush1.msra.mxu0 %v2560
    %2562 = vmatprep.subr.mxu0 0.0
    %v2563 = vand.u32 %v1772, 4294901760
    %2564 = vmatpush1.msra.mxu0 %v2563
    %2565 = vmatprep.subr.mxu0 0.0
    %v2566 = vand.u32 %v1773, 4294901760
    %2567 = vmatpush1.msra.mxu0 %v2566
    %2568 = vmatprep.subr.mxu0 0.0
    %v2569 = vand.u32 %v1774, 4294901760
    %2570 = vmatpush1.msra.mxu0 %v2569
    %2571 = vmatprep.subr.mxu0 0.0
    %v2572 = vand.u32 %v1775, 4294901760
    %2573 = vmatpush1.msra.mxu0 %v2572
    %2574 = vmatprep.subr.mxu0 0.0
    %v2575 = vand.u32 %v1776, 4294901760
    %2576 = vmatpush1.msra.mxu0 %v2575
    %2577 = vmatprep.subr.mxu0 0.0
    %v2578 = vand.u32 %v1777, 4294901760
    %2579 = vmatpush1.msra.mxu0 %v2578
    %2580 = vmatprep.subr.mxu0 0.0
    %v2581 = vand.u32 %v1778, 4294901760
    %2582 = vmatpush1.msra.mxu0 %v2581
    %2583 = vmatprep.subr.mxu0 0.0
    %2584 = vmatpush1.msra.mxu0 0.0
    %2585 = vmatprep.subr.mxu0 0.0
    %2586 = vmatpush1.msra.mxu0 0.0
    %2587 = vmatprep.subr.mxu0 0.0
    %2588 = vmatpush1.msra.mxu0 0.0
    %2589 = vmatprep.subr.mxu0 0.0
    %2590 = vmatpush1.msra.mxu0 0.0
    %2591 = vmatprep.subr.mxu0 0.0
    %2592 = vmatpush1.msra.mxu0 0.0
    %2593 = vmatprep.subr.mxu0 0.0
    %2594 = vmatpush1.msra.mxu0 0.0
    %2595 = vmatprep.subr.mxu0 0.0
    %2596 = vmatpush1.msra.mxu0 0.0
    %2597 = vmatprep.subr.mxu0 0.0
    %2598 = vmatpush1.msra.mxu0 0.0
    %2599 = vmatprep.subr.mxu0 0.0
    %2600 = vmatpush1.msra.mxu0 0.0
    %2601 = vmatprep.subr.mxu0 0.0
    %2602 = vmatpush1.msra.mxu0 0.0
    %2603 = vmatprep.subr.mxu0 0.0
    %2604 = vmatpush1.msra.mxu0 0.0
    %2605 = vmatprep.subr.mxu0 0.0
    %2606 = vmatpush1.msra.mxu0 0.0
    %2607 = vmatprep.subr.mxu0 0.0
    %2608 = vmatpush1.msra.mxu0 0.0
    %2609 = vmatprep.subr.mxu0 0.0
    %2610 = vmatpush1.msra.mxu0 0.0
    %v2611 = vand.u32 %v1781, 4294901760
    %2612 = vmatprep.mubr.f32.mxu0 %v2611
    %v2613 = vand.u32 %v1633, 4294901760
    %2614 = vmatmul.mubr.f32.gmra.mrb[0].mxu0 %v2613
    %v2615 = vpop.f32.mrb[0].mxu0
    %v2616 = vadd.f32 %v2505, %v2615
    %v2617 = vpop.f32.mrb[0].mxu0
    %v2618 = vand.u32 %v1784, 4294901760
    %2619 = vmatprep.mubr.f32.mxu0 %v2618
    %v2620 = vand.u32 %v1635, 4294901760
    %2621 = vmatmul.mubr.f32.gmra.mrb[0].mxu0 %v2620
    %v2622 = vpop.f32.mrb[0].mxu0
    %v2623 = vadd.f32 %v2512, %v2622
    %v2624 = vpop.f32.mrb[0].mxu0
    %v2625 = vand.u32 %v1787, 4294901760
    %2626 = vmatprep.mubr.f32.mxu0 %v2625
    %v2627 = vand.u32 %v1637, 4294901760
    %2628 = vmatmul.mubr.f32.gmra.mrb[0].mxu0 %v2627
    %v2629 = vpop.f32.mrb[0].mxu0
    %v2630 = vadd.f32 %v2519, %v2629
    %v2631 = vpop.f32.mrb[0].mxu0
    %v2632 = vand.u32 %v1790, 4294901760
    %2633 = vmatprep.mubr.f32.mxu0 %v2632
    %v2634 = vand.u32 %v1639, 4294901760
    %2635 = vmatmul.mubr.f32.gmra.mrb[0].mxu0 %v2634
    %v2636 = vpop.f32.mrb[0].mxu0
    %v2637 = vadd.f32 %v2526, %v2636
    %v2638 = vpop.f32.mrb[0].mxu0
    %2639 = vdwg.mxu0
    %v2640 = vld [vmem:[%s5] sm:$0x1]
    %v2641 = vlaneseq
    %v2642 = vshrl.u32 %v2641, 7
    %v2643 = vsub.s32 0, %v2642
    %v2644 = vrot.slane %v2640, %v2643
    %v2645 = vmul.f32 %v2616, %v2644
    %v2646 = vmul.f32 %v2623, %v2644
    %v2647 = vmul.f32 %v2630, %v2644
    %v2648 = vmul.f32 %v2637, %v2644
    %v2649 = vld [vmem:[%s5 + $0x1] sm:$0x1]
    %v2650 = vlaneseq
    %v2651 = vshrl.u32 %v2650, 7
    %v2652 = vsub.s32 0, %v2651
    %v2653 = vrot.slane %v2649, %v2652
    %v2654 = vadd.f32 %v2645, %v2653
    %v2655 = vadd.f32 %v2646, %v2653
    %v2656 = vadd.f32 %v2647, %v2653
    %v2657 = vadd.f32 %v2648, %v2653
    %v2658 = vmax.f32 %v2654, 0.0
    %v2659 = vmax.f32 %v2655, 0.0
    %v2660 = vmax.f32 %v2656, 0.0
    %v2661 = vmax.f32 %v2657, 0.0
    %v2662 = vld [vmem:[%s6] sm:$0xff]
    %v2663 = vld [vmem:[%s6 + $0x8] sm:$0xff]
    %v2664 = vld [vmem:[%s6 + $0x10] sm:$0xff]
    %v2665 = vld [vmem:[%s6 + $0x18] sm:$0xff]
    %v2666 = vmul.f32 %v2658, %v2662
    %v2667 = vmul.f32 %v2659, %v2663
    %v2668 = vmul.f32 %v2660, %v2664
    %v2669 = vmul.f32 %v2661, %v2665
    %v2670 = vld [vmem:[%s7] sm:$0xff]
    %v2671 = vld [vmem:[%s7 + $0x8] sm:$0xff]
    %v2672 = vld [vmem:[%s7 + $0x10] sm:$0xff]
    %v2673 = vld [vmem:[%s7 + $0x18] sm:$0xff]
    %v2674 = vld [vmem:[%s7 + $0x20] sm:$0xff]
    %v2675 = vld [vmem:[%s7 + $0x28] sm:$0xff]
    %v2676 = vld [vmem:[%s7 + $0x30] sm:$0xff]
    %v2677 = vld [vmem:[%s7 + $0x38] sm:$0xff]
    %v2678 = vld [vmem:[%s7 + $0x40] sm:$0xff]
    %vm2679 = vcmask 588800
    %v2681 = vsel %vm2679, %v2666, 0
    %v2684 = vsel %vm2679, %v2667, 0
    %v2687 = vsel %vm2679, %v2668, 0
    %v2690 = vsel %vm2679, %v2669, 0
    %2692 = vmatprep.subr.mxu0 0.0
    %v2693 = vand.u32 %v2670, 4294901760
    %2694 = vmatpush1.msra.mxu0 %v2693
    %2695 = vmatprep.subr.mxu0 0.0
    %v2696 = vand.u32 %v2671, 4294901760
    %2697 = vmatpush1.msra.mxu0 %v2696
    %2698 = vmatprep.subr.mxu0 0.0
    %v2699 = vand.u32 %v2672, 4294901760
    %2700 = vmatpush1.msra.mxu0 %v2699
    %2701 = vmatprep.subr.mxu0 0.0
    %v2702 = vand.u32 %v2673, 4294901760
    %2703 = vmatpush1.msra.mxu0 %v2702
    %2704 = vmatprep.subr.mxu0 0.0
    %v2705 = vand.u32 %v2674, 4294901760
    %2706 = vmatpush1.msra.mxu0 %v2705
    %2707 = vmatprep.subr.mxu0 0.0
    %v2708 = vand.u32 %v2675, 4294901760
    %2709 = vmatpush1.msra.mxu0 %v2708
    %2710 = vmatprep.subr.mxu0 0.0
    %v2711 = vand.u32 %v2676, 4294901760
    %2712 = vmatpush1.msra.mxu0 %v2711
    %2713 = vmatprep.subr.mxu0 0.0
    %v2714 = vand.u32 %v2677, 4294901760
    %2715 = vmatpush1.msra.mxu0 %v2714
    %2716 = vmatprep.subr.mxu0 0.0
    %v2717 = vand.u32 %v2678, 4294901760
    %2718 = vmatpush1.msra.mxu0 %v2717
    %2719 = vmatprep.subr.mxu0 0.0
    %2720 = vmatpush1.msra.mxu0 0.0
    %2721 = vmatprep.subr.mxu0 0.0
    %2722 = vmatpush1.msra.mxu0 0.0
    %2723 = vmatprep.subr.mxu0 0.0
    %2724 = vmatpush1.msra.mxu0 0.0
    %2725 = vmatprep.subr.mxu0 0.0
    %2726 = vmatpush1.msra.mxu0 0.0
    %2727 = vmatprep.subr.mxu0 0.0
    %2728 = vmatpush1.msra.mxu0 0.0
    %2729 = vmatprep.subr.mxu0 0.0
    %2730 = vmatpush1.msra.mxu0 0.0
    %2731 = vmatprep.subr.mxu0 0.0
    %2732 = vmatpush1.msra.mxu0 0.0
    %2733 = vmatprep.subr.mxu0 0.0
    %2734 = vmatpush1.msra.mxu0 0.0
    %2735 = vmatprep.subr.mxu0 0.0
    %2736 = vmatpush1.msra.mxu0 0.0
    %2737 = vmatprep.subr.mxu0 0.0
    %2738 = vmatpush1.msra.mxu0 0.0
    %2739 = vmatprep.subr.mxu0 0.0
    %2740 = vmatpush1.msra.mxu0 0.0
    %2741 = vmatprep.subr.mxu0 0.0
    %2742 = vmatpush1.msra.mxu0 0.0
    %2743 = vmatprep.subr.mxu0 0.0
    %2744 = vmatpush1.msra.mxu0 0.0
    %2745 = vmatprep.subr.mxu0 0.0
    %2746 = vmatpush1.msra.mxu0 0.0
    %2747 = vmatprep.subr.mxu0 0.0
    %2748 = vmatpush1.msra.mxu0 0.0
    %2749 = vmatprep.subr.mxu0 0.0
    %2750 = vmatpush1.msra.mxu0 0.0
    %2751 = vmatprep.subr.mxu0 0.0
    %2752 = vmatpush1.msra.mxu0 0.0
    %2753 = vmatprep.subr.mxu0 0.0
    %2754 = vmatpush1.msra.mxu0 0.0
    %2755 = vmatprep.subr.mxu0 0.0
    %2756 = vmatpush1.msra.mxu0 0.0
    %2757 = vmatprep.subr.mxu0 0.0
    %2758 = vmatpush1.msra.mxu0 0.0
    %2759 = vmatprep.subr.mxu0 0.0
    %2760 = vmatpush1.msra.mxu0 0.0
    %2761 = vmatprep.subr.mxu0 0.0
    %2762 = vmatpush1.msra.mxu0 0.0
    %2763 = vmatprep.subr.mxu0 0.0
    %2764 = vmatpush1.msra.mxu0 0.0
    %2765 = vmatprep.mubr.f32.mxu0 0.0
    %v2766 = vand.u32 %v2681, 4294901760
    %v2767 = vsub.f32 %v2681, %v2766
    %v2768 = vand.u32 %v2767, 4294901760
    %v2769 = vsub.f32 %v2767, %v2768
    %v2770 = vand.u32 %v2769, 4294901760
    %2771 = vmatmul.mubr.f32.gmra.mrb[0].mxu0 %v2770
    %v2772 = vpop.f32.mrb[0].mxu0
    %v2773 = vadd.f32 0.0, %v2772
    %v2774 = vpop.f32.mrb[0].mxu0
    %2775 = vmatprep.mubr.f32.mxu0 0.0
    %v2776 = vand.u32 %v2684, 4294901760
    %v2777 = vsub.f32 %v2684, %v2776
    %v2778 = vand.u32 %v2777, 4294901760
    %v2779 = vsub.f32 %v2777, %v2778
    %v2780 = vand.u32 %v2779, 4294901760
    %2781 = vmatmul.mubr.f32.gmra.mrb[0].mxu0 %v2780
    %v2782 = vpop.f32.mrb[0].mxu0
    %v2783 = vadd.f32 0.0, %v2782
    %v2784 = vpop.f32.mrb[0].mxu0
    %2785 = vmatprep.mubr.f32.mxu0 0.0
    %v2786 = vand.u32 %v2687, 4294901760
    %v2787 = vsub.f32 %v2687, %v2786
    %v2788 = vand.u32 %v2787, 4294901760
    %v2789 = vsub.f32 %v2787, %v2788
    %v2790 = vand.u32 %v2789, 4294901760
    %2791 = vmatmul.mubr.f32.gmra.mrb[0].mxu0 %v2790
    %v2792 = vpop.f32.mrb[0].mxu0
    %v2793 = vadd.f32 0.0, %v2792
    %v2794 = vpop.f32.mrb[0].mxu0
    %2795 = vmatprep.mubr.f32.mxu0 0.0
    %v2796 = vand.u32 %v2690, 4294901760
    %v2797 = vsub.f32 %v2690, %v2796
    %v2798 = vand.u32 %v2797, 4294901760
    %v2799 = vsub.f32 %v2797, %v2798
    %v2800 = vand.u32 %v2799, 4294901760
    %2801 = vmatmul.mubr.f32.gmra.mrb[0].mxu0 %v2800
    %v2802 = vpop.f32.mrb[0].mxu0
    %v2803 = vadd.f32 0.0, %v2802
    %v2804 = vpop.f32.mrb[0].mxu0
    %2805 = vdwg.mxu0
    %2806 = vmatprep.subr.mxu0 0.0
    %v2807 = vand.u32 %v2670, 4294901760
    %v2808 = vsub.f32 %v2670, %v2807
    %v2809 = vand.u32 %v2808, 4294901760
    %v2810 = vsub.f32 %v2808, %v2809
    %v2811 = vand.u32 %v2810, 4294901760
    %2812 = vmatpush1.msra.mxu0 %v2811
    %2813 = vmatprep.subr.mxu0 0.0
    %v2814 = vand.u32 %v2671, 4294901760
    %v2815 = vsub.f32 %v2671, %v2814
    %v2816 = vand.u32 %v2815, 4294901760
    %v2817 = vsub.f32 %v2815, %v2816
    %v2818 = vand.u32 %v2817, 4294901760
    %2819 = vmatpush1.msra.mxu0 %v2818
    %2820 = vmatprep.subr.mxu0 0.0
    %v2821 = vand.u32 %v2672, 4294901760
    %v2822 = vsub.f32 %v2672, %v2821
    %v2823 = vand.u32 %v2822, 4294901760
    %v2824 = vsub.f32 %v2822, %v2823
    %v2825 = vand.u32 %v2824, 4294901760
    %2826 = vmatpush1.msra.mxu0 %v2825
    %2827 = vmatprep.subr.mxu0 0.0
    %v2828 = vand.u32 %v2673, 4294901760
    %v2829 = vsub.f32 %v2673, %v2828
    %v2830 = vand.u32 %v2829, 4294901760
    %v2831 = vsub.f32 %v2829, %v2830
    %v2832 = vand.u32 %v2831, 4294901760
    %2833 = vmatpush1.msra.mxu0 %v2832
    %2834 = vmatprep.subr.mxu0 0.0
    %v2835 = vand.u32 %v2674, 4294901760
    %v2836 = vsub.f32 %v2674, %v2835
    %v2837 = vand.u32 %v2836, 4294901760
    %v2838 = vsub.f32 %v2836, %v2837
    %v2839 = vand.u32 %v2838, 4294901760
    %2840 = vmatpush1.msra.mxu0 %v2839
    %2841 = vmatprep.subr.mxu0 0.0
    %v2842 = vand.u32 %v2675, 4294901760
    %v2843 = vsub.f32 %v2675, %v2842
    %v2844 = vand.u32 %v2843, 4294901760
    %v2845 = vsub.f32 %v2843, %v2844
    %v2846 = vand.u32 %v2845, 4294901760
    %2847 = vmatpush1.msra.mxu0 %v2846
    %2848 = vmatprep.subr.mxu0 0.0
    %v2849 = vand.u32 %v2676, 4294901760
    %v2850 = vsub.f32 %v2676, %v2849
    %v2851 = vand.u32 %v2850, 4294901760
    %v2852 = vsub.f32 %v2850, %v2851
    %v2853 = vand.u32 %v2852, 4294901760
    %2854 = vmatpush1.msra.mxu0 %v2853
    %2855 = vmatprep.subr.mxu0 0.0
    %v2856 = vand.u32 %v2677, 4294901760
    %v2857 = vsub.f32 %v2677, %v2856
    %v2858 = vand.u32 %v2857, 4294901760
    %v2859 = vsub.f32 %v2857, %v2858
    %v2860 = vand.u32 %v2859, 4294901760
    %2861 = vmatpush1.msra.mxu0 %v2860
    %2862 = vmatprep.subr.mxu0 0.0
    %v2863 = vand.u32 %v2678, 4294901760
    %v2864 = vsub.f32 %v2678, %v2863
    %v2865 = vand.u32 %v2864, 4294901760
    %v2866 = vsub.f32 %v2864, %v2865
    %v2867 = vand.u32 %v2866, 4294901760
    %2868 = vmatpush1.msra.mxu0 %v2867
    %2869 = vmatprep.subr.mxu0 0.0
    %2870 = vmatpush1.msra.mxu0 0.0
    %2871 = vmatprep.subr.mxu0 0.0
    %2872 = vmatpush1.msra.mxu0 0.0
    %2873 = vmatprep.subr.mxu0 0.0
    %2874 = vmatpush1.msra.mxu0 0.0
    %2875 = vmatprep.subr.mxu0 0.0
    %2876 = vmatpush1.msra.mxu0 0.0
    %2877 = vmatprep.subr.mxu0 0.0
    %2878 = vmatpush1.msra.mxu0 0.0
    %2879 = vmatprep.subr.mxu0 0.0
    %2880 = vmatpush1.msra.mxu0 0.0
    %2881 = vmatprep.subr.mxu0 0.0
    %2882 = vmatpush1.msra.mxu0 0.0
    %2883 = vmatprep.subr.mxu0 0.0
    %2884 = vmatpush1.msra.mxu0 0.0
    %2885 = vmatprep.subr.mxu0 0.0
    %2886 = vmatpush1.msra.mxu0 0.0
    %2887 = vmatprep.subr.mxu0 0.0
    %2888 = vmatpush1.msra.mxu0 0.0
    %2889 = vmatprep.subr.mxu0 0.0
    %2890 = vmatpush1.msra.mxu0 0.0
    %2891 = vmatprep.subr.mxu0 0.0
    %2892 = vmatpush1.msra.mxu0 0.0
    %2893 = vmatprep.subr.mxu0 0.0
    %2894 = vmatpush1.msra.mxu0 0.0
    %2895 = vmatprep.subr.mxu0 0.0
    %2896 = vmatpush1.msra.mxu0 0.0
    %2897 = vmatprep.subr.mxu0 0.0
    %2898 = vmatpush1.msra.mxu0 0.0
    %2899 = vmatprep.subr.mxu0 0.0
    %2900 = vmatpush1.msra.mxu0 0.0
    %2901 = vmatprep.subr.mxu0 0.0
    %2902 = vmatpush1.msra.mxu0 0.0
    %2903 = vmatprep.subr.mxu0 0.0
    %2904 = vmatpush1.msra.mxu0 0.0
    %2905 = vmatprep.subr.mxu0 0.0
    %2906 = vmatpush1.msra.mxu0 0.0
    %2907 = vmatprep.subr.mxu0 0.0
    %2908 = vmatpush1.msra.mxu0 0.0
    %2909 = vmatprep.subr.mxu0 0.0
    %2910 = vmatpush1.msra.mxu0 0.0
    %2911 = vmatprep.subr.mxu0 0.0
    %2912 = vmatpush1.msra.mxu0 0.0
    %2913 = vmatprep.subr.mxu0 0.0
    %2914 = vmatpush1.msra.mxu0 0.0
    %2915 = vmatprep.mubr.f32.mxu0 0.0
    %v2916 = vand.u32 %v2681, 4294901760
    %2917 = vmatmul.mubr.f32.gmra.mrb[0].mxu0 %v2916
    %v2918 = vpop.f32.mrb[0].mxu0
    %v2919 = vadd.f32 %v2773, %v2918
    %v2920 = vpop.f32.mrb[0].mxu0
    %2921 = vmatprep.mubr.f32.mxu0 0.0
    %v2922 = vand.u32 %v2684, 4294901760
    %2923 = vmatmul.mubr.f32.gmra.mrb[0].mxu0 %v2922
    %v2924 = vpop.f32.mrb[0].mxu0
    %v2925 = vadd.f32 %v2783, %v2924
    %v2926 = vpop.f32.mrb[0].mxu0
    %2927 = vmatprep.mubr.f32.mxu0 0.0
    %v2928 = vand.u32 %v2687, 4294901760
    %2929 = vmatmul.mubr.f32.gmra.mrb[0].mxu0 %v2928
    %v2930 = vpop.f32.mrb[0].mxu0
    %v2931 = vadd.f32 %v2793, %v2930
    %v2932 = vpop.f32.mrb[0].mxu0
    %2933 = vmatprep.mubr.f32.mxu0 0.0
    %v2934 = vand.u32 %v2690, 4294901760
    %2935 = vmatmul.mubr.f32.gmra.mrb[0].mxu0 %v2934
    %v2936 = vpop.f32.mrb[0].mxu0
    %v2937 = vadd.f32 %v2803, %v2936
    %v2938 = vpop.f32.mrb[0].mxu0
    %2939 = vdwg.mxu0
    %2940 = vmatprep.subr.mxu0 0.0
    %v2941 = vand.u32 %v2670, 4294901760
    %v2942 = vsub.f32 %v2670, %v2941
    %2943 = vmatpush1.msra.mxu0 %v2942
    %2944 = vmatprep.subr.mxu0 0.0
    %v2945 = vand.u32 %v2671, 4294901760
    %v2946 = vsub.f32 %v2671, %v2945
    %2947 = vmatpush1.msra.mxu0 %v2946
    %2948 = vmatprep.subr.mxu0 0.0
    %v2949 = vand.u32 %v2672, 4294901760
    %v2950 = vsub.f32 %v2672, %v2949
    %2951 = vmatpush1.msra.mxu0 %v2950
    %2952 = vmatprep.subr.mxu0 0.0
    %v2953 = vand.u32 %v2673, 4294901760
    %v2954 = vsub.f32 %v2673, %v2953
    %2955 = vmatpush1.msra.mxu0 %v2954
    %2956 = vmatprep.subr.mxu0 0.0
    %v2957 = vand.u32 %v2674, 4294901760
    %v2958 = vsub.f32 %v2674, %v2957
    %2959 = vmatpush1.msra.mxu0 %v2958
    %2960 = vmatprep.subr.mxu0 0.0
    %v2961 = vand.u32 %v2675, 4294901760
    %v2962 = vsub.f32 %v2675, %v2961
    %2963 = vmatpush1.msra.mxu0 %v2962
    %2964 = vmatprep.subr.mxu0 0.0
    %v2965 = vand.u32 %v2676, 4294901760
    %v2966 = vsub.f32 %v2676, %v2965
    %2967 = vmatpush1.msra.mxu0 %v2966
    %2968 = vmatprep.subr.mxu0 0.0
    %v2969 = vand.u32 %v2677, 4294901760
    %v2970 = vsub.f32 %v2677, %v2969
    %2971 = vmatpush1.msra.mxu0 %v2970
    %2972 = vmatprep.subr.mxu0 0.0
    %v2973 = vand.u32 %v2678, 4294901760
    %v2974 = vsub.f32 %v2678, %v2973
    %2975 = vmatpush1.msra.mxu0 %v2974
    %2976 = vmatprep.subr.mxu0 0.0
    %2977 = vmatpush1.msra.mxu0 0.0
    %2978 = vmatprep.subr.mxu0 0.0
    %2979 = vmatpush1.msra.mxu0 0.0
    %2980 = vmatprep.subr.mxu0 0.0
    %2981 = vmatpush1.msra.mxu0 0.0
    %2982 = vmatprep.subr.mxu0 0.0
    %2983 = vmatpush1.msra.mxu0 0.0
    %2984 = vmatprep.subr.mxu0 0.0
    %2985 = vmatpush1.msra.mxu0 0.0
    %2986 = vmatprep.subr.mxu0 0.0
    %2987 = vmatpush1.msra.mxu0 0.0
    %2988 = vmatprep.subr.mxu0 0.0
    %2989 = vmatpush1.msra.mxu0 0.0
    %2990 = vmatprep.subr.mxu0 0.0
    %2991 = vmatpush1.msra.mxu0 0.0
    %2992 = vmatprep.subr.mxu0 0.0
    %2993 = vmatpush1.msra.mxu0 0.0
    %2994 = vmatprep.subr.mxu0 0.0
    %2995 = vmatpush1.msra.mxu0 0.0
    %2996 = vmatprep.subr.mxu0 0.0
    %2997 = vmatpush1.msra.mxu0 0.0
    %2998 = vmatprep.subr.mxu0 0.0
    %2999 = vmatpush1.msra.mxu0 0.0
    %3000 = vmatprep.subr.mxu0 0.0
    %3001 = vmatpush1.msra.mxu0 0.0
    %3002 = vmatprep.subr.mxu0 0.0
    %3003 = vmatpush1.msra.mxu0 0.0
    %3004 = vmatprep.subr.mxu0 0.0
    %3005 = vmatpush1.msra.mxu0 0.0
    %3006 = vmatprep.subr.mxu0 0.0
    %3007 = vmatpush1.msra.mxu0 0.0
    %3008 = vmatprep.subr.mxu0 0.0
    %3009 = vmatpush1.msra.mxu0 0.0
    %3010 = vmatprep.subr.mxu0 0.0
    %3011 = vmatpush1.msra.mxu0 0.0
    %3012 = vmatprep.subr.mxu0 0.0
    %3013 = vmatpush1.msra.mxu0 0.0
    %3014 = vmatprep.subr.mxu0 0.0
    %3015 = vmatpush1.msra.mxu0 0.0
    %3016 = vmatprep.subr.mxu0 0.0
    %3017 = vmatpush1.msra.mxu0 0.0
    %3018 = vmatprep.subr.mxu0 0.0
    %3019 = vmatpush1.msra.mxu0 0.0
    %3020 = vmatprep.subr.mxu0 0.0
    %3021 = vmatpush1.msra.mxu0 0.0
    %3022 = vmatprep.mubr.f32.mxu0 0.0
    %v3023 = vand.u32 %v2681, 4294901760
    %v3024 = vsub.f32 %v2681, %v3023
    %3025 = vmatmul.mubr.f32.gmra.mrb[0].mxu0 %v3024
    %v3026 = vpop.f32.mrb[0].mxu0
    %v3027 = vadd.f32 %v2919, %v3026
    %v3028 = vpop.f32.mrb[0].mxu0
    %3029 = vmatprep.mubr.f32.mxu0 0.0
    %v3030 = vand.u32 %v2684, 4294901760
    %v3031 = vsub.f32 %v2684, %v3030
    %3032 = vmatmul.mubr.f32.gmra.mrb[0].mxu0 %v3031
    %v3033 = vpop.f32.mrb[0].mxu0
    %v3034 = vadd.f32 %v2925, %v3033
    %v3035 = vpop.f32.mrb[0].mxu0
    %3036 = vmatprep.mubr.f32.mxu0 0.0
    %v3037 = vand.u32 %v2687, 4294901760
    %v3038 = vsub.f32 %v2687, %v3037
    %3039 = vmatmul.mubr.f32.gmra.mrb[0].mxu0 %v3038
    %v3040 = vpop.f32.mrb[0].mxu0
    %v3041 = vadd.f32 %v2931, %v3040
    %v3042 = vpop.f32.mrb[0].mxu0
    %3043 = vmatprep.mubr.f32.mxu0 0.0
    %v3044 = vand.u32 %v2690, 4294901760
    %v3045 = vsub.f32 %v2690, %v3044
    %3046 = vmatmul.mubr.f32.gmra.mrb[0].mxu0 %v3045
    %v3047 = vpop.f32.mrb[0].mxu0
    %v3048 = vadd.f32 %v2937, %v3047
    %v3049 = vpop.f32.mrb[0].mxu0
    %3050 = vdwg.mxu0
    %3051 = vmatprep.subr.mxu0 0.0
    %v3052 = vand.u32 %v2670, 4294901760
    %3053 = vmatpush1.msra.mxu0 %v3052
    %3054 = vmatprep.subr.mxu0 0.0
    %v3055 = vand.u32 %v2671, 4294901760
    %3056 = vmatpush1.msra.mxu0 %v3055
    %3057 = vmatprep.subr.mxu0 0.0
    %v3058 = vand.u32 %v2672, 4294901760
    %3059 = vmatpush1.msra.mxu0 %v3058
    %3060 = vmatprep.subr.mxu0 0.0
    %v3061 = vand.u32 %v2673, 4294901760
    %3062 = vmatpush1.msra.mxu0 %v3061
    %3063 = vmatprep.subr.mxu0 0.0
    %v3064 = vand.u32 %v2674, 4294901760
    %3065 = vmatpush1.msra.mxu0 %v3064
    %3066 = vmatprep.subr.mxu0 0.0
    %v3067 = vand.u32 %v2675, 4294901760
    %3068 = vmatpush1.msra.mxu0 %v3067
    %3069 = vmatprep.subr.mxu0 0.0
    %v3070 = vand.u32 %v2676, 4294901760
    %3071 = vmatpush1.msra.mxu0 %v3070
    %3072 = vmatprep.subr.mxu0 0.0
    %v3073 = vand.u32 %v2677, 4294901760
    %3074 = vmatpush1.msra.mxu0 %v3073
    %3075 = vmatprep.subr.mxu0 0.0
    %v3076 = vand.u32 %v2678, 4294901760
    %3077 = vmatpush1.msra.mxu0 %v3076
    %3078 = vmatprep.subr.mxu0 0.0
    %3079 = vmatpush1.msra.mxu0 0.0
    %3080 = vmatprep.subr.mxu0 0.0
    %3081 = vmatpush1.msra.mxu0 0.0
    %3082 = vmatprep.subr.mxu0 0.0
    %3083 = vmatpush1.msra.mxu0 0.0
    %3084 = vmatprep.subr.mxu0 0.0
    %3085 = vmatpush1.msra.mxu0 0.0
    %3086 = vmatprep.subr.mxu0 0.0
    %3087 = vmatpush1.msra.mxu0 0.0
    %3088 = vmatprep.subr.mxu0 0.0
    %3089 = vmatpush1.msra.mxu0 0.0
    %3090 = vmatprep.subr.mxu0 0.0
    %3091 = vmatpush1.msra.mxu0 0.0
    %3092 = vmatprep.subr.mxu0 0.0
    %3093 = vmatpush1.msra.mxu0 0.0
    %3094 = vmatprep.subr.mxu0 0.0
    %3095 = vmatpush1.msra.mxu0 0.0
    %3096 = vmatprep.subr.mxu0 0.0
    %3097 = vmatpush1.msra.mxu0 0.0
    %3098 = vmatprep.subr.mxu0 0.0
    %3099 = vmatpush1.msra.mxu0 0.0
    %3100 = vmatprep.subr.mxu0 0.0
    %3101 = vmatpush1.msra.mxu0 0.0
    %3102 = vmatprep.subr.mxu0 0.0
    %3103 = vmatpush1.msra.mxu0 0.0
    %3104 = vmatprep.subr.mxu0 0.0
    %3105 = vmatpush1.msra.mxu0 0.0
    %3106 = vmatprep.subr.mxu0 0.0
    %3107 = vmatpush1.msra.mxu0 0.0
    %3108 = vmatprep.subr.mxu0 0.0
    %3109 = vmatpush1.msra.mxu0 0.0
    %3110 = vmatprep.subr.mxu0 0.0
    %3111 = vmatpush1.msra.mxu0 0.0
    %3112 = vmatprep.subr.mxu0 0.0
    %3113 = vmatpush1.msra.mxu0 0.0
    %3114 = vmatprep.subr.mxu0 0.0
    %3115 = vmatpush1.msra.mxu0 0.0
    %3116 = vmatprep.subr.mxu0 0.0
    %3117 = vmatpush1.msra.mxu0 0.0
    %3118 = vmatprep.subr.mxu0 0.0
    %3119 = vmatpush1.msra.mxu0 0.0
    %3120 = vmatprep.subr.mxu0 0.0
    %3121 = vmatpush1.msra.mxu0 0.0
    %3122 = vmatprep.subr.mxu0 0.0
    %3123 = vmatpush1.msra.mxu0 0.0
    %3124 = vmatprep.mubr.f32.mxu0 0.0
    %v3125 = vand.u32 %v2681, 4294901760
    %v3126 = vsub.f32 %v2681, %v3125
    %v3127 = vand.u32 %v3126, 4294901760
    %3128 = vmatmul.mubr.f32.gmra.mrb[0].mxu0 %v3127
    %v3129 = vpop.f32.mrb[0].mxu0
    %v3130 = vadd.f32 %v3027, %v3129
    %v3131 = vpop.f32.mrb[0].mxu0
    %3132 = vmatprep.mubr.f32.mxu0 0.0
    %v3133 = vand.u32 %v2684, 4294901760
    %v3134 = vsub.f32 %v2684, %v3133
    %v3135 = vand.u32 %v3134, 4294901760
    %3136 = vmatmul.mubr.f32.gmra.mrb[0].mxu0 %v3135
    %v3137 = vpop.f32.mrb[0].mxu0
    %v3138 = vadd.f32 %v3034, %v3137
    %v3139 = vpop.f32.mrb[0].mxu0
    %3140 = vmatprep.mubr.f32.mxu0 0.0
    %v3141 = vand.u32 %v2687, 4294901760
    %v3142 = vsub.f32 %v2687, %v3141
    %v3143 = vand.u32 %v3142, 4294901760
    %3144 = vmatmul.mubr.f32.gmra.mrb[0].mxu0 %v3143
    %v3145 = vpop.f32.mrb[0].mxu0
    %v3146 = vadd.f32 %v3041, %v3145
    %v3147 = vpop.f32.mrb[0].mxu0
    %3148 = vmatprep.mubr.f32.mxu0 0.0
    %v3149 = vand.u32 %v2690, 4294901760
    %v3150 = vsub.f32 %v2690, %v3149
    %v3151 = vand.u32 %v3150, 4294901760
    %3152 = vmatmul.mubr.f32.gmra.mrb[0].mxu0 %v3151
    %v3153 = vpop.f32.mrb[0].mxu0
    %v3154 = vadd.f32 %v3048, %v3153
    %v3155 = vpop.f32.mrb[0].mxu0
    %3156 = vdwg.mxu0
    %3157 = vmatprep.subr.mxu0 0.0
    %v3158 = vand.u32 %v2670, 4294901760
    %v3159 = vsub.f32 %v2670, %v3158
    %v3160 = vand.u32 %v3159, 4294901760
    %3161 = vmatpush1.msra.mxu0 %v3160
    %3162 = vmatprep.subr.mxu0 0.0
    %v3163 = vand.u32 %v2671, 4294901760
    %v3164 = vsub.f32 %v2671, %v3163
    %v3165 = vand.u32 %v3164, 4294901760
    %3166 = vmatpush1.msra.mxu0 %v3165
    %3167 = vmatprep.subr.mxu0 0.0
    %v3168 = vand.u32 %v2672, 4294901760
    %v3169 = vsub.f32 %v2672, %v3168
    %v3170 = vand.u32 %v3169, 4294901760
    %3171 = vmatpush1.msra.mxu0 %v3170
    %3172 = vmatprep.subr.mxu0 0.0
    %v3173 = vand.u32 %v2673, 4294901760
    %v3174 = vsub.f32 %v2673, %v3173
    %v3175 = vand.u32 %v3174, 4294901760
    %3176 = vmatpush1.msra.mxu0 %v3175
    %3177 = vmatprep.subr.mxu0 0.0
    %v3178 = vand.u32 %v2674, 4294901760
    %v3179 = vsub.f32 %v2674, %v3178
    %v3180 = vand.u32 %v3179, 4294901760
    %3181 = vmatpush1.msra.mxu0 %v3180
    %3182 = vmatprep.subr.mxu0 0.0
    %v3183 = vand.u32 %v2675, 4294901760
    %v3184 = vsub.f32 %v2675, %v3183
    %v3185 = vand.u32 %v3184, 4294901760
    %3186 = vmatpush1.msra.mxu0 %v3185
    %3187 = vmatprep.subr.mxu0 0.0
    %v3188 = vand.u32 %v2676, 4294901760
    %v3189 = vsub.f32 %v2676, %v3188
    %v3190 = vand.u32 %v3189, 4294901760
    %3191 = vmatpush1.msra.mxu0 %v3190
    %3192 = vmatprep.subr.mxu0 0.0
    %v3193 = vand.u32 %v2677, 4294901760
    %v3194 = vsub.f32 %v2677, %v3193
    %v3195 = vand.u32 %v3194, 4294901760
    %3196 = vmatpush1.msra.mxu0 %v3195
    %3197 = vmatprep.subr.mxu0 0.0
    %v3198 = vand.u32 %v2678, 4294901760
    %v3199 = vsub.f32 %v2678, %v3198
    %v3200 = vand.u32 %v3199, 4294901760
    %3201 = vmatpush1.msra.mxu0 %v3200
    %3202 = vmatprep.subr.mxu0 0.0
    %3203 = vmatpush1.msra.mxu0 0.0
    %3204 = vmatprep.subr.mxu0 0.0
    %3205 = vmatpush1.msra.mxu0 0.0
    %3206 = vmatprep.subr.mxu0 0.0
    %3207 = vmatpush1.msra.mxu0 0.0
    %3208 = vmatprep.subr.mxu0 0.0
    %3209 = vmatpush1.msra.mxu0 0.0
    %3210 = vmatprep.subr.mxu0 0.0
    %3211 = vmatpush1.msra.mxu0 0.0
    %3212 = vmatprep.subr.mxu0 0.0
    %3213 = vmatpush1.msra.mxu0 0.0
    %3214 = vmatprep.subr.mxu0 0.0
    %3215 = vmatpush1.msra.mxu0 0.0
    %3216 = vmatprep.subr.mxu0 0.0
    %3217 = vmatpush1.msra.mxu0 0.0
    %3218 = vmatprep.subr.mxu0 0.0
    %3219 = vmatpush1.msra.mxu0 0.0
    %3220 = vmatprep.subr.mxu0 0.0
    %3221 = vmatpush1.msra.mxu0 0.0
    %3222 = vmatprep.subr.mxu0 0.0
    %3223 = vmatpush1.msra.mxu0 0.0
    %3224 = vmatprep.subr.mxu0 0.0
    %3225 = vmatpush1.msra.mxu0 0.0
    %3226 = vmatprep.subr.mxu0 0.0
    %3227 = vmatpush1.msra.mxu0 0.0
    %3228 = vmatprep.subr.mxu0 0.0
    %3229 = vmatpush1.msra.mxu0 0.0
    %3230 = vmatprep.subr.mxu0 0.0
    %3231 = vmatpush1.msra.mxu0 0.0
    %3232 = vmatprep.subr.mxu0 0.0
    %3233 = vmatpush1.msra.mxu0 0.0
    %3234 = vmatprep.subr.mxu0 0.0
    %3235 = vmatpush1.msra.mxu0 0.0
    %3236 = vmatprep.subr.mxu0 0.0
    %3237 = vmatpush1.msra.mxu0 0.0
    %3238 = vmatprep.subr.mxu0 0.0
    %3239 = vmatpush1.msra.mxu0 0.0
    %3240 = vmatprep.subr.mxu0 0.0
    %3241 = vmatpush1.msra.mxu0 0.0
    %3242 = vmatprep.subr.mxu0 0.0
    %3243 = vmatpush1.msra.mxu0 0.0
    %3244 = vmatprep.subr.mxu0 0.0
    %3245 = vmatpush1.msra.mxu0 0.0
    %3246 = vmatprep.subr.mxu0 0.0
    %3247 = vmatpush1.msra.mxu0 0.0
    %3248 = vmatprep.mubr.f32.mxu0 0.0
    %v3249 = vand.u32 %v2681, 4294901760
    %3250 = vmatmul.mubr.f32.gmra.mrb[0].mxu0 %v3249
    %v3251 = vpop.f32.mrb[0].mxu0
    %v3252 = vadd.f32 %v3130, %v3251
    %v3253 = vpop.f32.mrb[0].mxu0
    %3254 = vmatprep.mubr.f32.mxu0 0.0
    %v3255 = vand.u32 %v2684, 4294901760
    %3256 = vmatmul.mubr.f32.gmra.mrb[0].mxu0 %v3255
    %v3257 = vpop.f32.mrb[0].mxu0
    %v3258 = vadd.f32 %v3138, %v3257
    %v3259 = vpop.f32.mrb[0].mxu0
    %3260 = vmatprep.mubr.f32.mxu0 0.0
    %v3261 = vand.u32 %v2687, 4294901760
    %3262 = vmatmul.mubr.f32.gmra.mrb[0].mxu0 %v3261
    %v3263 = vpop.f32.mrb[0].mxu0
    %v3264 = vadd.f32 %v3146, %v3263
    %v3265 = vpop.f32.mrb[0].mxu0
    %3266 = vmatprep.mubr.f32.mxu0 0.0
    %v3267 = vand.u32 %v2690, 4294901760
    %3268 = vmatmul.mubr.f32.gmra.mrb[0].mxu0 %v3267
    %v3269 = vpop.f32.mrb[0].mxu0
    %v3270 = vadd.f32 %v3154, %v3269
    %v3271 = vpop.f32.mrb[0].mxu0
    %3272 = vdwg.mxu0
    %3273 = vmatprep.subr.mxu0 0.0
    %v3274 = vand.u32 %v2670, 4294901760
    %3275 = vmatpush1.msra.mxu0 %v3274
    %3276 = vmatprep.subr.mxu0 0.0
    %v3277 = vand.u32 %v2671, 4294901760
    %3278 = vmatpush1.msra.mxu0 %v3277
    %3279 = vmatprep.subr.mxu0 0.0
    %v3280 = vand.u32 %v2672, 4294901760
    %3281 = vmatpush1.msra.mxu0 %v3280
    %3282 = vmatprep.subr.mxu0 0.0
    %v3283 = vand.u32 %v2673, 4294901760
    %3284 = vmatpush1.msra.mxu0 %v3283
    %3285 = vmatprep.subr.mxu0 0.0
    %v3286 = vand.u32 %v2674, 4294901760
    %3287 = vmatpush1.msra.mxu0 %v3286
    %3288 = vmatprep.subr.mxu0 0.0
    %v3289 = vand.u32 %v2675, 4294901760
    %3290 = vmatpush1.msra.mxu0 %v3289
    %3291 = vmatprep.subr.mxu0 0.0
    %v3292 = vand.u32 %v2676, 4294901760
    %3293 = vmatpush1.msra.mxu0 %v3292
    %3294 = vmatprep.subr.mxu0 0.0
    %v3295 = vand.u32 %v2677, 4294901760
    %3296 = vmatpush1.msra.mxu0 %v3295
    %3297 = vmatprep.subr.mxu0 0.0
    %v3298 = vand.u32 %v2678, 4294901760
    %3299 = vmatpush1.msra.mxu0 %v3298
    %3300 = vmatprep.subr.mxu0 0.0
    %3301 = vmatpush1.msra.mxu0 0.0
    %3302 = vmatprep.subr.mxu0 0.0
    %3303 = vmatpush1.msra.mxu0 0.0
    %3304 = vmatprep.subr.mxu0 0.0
    %3305 = vmatpush1.msra.mxu0 0.0
    %3306 = vmatprep.subr.mxu0 0.0
    %3307 = vmatpush1.msra.mxu0 0.0
    %3308 = vmatprep.subr.mxu0 0.0
    %3309 = vmatpush1.msra.mxu0 0.0
    %3310 = vmatprep.subr.mxu0 0.0
    %3311 = vmatpush1.msra.mxu0 0.0
    %3312 = vmatprep.subr.mxu0 0.0
    %3313 = vmatpush1.msra.mxu0 0.0
    %3314 = vmatprep.subr.mxu0 0.0
    %3315 = vmatpush1.msra.mxu0 0.0
    %3316 = vmatprep.subr.mxu0 0.0
    %3317 = vmatpush1.msra.mxu0 0.0
    %3318 = vmatprep.subr.mxu0 0.0
    %3319 = vmatpush1.msra.mxu0 0.0
    %3320 = vmatprep.subr.mxu0 0.0
    %3321 = vmatpush1.msra.mxu0 0.0
    %3322 = vmatprep.subr.mxu0 0.0
    %3323 = vmatpush1.msra.mxu0 0.0
    %3324 = vmatprep.subr.mxu0 0.0
    %3325 = vmatpush1.msra.mxu0 0.0
    %3326 = vmatprep.subr.mxu0 0.0
    %3327 = vmatpush1.msra.mxu0 0.0
    %3328 = vmatprep.subr.mxu0 0.0
    %3329 = vmatpush1.msra.mxu0 0.0
    %3330 = vmatprep.subr.mxu0 0.0
    %3331 = vmatpush1.msra.mxu0 0.0
    %3332 = vmatprep.subr.mxu0 0.0
    %3333 = vmatpush1.msra.mxu0 0.0
    %3334 = vmatprep.subr.mxu0 0.0
    %3335 = vmatpush1.msra.mxu0 0.0
    %3336 = vmatprep.subr.mxu0 0.0
    %3337 = vmatpush1.msra.mxu0 0.0
    %3338 = vmatprep.subr.mxu0 0.0
    %3339 = vmatpush1.msra.mxu0 0.0
    %3340 = vmatprep.subr.mxu0 0.0
    %3341 = vmatpush1.msra.mxu0 0.0
    %3342 = vmatprep.subr.mxu0 0.0
    %3343 = vmatpush1.msra.mxu0 0.0
    %3344 = vmatprep.subr.mxu0 0.0
    %3345 = vmatpush1.msra.mxu0 0.0
    %3346 = vmatprep.mubr.f32.mxu0 0.0
    %v3347 = vand.u32 %v2681, 4294901760
    %3348 = vmatmul.mubr.f32.gmra.mrb[0].mxu0 %v3347
    %v3349 = vpop.f32.mrb[0].mxu0
    %v3350 = vadd.f32 %v3252, %v3349
    %v3351 = vpop.f32.mrb[0].mxu0
    %3352 = vmatprep.mubr.f32.mxu0 0.0
    %v3353 = vand.u32 %v2684, 4294901760
    %3354 = vmatmul.mubr.f32.gmra.mrb[0].mxu0 %v3353
    %v3355 = vpop.f32.mrb[0].mxu0
    %v3356 = vadd.f32 %v3258, %v3355
    %v3357 = vpop.f32.mrb[0].mxu0
    %3358 = vmatprep.mubr.f32.mxu0 0.0
    %v3359 = vand.u32 %v2687, 4294901760
    %3360 = vmatmul.mubr.f32.gmra.mrb[0].mxu0 %v3359
    %v3361 = vpop.f32.mrb[0].mxu0
    %v3362 = vadd.f32 %v3264, %v3361
    %v3363 = vpop.f32.mrb[0].mxu0
    %3364 = vmatprep.mubr.f32.mxu0 0.0
    %v3365 = vand.u32 %v2690, 4294901760
    %3366 = vmatmul.mubr.f32.gmra.mrb[0].mxu0 %v3365
    %v3367 = vpop.f32.mrb[0].mxu0
    %v3368 = vadd.f32 %v3270, %v3367
    %v3369 = vpop.f32.mrb[0].mxu0
    %3370 = vdwg.mxu0
    %v3371 = vld [vmem:[%s8] sm:$0x1]
    %v3372 = vlaneseq
    %v3373 = vshrl.u32 %v3372, 7
    %v3374 = vsub.s32 0, %v3373
    %v3375 = vrot.slane %v3371, %v3374
    %v3376 = vmul.f32 %v3350, %v3375
    %v3377 = vmul.f32 %v3356, %v3375
    %v3378 = vmul.f32 %v3362, %v3375
    %v3379 = vmul.f32 %v3368, %v3375
    %v3380 = vld [vmem:[%s8 + $0x1] sm:$0x1]
    %v3381 = vlaneseq
    %v3382 = vshrl.u32 %v3381, 7
    %v3383 = vsub.s32 0, %v3382
    %v3384 = vrot.slane %v3380, %v3383
    %v3385 = vadd.f32 %v3376, %v3384
    %v3386 = vadd.f32 %v3377, %v3384
    %v3387 = vadd.f32 %v3378, %v3384
    %v3388 = vadd.f32 %v3379, %v3384
    %v3389 = vmax.f32 %v3385, 0.0
    %v3390 = vmax.f32 %v3386, 0.0
    %v3391 = vmax.f32 %v3387, 0.0
    %v3392 = vmax.f32 %v3388, 0.0
    %3397 = vrot.lane.b32.xlu0 %v1757, 16
    %v3398 = vpop.permute.xlu0 %3397
    %3399 = vrot.lane.b32.xlu0 %v1758, 16
    %v3400 = vpop.permute.xlu0 %3399
    %3401 = vrot.lane.b32.xlu0 %v1759, 16
    %v3402 = vpop.permute.xlu0 %3401
    %3403 = vrot.lane.b32.xlu0 %v1760, 16
    %v3404 = vpop.permute.xlu0 %3403
    %v3409 = vsel %vm1779, %v3389, %v3398
    %v3410 = vsel %vm1779, %v3390, %v3400
    %v3411 = vsel %vm1779, %v3391, %v3402
    %v3412 = vsel %vm1779, %v3392, %v3404
    %vm3417 = vcmask 1044480
    %v3418 = vrot.slane %v3409, 3
    %v3419 = vrot.slane %v3410, 3
    %v3420 = vsel %vm3417, %v3418, %v3419
    %v3421 = vrot.slane %v3411, 3
    %v3422 = vsel %vm3417, %v3419, %v3421
    %v3423 = vrot.slane %v3412, 3
    %v3424 = vsel %vm3417, %v3421, %v3423
    %v3430 = vsel %vm3417, 0.0, %v3418
    %v3431 = vsel %vm3417, %v3423, 0.0
    %vm3434 = vcmask 1046528
    %v3435 = vrot.slane %v3430, 1
    %v3436 = vrot.slane %v3420, 1
    %v3437 = vsel %vm3434, %v3435, %v3436
    %v3438 = vrot.slane %v3422, 1
    %v3439 = vsel %vm3434, %v3436, %v3438
    %v3440 = vrot.slane %v3424, 1
    %v3441 = vsel %vm3434, %v3438, %v3440
    %v3442 = vrot.slane %v3431, 1
    %v3443 = vsel %vm3434, %v3440, %v3442
    %3444 = vrot.lane.b32.xlu0 %v3437, 32
    %v3445 = vpop.permute.xlu0 %3444
    %3446 = vrot.lane.b32.xlu0 %v3439, 32
    %v3447 = vpop.permute.xlu0 %3446
    %3448 = vrot.lane.b32.xlu0 %v3441, 32
    %v3449 = vpop.permute.xlu0 %3448
    %3450 = vrot.lane.b32.xlu0 %v3443, 32
    %v3451 = vpop.permute.xlu0 %3450
    %vm3456 = vcmask 1045504
    %v3457 = vrot.slane %v3430, 2
    %v3458 = vrot.slane %v3420, 2
    %v3459 = vsel %vm3456, %v3457, %v3458
    %v3460 = vrot.slane %v3422, 2
    %v3461 = vsel %vm3456, %v3458, %v3460
    %v3462 = vrot.slane %v3424, 2
    %v3463 = vsel %vm3456, %v3460, %v3462
    %v3464 = vrot.slane %v3431, 2
    %v3465 = vsel %vm3456, %v3462, %v3464
    %3466 = vrot.lane.b32.xlu0 %v3459, 64
    %v3467 = vpop.permute.xlu0 %3466
    %3468 = vrot.lane.b32.xlu0 %v3461, 64
    %v3469 = vpop.permute.xlu0 %3468
    %3470 = vrot.lane.b32.xlu0 %v3463, 64
    %v3471 = vpop.permute.xlu0 %3470
    %3472 = vrot.lane.b32.xlu0 %v3465, 64
    %v3473 = vpop.permute.xlu0 %3472
    %vm3478 = vcmask 1043456
    %v3479 = vrot.slane %v3430, 4
    %v3480 = vrot.slane %v3420, 4
    %v3481 = vsel %vm3478, %v3479, %v3480
    %v3482 = vrot.slane %v3422, 4
    %v3483 = vsel %vm3478, %v3480, %v3482
    %v3484 = vrot.slane %v3424, 4
    %v3485 = vsel %vm3478, %v3482, %v3484
    %v3486 = vrot.slane %v3431, 4
    %v3487 = vsel %vm3478, %v3484, %v3486
    %3488 = vrot.lane.b32.xlu0 %v3481, 96
    %v3489 = vpop.permute.xlu0 %3488
    %3490 = vrot.lane.b32.xlu0 %v3483, 96
    %v3491 = vpop.permute.xlu0 %3490
    %3492 = vrot.lane.b32.xlu0 %v3485, 96
    %v3493 = vpop.permute.xlu0 %3492
    %3494 = vrot.lane.b32.xlu0 %v3487, 96
    %v3495 = vpop.permute.xlu0 %3494
    %v3500 = vrot.slane %v3430, 5
    %v3501 = vrot.slane %v3420, 5
    %v3502 = vsel %vm125, %v3500, %v3501
    %v3503 = vrot.slane %v3422, 5
    %v3504 = vsel %vm125, %v3501, %v3503
    %v3505 = vrot.slane %v3424, 5
    %v3506 = vsel %vm125, %v3503, %v3505
    %v3507 = vrot.slane %v3431, 5
    %v3508 = vsel %vm125, %v3505, %v3507
    %vm3513 = vcmask 1041408
    %v3514 = vrot.slane %v3430, 6
    %v3515 = vrot.slane %v3420, 6
    %v3516 = vsel %vm3513, %v3514, %v3515
    %v3517 = vrot.slane %v3422, 6
    %v3518 = vsel %vm3513, %v3515, %v3517
    %v3519 = vrot.slane %v3424, 6
    %v3520 = vsel %vm3513, %v3517, %v3519
    %v3521 = vrot.slane %v3431, 6
    %v3522 = vsel %vm3513, %v3519, %v3521
    %3523 = vrot.lane.b32.xlu0 %v3516, 32
    %v3524 = vpop.permute.xlu0 %3523
    %3525 = vrot.lane.b32.xlu0 %v3518, 32
    %v3526 = vpop.permute.xlu0 %3525
    %3527 = vrot.lane.b32.xlu0 %v3520, 32
    %v3528 = vpop.permute.xlu0 %3527
    %3529 = vrot.lane.b32.xlu0 %v3522, 32
    %v3530 = vpop.permute.xlu0 %3529
    %3535 = vrot.lane.b32.xlu0 %v3420, 64
    %v3536 = vpop.permute.xlu0 %3535
    %3537 = vrot.lane.b32.xlu0 %v3422, 64
    %v3538 = vpop.permute.xlu0 %3537
    %3539 = vrot.lane.b32.xlu0 %v3424, 64
    %v3540 = vpop.permute.xlu0 %3539
    %3541 = vrot.lane.b32.xlu0 %v3431, 64
    %v3542 = vpop.permute.xlu0 %3541
    %v3548 = vrot.slane 0.0, 1
    %v3549 = vsel %vm3434, %v3442, %v3548
    %3550 = vrot.lane.b32.xlu0 %v3439, 96
    %v3551 = vpop.permute.xlu0 %3550
    %3552 = vrot.lane.b32.xlu0 %v3441, 96
    %v3553 = vpop.permute.xlu0 %3552
    %3554 = vrot.lane.b32.xlu0 %v3443, 96
    %v3555 = vpop.permute.xlu0 %3554
    %3556 = vrot.lane.b32.xlu0 %v3549, 96
    %v3557 = vpop.permute.xlu0 %3556
    %v3562 = vrot.slane 0.0, 2
    %v3563 = vsel %vm3456, %v3464, %v3562
    %vm3568 = vcmask 261120
    %v3569 = vsel %vm3568, %v3430, %v3445
    %v3570 = vsel %vm3568, %v3420, %v3447
    %v3571 = vsel %vm3568, %v3422, %v3449
    %v3572 = vsel %vm3568, %v3424, %v3451
    %vm3573 = vcmask 523264
    %v3574 = vsel %vm3573, %v3569, %v3467
    %v3575 = vsel %vm3573, %v3570, %v3469
    %v3576 = vsel %vm3573, %v3571, %v3471
    %v3577 = vsel %vm3573, %v3572, %v3473
    %vm3578 = vcmask 785408
    %v3579 = vsel %vm3578, %v3574, %v3489
    %v3580 = vsel %vm3578, %v3575, %v3491
    %v3581 = vsel %vm3578, %v3576, %v3493
    %v3582 = vsel %vm3578, %v3577, %v3495
    %v3583 = vsel %vm3568, %v3502, %v3524
    %v3584 = vsel %vm3568, %v3504, %v3526
    %v3585 = vsel %vm3568, %v3506, %v3528
    %v3586 = vsel %vm3568, %v3508, %v3530
    %v3587 = vsel %vm3573, %v3583, %v3536
    %v3588 = vsel %vm3573, %v3584, %v3538
    %v3589 = vsel %vm3573, %v3585, %v3540
    %v3590 = vsel %vm3573, %v3586, %v3542
    %v3591 = vsel %vm3578, %v3587, %v3551
    %v3592 = vsel %vm3578, %v3588, %v3553
    %v3593 = vsel %vm3578, %v3589, %v3555
    %v3594 = vsel %vm3578, %v3590, %v3557
    %v3595 = vld [vmem:[%s11] sm:$0xff]
    %v3596 = vld [vmem:[%s11 + $0x8] sm:$0xff]
    %v3597 = vld [vmem:[%s11 + $0x10] sm:$0xff]
    %v3598 = vld [vmem:[%s11 + $0x18] sm:$0xff]
    %v3599 = vld [vmem:[%s11 + $0x20] sm:$0xff]
    %v3600 = vld [vmem:[%s11 + $0x28] sm:$0xff]
    %v3601 = vld [vmem:[%s11 + $0x30] sm:$0xff]
    %v3602 = vld [vmem:[%s11 + $0x38] sm:$0xff]
    %v3603 = vld [vmem:[%s11 + $0x40] sm:$0xff]
    %v3604 = vld [vmem:[%s11 + $0x48] sm:$0xff]
    %v3605 = vld [vmem:[%s11 + $0x50] sm:$0xff]
    %v3606 = vld [vmem:[%s11 + $0x58] sm:$0xff]
    %v3607 = vmul.f32 %v3579, %v3595
    %v3608 = vmul.f32 %v3591, %v3596
    %v3609 = vmul.f32 %v3461, %v3597
    %v3610 = vmul.f32 %v3580, %v3598
    %v3611 = vmul.f32 %v3592, %v3599
    %v3612 = vmul.f32 %v3463, %v3600
    %v3613 = vmul.f32 %v3581, %v3601
    %v3614 = vmul.f32 %v3593, %v3602
    %v3615 = vmul.f32 %v3465, %v3603
    %v3616 = vmul.f32 %v3582, %v3604
    %v3617 = vmul.f32 %v3594, %v3605
    %v3618 = vmul.f32 %v3563, %v3606
    %v3619 = vld [vmem:[%s9] sm:$0xff]
    %v3620 = vld [vmem:[%s9 + $0x8] sm:$0xff]
    %v3621 = vld [vmem:[%s9 + $0x10] sm:$0xff]
    %v3622 = vld [vmem:[%s9 + $0x18] sm:$0xff]
    %v3623 = vld [vmem:[%s9 + $0x20] sm:$0xff]
    %v3624 = vld [vmem:[%s9 + $0x28] sm:$0xff]
    %v3625 = vld [vmem:[%s9 + $0x30] sm:$0xff]
    %v3626 = vld [vmem:[%s9 + $0x38] sm:$0xff]
    %v3627 = vld [vmem:[%s9 + $0x40] sm:$0xff]
    %v3628 = vld [vmem:[%s9 + $0x48] sm:$0xff]
    %v3629 = vld [vmem:[%s9 + $0x50] sm:$0xff]
    %v3630 = vld [vmem:[%s9 + $0x58] sm:$0xff]
    %v3631 = vld [vmem:[%s9 + $0x60] sm:$0xff]
    %v3632 = vld [vmem:[%s9 + $0x68] sm:$0xff]
    %v3633 = vld [vmem:[%s9 + $0x70] sm:$0xff]
    %v3634 = vld [vmem:[%s9 + $0x78] sm:$0xff]
    %v3635 = vld [vmem:[%s9 + $0x80] sm:$0xff]
    %v3636 = vld [vmem:[%s9 + $0x88] sm:$0xff]
    %v3637 = vld [vmem:[%s9 + $0x90] sm:$0xff]
    %v3638 = vld [vmem:[%s9 + $0x98] sm:$0xff]
    %v3639 = vld [vmem:[%s9 + $0xa0] sm:$0xff]
    %v3640 = vld [vmem:[%s9 + $0xa8] sm:$0xff]
    %v3641 = vld [vmem:[%s9 + $0xb0] sm:$0xff]
    %v3642 = vld [vmem:[%s9 + $0xb8] sm:$0xff]
    %v3643 = vld [vmem:[%s9 + $0xc0] sm:$0xff]
    %v3644 = vld [vmem:[%s9 + $0xc8] sm:$0xff]
    %v3645 = vld [vmem:[%s9 + $0xd0] sm:$0xff]
    %v3646 = vld [vmem:[%s9 + $0xd8] sm:$0xff]
    %v3647 = vld [vmem:[%s9 + $0xe0] sm:$0xff]
    %v3648 = vld [vmem:[%s9 + $0xe8] sm:$0xff]
    %v3649 = vld [vmem:[%s9 + $0xf0] sm:$0xff]
    %v3650 = vld [vmem:[%s9 + $0xf8] sm:$0xff]
    %v3651 = vld [vmem:[%s9 + $0x100] sm:$0xff]
    %v3652 = vld [vmem:[%s9 + $0x108] sm:$0xff]
    %v3653 = vld [vmem:[%s9 + $0x110] sm:$0xff]
    %v3654 = vld [vmem:[%s9 + $0x118] sm:$0xff]
    %v3656 = vsel %vm3568, %v3609, 0
    %v3659 = vsel %vm3568, %v3612, 0
    %v3662 = vsel %vm3568, %v3615, 0
    %v3665 = vsel %vm3568, %v3618, 0
    %3667 = vmatprep.subr.mxu0 0.0
    %v3668 = vand.u32 %v3619, 4294901760
    %3669 = vmatpush1.msra.mxu0 %v3668
    %3670 = vmatprep.subr.mxu0 0.0
    %v3671 = vand.u32 %v3620, 4294901760
    %3672 = vmatpush1.msra.mxu0 %v3671
    %3673 = vmatprep.subr.mxu0 0.0
    %v3674 = vand.u32 %v3621, 4294901760
    %3675 = vmatpush1.msra.mxu0 %v3674
    %3676 = vmatprep.subr.mxu0 0.0
    %v3677 = vand.u32 %v3622, 4294901760
    %3678 = vmatpush1.msra.mxu0 %v3677
    %3679 = vmatprep.subr.mxu0 0.0
    %v3680 = vand.u32 %v3623, 4294901760
    %3681 = vmatpush1.msra.mxu0 %v3680
    %3682 = vmatprep.subr.mxu0 0.0
    %v3683 = vand.u32 %v3624, 4294901760
    %3684 = vmatpush1.msra.mxu0 %v3683
    %3685 = vmatprep.subr.mxu0 0.0
    %v3686 = vand.u32 %v3625, 4294901760
    %3687 = vmatpush1.msra.mxu0 %v3686
    %3688 = vmatprep.subr.mxu0 0.0
    %v3689 = vand.u32 %v3626, 4294901760
    %3690 = vmatpush1.msra.mxu0 %v3689
    %3691 = vmatprep.subr.mxu0 0.0
    %v3692 = vand.u32 %v3627, 4294901760
    %3693 = vmatpush1.msra.mxu0 %v3692
    %3694 = vmatprep.subr.mxu0 0.0
    %v3695 = vand.u32 %v3628, 4294901760
    %3696 = vmatpush1.msra.mxu0 %v3695
    %3697 = vmatprep.subr.mxu0 0.0
    %v3698 = vand.u32 %v3629, 4294901760
    %3699 = vmatpush1.msra.mxu0 %v3698
    %3700 = vmatprep.subr.mxu0 0.0
    %v3701 = vand.u32 %v3630, 4294901760
    %3702 = vmatpush1.msra.mxu0 %v3701
    %3703 = vmatprep.subr.mxu0 0.0
    %v3704 = vand.u32 %v3631, 4294901760
    %3705 = vmatpush1.msra.mxu0 %v3704
    %3706 = vmatprep.subr.mxu0 0.0
    %v3707 = vand.u32 %v3632, 4294901760
    %3708 = vmatpush1.msra.mxu0 %v3707
    %3709 = vmatprep.subr.mxu0 0.0
    %v3710 = vand.u32 %v3633, 4294901760
    %3711 = vmatpush1.msra.mxu0 %v3710
    %3712 = vmatprep.subr.mxu0 0.0
    %v3713 = vand.u32 %v3634, 4294901760
    %3714 = vmatpush1.msra.mxu0 %v3713
    %3715 = vmatprep.subr.mxu0 0.0
    %v3716 = vand.u32 %v3635, 4294901760
    %3717 = vmatpush1.msra.mxu0 %v3716
    %3718 = vmatprep.subr.mxu0 0.0
    %v3719 = vand.u32 %v3636, 4294901760
    %3720 = vmatpush1.msra.mxu0 %v3719
    %3721 = vmatprep.subr.mxu0 0.0
    %v3722 = vand.u32 %v3637, 4294901760
    %3723 = vmatpush1.msra.mxu0 %v3722
    %3724 = vmatprep.subr.mxu0 0.0
    %v3725 = vand.u32 %v3638, 4294901760
    %3726 = vmatpush1.msra.mxu0 %v3725
    %3727 = vmatprep.subr.mxu0 0.0
    %v3728 = vand.u32 %v3639, 4294901760
    %3729 = vmatpush1.msra.mxu0 %v3728
    %3730 = vmatprep.subr.mxu0 0.0
    %v3731 = vand.u32 %v3640, 4294901760
    %3732 = vmatpush1.msra.mxu0 %v3731
    %3733 = vmatprep.subr.mxu0 0.0
    %v3734 = vand.u32 %v3641, 4294901760
    %3735 = vmatpush1.msra.mxu0 %v3734
    %3736 = vmatprep.subr.mxu0 0.0
    %v3737 = vand.u32 %v3642, 4294901760
    %3738 = vmatpush1.msra.mxu0 %v3737
    %3739 = vmatprep.subr.mxu0 0.0
    %v3740 = vand.u32 %v3643, 4294901760
    %3741 = vmatpush1.msra.mxu0 %v3740
    %3742 = vmatprep.subr.mxu0 0.0
    %v3743 = vand.u32 %v3644, 4294901760
    %3744 = vmatpush1.msra.mxu0 %v3743
    %3745 = vmatprep.subr.mxu0 0.0
    %v3746 = vand.u32 %v3645, 4294901760
    %3747 = vmatpush1.msra.mxu0 %v3746
    %3748 = vmatprep.subr.mxu0 0.0
    %v3749 = vand.u32 %v3646, 4294901760
    %3750 = vmatpush1.msra.mxu0 %v3749
    %3751 = vmatprep.subr.mxu0 0.0
    %v3752 = vand.u32 %v3647, 4294901760
    %3753 = vmatpush1.msra.mxu0 %v3752
    %3754 = vmatprep.subr.mxu0 0.0
    %v3755 = vand.u32 %v3648, 4294901760
    %3756 = vmatpush1.msra.mxu0 %v3755
    %3757 = vmatprep.subr.mxu0 0.0
    %v3758 = vand.u32 %v3649, 4294901760
    %3759 = vmatpush1.msra.mxu0 %v3758
    %3760 = vmatprep.subr.mxu0 0.0
    %v3761 = vand.u32 %v3650, 4294901760
    %3762 = vmatpush1.msra.mxu0 %v3761
    %v3763 = vand.u32 %v3608, 4294901760
    %v3764 = vsub.f32 %v3608, %v3763
    %v3765 = vand.u32 %v3764, 4294901760
    %v3766 = vsub.f32 %v3764, %v3765
    %v3767 = vand.u32 %v3766, 4294901760
    %3768 = vmatprep.mubr.f32.mxu0 %v3767
    %v3769 = vand.u32 %v3607, 4294901760
    %v3770 = vsub.f32 %v3607, %v3769
    %v3771 = vand.u32 %v3770, 4294901760
    %v3772 = vsub.f32 %v3770, %v3771
    %v3773 = vand.u32 %v3772, 4294901760
    %3774 = vmatmul.mubr.f32.gmra.mrb[0].mxu0 %v3773
    %v3775 = vpop.f32.mrb[0].mxu0
    %v3776 = vadd.f32 0.0, %v3775
    %v3777 = vpop.f32.mrb[0].mxu0
    %v3778 = vand.u32 %v3611, 4294901760
    %v3779 = vsub.f32 %v3611, %v3778
    %v3780 = vand.u32 %v3779, 4294901760
    %v3781 = vsub.f32 %v3779, %v3780
    %v3782 = vand.u32 %v3781, 4294901760
    %3783 = vmatprep.mubr.f32.mxu0 %v3782
    %v3784 = vand.u32 %v3610, 4294901760
    %v3785 = vsub.f32 %v3610, %v3784
    %v3786 = vand.u32 %v3785, 4294901760
    %v3787 = vsub.f32 %v3785, %v3786
    %v3788 = vand.u32 %v3787, 4294901760
    %3789 = vmatmul.mubr.f32.gmra.mrb[0].mxu0 %v3788
    %v3790 = vpop.f32.mrb[0].mxu0
    %v3791 = vadd.f32 0.0, %v3790
    %v3792 = vpop.f32.mrb[0].mxu0
    %v3793 = vand.u32 %v3614, 4294901760
    %v3794 = vsub.f32 %v3614, %v3793
    %v3795 = vand.u32 %v3794, 4294901760
    %v3796 = vsub.f32 %v3794, %v3795
    %v3797 = vand.u32 %v3796, 4294901760
    %3798 = vmatprep.mubr.f32.mxu0 %v3797
    %v3799 = vand.u32 %v3613, 4294901760
    %v3800 = vsub.f32 %v3613, %v3799
    %v3801 = vand.u32 %v3800, 4294901760
    %v3802 = vsub.f32 %v3800, %v3801
    %v3803 = vand.u32 %v3802, 4294901760
    %3804 = vmatmul.mubr.f32.gmra.mrb[0].mxu0 %v3803
    %v3805 = vpop.f32.mrb[0].mxu0
    %v3806 = vadd.f32 0.0, %v3805
    %v3807 = vpop.f32.mrb[0].mxu0
    %v3808 = vand.u32 %v3617, 4294901760
    %v3809 = vsub.f32 %v3617, %v3808
    %v3810 = vand.u32 %v3809, 4294901760
    %v3811 = vsub.f32 %v3809, %v3810
    %v3812 = vand.u32 %v3811, 4294901760
    %3813 = vmatprep.mubr.f32.mxu0 %v3812
    %v3814 = vand.u32 %v3616, 4294901760
    %v3815 = vsub.f32 %v3616, %v3814
    %v3816 = vand.u32 %v3815, 4294901760
    %v3817 = vsub.f32 %v3815, %v3816
    %v3818 = vand.u32 %v3817, 4294901760
    %3819 = vmatmul.mubr.f32.gmra.mrb[0].mxu0 %v3818
    %v3820 = vpop.f32.mrb[0].mxu0
    %v3821 = vadd.f32 0.0, %v3820
    %v3822 = vpop.f32.mrb[0].mxu0
    %3823 = vdwg.mxu0
    %3824 = vmatprep.subr.mxu0 0.0
    %v3825 = vand.u32 %v3619, 4294901760
    %v3826 = vsub.f32 %v3619, %v3825
    %v3827 = vand.u32 %v3826, 4294901760
    %v3828 = vsub.f32 %v3826, %v3827
    %v3829 = vand.u32 %v3828, 4294901760
    %3830 = vmatpush1.msra.mxu0 %v3829
    %3831 = vmatprep.subr.mxu0 0.0
    %v3832 = vand.u32 %v3620, 4294901760
    %v3833 = vsub.f32 %v3620, %v3832
    %v3834 = vand.u32 %v3833, 4294901760
    %v3835 = vsub.f32 %v3833, %v3834
    %v3836 = vand.u32 %v3835, 4294901760
    %3837 = vmatpush1.msra.mxu0 %v3836
    %3838 = vmatprep.subr.mxu0 0.0
    %v3839 = vand.u32 %v3621, 4294901760
    %v3840 = vsub.f32 %v3621, %v3839
    %v3841 = vand.u32 %v3840, 4294901760
    %v3842 = vsub.f32 %v3840, %v3841
    %v3843 = vand.u32 %v3842, 4294901760
    %3844 = vmatpush1.msra.mxu0 %v3843
    %3845 = vmatprep.subr.mxu0 0.0
    %v3846 = vand.u32 %v3622, 4294901760
    %v3847 = vsub.f32 %v3622, %v3846
    %v3848 = vand.u32 %v3847, 4294901760
    %v3849 = vsub.f32 %v3847, %v3848
    %v3850 = vand.u32 %v3849, 4294901760
    %3851 = vmatpush1.msra.mxu0 %v3850
    %3852 = vmatprep.subr.mxu0 0.0
    %v3853 = vand.u32 %v3623, 4294901760
    %v3854 = vsub.f32 %v3623, %v3853
    %v3855 = vand.u32 %v3854, 4294901760
    %v3856 = vsub.f32 %v3854, %v3855
    %v3857 = vand.u32 %v3856, 4294901760
    %3858 = vmatpush1.msra.mxu0 %v3857
    %3859 = vmatprep.subr.mxu0 0.0
    %v3860 = vand.u32 %v3624, 4294901760
    %v3861 = vsub.f32 %v3624, %v3860
    %v3862 = vand.u32 %v3861, 4294901760
    %v3863 = vsub.f32 %v3861, %v3862
    %v3864 = vand.u32 %v3863, 4294901760
    %3865 = vmatpush1.msra.mxu0 %v3864
    %3866 = vmatprep.subr.mxu0 0.0
    %v3867 = vand.u32 %v3625, 4294901760
    %v3868 = vsub.f32 %v3625, %v3867
    %v3869 = vand.u32 %v3868, 4294901760
    %v3870 = vsub.f32 %v3868, %v3869
    %v3871 = vand.u32 %v3870, 4294901760
    %3872 = vmatpush1.msra.mxu0 %v3871
    %3873 = vmatprep.subr.mxu0 0.0
    %v3874 = vand.u32 %v3626, 4294901760
    %v3875 = vsub.f32 %v3626, %v3874
    %v3876 = vand.u32 %v3875, 4294901760
    %v3877 = vsub.f32 %v3875, %v3876
    %v3878 = vand.u32 %v3877, 4294901760
    %3879 = vmatpush1.msra.mxu0 %v3878
    %3880 = vmatprep.subr.mxu0 0.0
    %v3881 = vand.u32 %v3627, 4294901760
    %v3882 = vsub.f32 %v3627, %v3881
    %v3883 = vand.u32 %v3882, 4294901760
    %v3884 = vsub.f32 %v3882, %v3883
    %v3885 = vand.u32 %v3884, 4294901760
    %3886 = vmatpush1.msra.mxu0 %v3885
    %3887 = vmatprep.subr.mxu0 0.0
    %v3888 = vand.u32 %v3628, 4294901760
    %v3889 = vsub.f32 %v3628, %v3888
    %v3890 = vand.u32 %v3889, 4294901760
    %v3891 = vsub.f32 %v3889, %v3890
    %v3892 = vand.u32 %v3891, 4294901760
    %3893 = vmatpush1.msra.mxu0 %v3892
    %3894 = vmatprep.subr.mxu0 0.0
    %v3895 = vand.u32 %v3629, 4294901760
    %v3896 = vsub.f32 %v3629, %v3895
    %v3897 = vand.u32 %v3896, 4294901760
    %v3898 = vsub.f32 %v3896, %v3897
    %v3899 = vand.u32 %v3898, 4294901760
    %3900 = vmatpush1.msra.mxu0 %v3899
    %3901 = vmatprep.subr.mxu0 0.0
    %v3902 = vand.u32 %v3630, 4294901760
    %v3903 = vsub.f32 %v3630, %v3902
    %v3904 = vand.u32 %v3903, 4294901760
    %v3905 = vsub.f32 %v3903, %v3904
    %v3906 = vand.u32 %v3905, 4294901760
    %3907 = vmatpush1.msra.mxu0 %v3906
    %3908 = vmatprep.subr.mxu0 0.0
    %v3909 = vand.u32 %v3631, 4294901760
    %v3910 = vsub.f32 %v3631, %v3909
    %v3911 = vand.u32 %v3910, 4294901760
    %v3912 = vsub.f32 %v3910, %v3911
    %v3913 = vand.u32 %v3912, 4294901760
    %3914 = vmatpush1.msra.mxu0 %v3913
    %3915 = vmatprep.subr.mxu0 0.0
    %v3916 = vand.u32 %v3632, 4294901760
    %v3917 = vsub.f32 %v3632, %v3916
    %v3918 = vand.u32 %v3917, 4294901760
    %v3919 = vsub.f32 %v3917, %v3918
    %v3920 = vand.u32 %v3919, 4294901760
    %3921 = vmatpush1.msra.mxu0 %v3920
    %3922 = vmatprep.subr.mxu0 0.0
    %v3923 = vand.u32 %v3633, 4294901760
    %v3924 = vsub.f32 %v3633, %v3923
    %v3925 = vand.u32 %v3924, 4294901760
    %v3926 = vsub.f32 %v3924, %v3925
    %v3927 = vand.u32 %v3926, 4294901760
    %3928 = vmatpush1.msra.mxu0 %v3927
    %3929 = vmatprep.subr.mxu0 0.0
    %v3930 = vand.u32 %v3634, 4294901760
    %v3931 = vsub.f32 %v3634, %v3930
    %v3932 = vand.u32 %v3931, 4294901760
    %v3933 = vsub.f32 %v3931, %v3932
    %v3934 = vand.u32 %v3933, 4294901760
    %3935 = vmatpush1.msra.mxu0 %v3934
    %3936 = vmatprep.subr.mxu0 0.0
    %v3937 = vand.u32 %v3635, 4294901760
    %v3938 = vsub.f32 %v3635, %v3937
    %v3939 = vand.u32 %v3938, 4294901760
    %v3940 = vsub.f32 %v3938, %v3939
    %v3941 = vand.u32 %v3940, 4294901760
    %3942 = vmatpush1.msra.mxu0 %v3941
    %3943 = vmatprep.subr.mxu0 0.0
    %v3944 = vand.u32 %v3636, 4294901760
    %v3945 = vsub.f32 %v3636, %v3944
    %v3946 = vand.u32 %v3945, 4294901760
    %v3947 = vsub.f32 %v3945, %v3946
    %v3948 = vand.u32 %v3947, 4294901760
    %3949 = vmatpush1.msra.mxu0 %v3948
    %3950 = vmatprep.subr.mxu0 0.0
    %v3951 = vand.u32 %v3637, 4294901760
    %v3952 = vsub.f32 %v3637, %v3951
    %v3953 = vand.u32 %v3952, 4294901760
    %v3954 = vsub.f32 %v3952, %v3953
    %v3955 = vand.u32 %v3954, 4294901760
    %3956 = vmatpush1.msra.mxu0 %v3955
    %3957 = vmatprep.subr.mxu0 0.0
    %v3958 = vand.u32 %v3638, 4294901760
    %v3959 = vsub.f32 %v3638, %v3958
    %v3960 = vand.u32 %v3959, 4294901760
    %v3961 = vsub.f32 %v3959, %v3960
    %v3962 = vand.u32 %v3961, 4294901760
    %3963 = vmatpush1.msra.mxu0 %v3962
    %3964 = vmatprep.subr.mxu0 0.0
    %v3965 = vand.u32 %v3639, 4294901760
    %v3966 = vsub.f32 %v3639, %v3965
    %v3967 = vand.u32 %v3966, 4294901760
    %v3968 = vsub.f32 %v3966, %v3967
    %v3969 = vand.u32 %v3968, 4294901760
    %3970 = vmatpush1.msra.mxu0 %v3969
    %3971 = vmatprep.subr.mxu0 0.0
    %v3972 = vand.u32 %v3640, 4294901760
    %v3973 = vsub.f32 %v3640, %v3972
    %v3974 = vand.u32 %v3973, 4294901760
    %v3975 = vsub.f32 %v3973, %v3974
    %v3976 = vand.u32 %v3975, 4294901760
    %3977 = vmatpush1.msra.mxu0 %v3976
    %3978 = vmatprep.subr.mxu0 0.0
    %v3979 = vand.u32 %v3641, 4294901760
    %v3980 = vsub.f32 %v3641, %v3979
    %v3981 = vand.u32 %v3980, 4294901760
    %v3982 = vsub.f32 %v3980, %v3981
    %v3983 = vand.u32 %v3982, 4294901760
    %3984 = vmatpush1.msra.mxu0 %v3983
    %3985 = vmatprep.subr.mxu0 0.0
    %v3986 = vand.u32 %v3642, 4294901760
    %v3987 = vsub.f32 %v3642, %v3986
    %v3988 = vand.u32 %v3987, 4294901760
    %v3989 = vsub.f32 %v3987, %v3988
    %v3990 = vand.u32 %v3989, 4294901760
    %3991 = vmatpush1.msra.mxu0 %v3990
    %3992 = vmatprep.subr.mxu0 0.0
    %v3993 = vand.u32 %v3643, 4294901760
    %v3994 = vsub.f32 %v3643, %v3993
    %v3995 = vand.u32 %v3994, 4294901760
    %v3996 = vsub.f32 %v3994, %v3995
    %v3997 = vand.u32 %v3996, 4294901760
    %3998 = vmatpush1.msra.mxu0 %v3997
    %3999 = vmatprep.subr.mxu0 0.0
    %v4000 = vand.u32 %v3644, 4294901760
    %v4001 = vsub.f32 %v3644, %v4000
    %v4002 = vand.u32 %v4001, 4294901760
    %v4003 = vsub.f32 %v4001, %v4002
    %v4004 = vand.u32 %v4003, 4294901760
    %4005 = vmatpush1.msra.mxu0 %v4004
    %4006 = vmatprep.subr.mxu0 0.0
    %v4007 = vand.u32 %v3645, 4294901760
    %v4008 = vsub.f32 %v3645, %v4007
    %v4009 = vand.u32 %v4008, 4294901760
    %v4010 = vsub.f32 %v4008, %v4009
    %v4011 = vand.u32 %v4010, 4294901760
    %4012 = vmatpush1.msra.mxu0 %v4011
    %4013 = vmatprep.subr.mxu0 0.0
    %v4014 = vand.u32 %v3646, 4294901760
    %v4015 = vsub.f32 %v3646, %v4014
    %v4016 = vand.u32 %v4015, 4294901760
    %v4017 = vsub.f32 %v4015, %v4016
    %v4018 = vand.u32 %v4017, 4294901760
    %4019 = vmatpush1.msra.mxu0 %v4018
    %4020 = vmatprep.subr.mxu0 0.0
    %v4021 = vand.u32 %v3647, 4294901760
    %v4022 = vsub.f32 %v3647, %v4021
    %v4023 = vand.u32 %v4022, 4294901760
    %v4024 = vsub.f32 %v4022, %v4023
    %v4025 = vand.u32 %v4024, 4294901760
    %4026 = vmatpush1.msra.mxu0 %v4025
    %4027 = vmatprep.subr.mxu0 0.0
    %v4028 = vand.u32 %v3648, 4294901760
    %v4029 = vsub.f32 %v3648, %v4028
    %v4030 = vand.u32 %v4029, 4294901760
    %v4031 = vsub.f32 %v4029, %v4030
    %v4032 = vand.u32 %v4031, 4294901760
    %4033 = vmatpush1.msra.mxu0 %v4032
    %4034 = vmatprep.subr.mxu0 0.0
    %v4035 = vand.u32 %v3649, 4294901760
    %v4036 = vsub.f32 %v3649, %v4035
    %v4037 = vand.u32 %v4036, 4294901760
    %v4038 = vsub.f32 %v4036, %v4037
    %v4039 = vand.u32 %v4038, 4294901760
    %4040 = vmatpush1.msra.mxu0 %v4039
    %4041 = vmatprep.subr.mxu0 0.0
    %v4042 = vand.u32 %v3650, 4294901760
    %v4043 = vsub.f32 %v3650, %v4042
    %v4044 = vand.u32 %v4043, 4294901760
    %v4045 = vsub.f32 %v4043, %v4044
    %v4046 = vand.u32 %v4045, 4294901760
    %4047 = vmatpush1.msra.mxu0 %v4046
    %v4048 = vand.u32 %v3608, 4294901760
    %4049 = vmatprep.mubr.f32.mxu0 %v4048
    %v4050 = vand.u32 %v3607, 4294901760
    %4051 = vmatmul.mubr.f32.gmra.mrb[0].mxu0 %v4050
    %v4052 = vpop.f32.mrb[0].mxu0
    %v4053 = vadd.f32 %v3776, %v4052
    %v4054 = vpop.f32.mrb[0].mxu0
    %v4055 = vand.u32 %v3611, 4294901760
    %4056 = vmatprep.mubr.f32.mxu0 %v4055
    %v4057 = vand.u32 %v3610, 4294901760
    %4058 = vmatmul.mubr.f32.gmra.mrb[0].mxu0 %v4057
    %v4059 = vpop.f32.mrb[0].mxu0
    %v4060 = vadd.f32 %v3791, %v4059
    %v4061 = vpop.f32.mrb[0].mxu0
    %v4062 = vand.u32 %v3614, 4294901760
    %4063 = vmatprep.mubr.f32.mxu0 %v4062
    %v4064 = vand.u32 %v3613, 4294901760
    %4065 = vmatmul.mubr.f32.gmra.mrb[0].mxu0 %v4064
    %v4066 = vpop.f32.mrb[0].mxu0
    %v4067 = vadd.f32 %v3806, %v4066
    %v4068 = vpop.f32.mrb[0].mxu0
    %v4069 = vand.u32 %v3617, 4294901760
    %4070 = vmatprep.mubr.f32.mxu0 %v4069
    %v4071 = vand.u32 %v3616, 4294901760
    %4072 = vmatmul.mubr.f32.gmra.mrb[0].mxu0 %v4071
    %v4073 = vpop.f32.mrb[0].mxu0
    %v4074 = vadd.f32 %v3821, %v4073
    %v4075 = vpop.f32.mrb[0].mxu0
    %4076 = vdwg.mxu0
    %4077 = vmatprep.subr.mxu0 0.0
    %v4078 = vand.u32 %v3619, 4294901760
    %v4079 = vsub.f32 %v3619, %v4078
    %4080 = vmatpush1.msra.mxu0 %v4079
    %4081 = vmatprep.subr.mxu0 0.0
    %v4082 = vand.u32 %v3620, 4294901760
    %v4083 = vsub.f32 %v3620, %v4082
    %4084 = vmatpush1.msra.mxu0 %v4083
    %4085 = vmatprep.subr.mxu0 0.0
    %v4086 = vand.u32 %v3621, 4294901760
    %v4087 = vsub.f32 %v3621, %v4086
    %4088 = vmatpush1.msra.mxu0 %v4087
    %4089 = vmatprep.subr.mxu0 0.0
    %v4090 = vand.u32 %v3622, 4294901760
    %v4091 = vsub.f32 %v3622, %v4090
    %4092 = vmatpush1.msra.mxu0 %v4091
    %4093 = vmatprep.subr.mxu0 0.0
    %v4094 = vand.u32 %v3623, 4294901760
    %v4095 = vsub.f32 %v3623, %v4094
    %4096 = vmatpush1.msra.mxu0 %v4095
    %4097 = vmatprep.subr.mxu0 0.0
    %v4098 = vand.u32 %v3624, 4294901760
    %v4099 = vsub.f32 %v3624, %v4098
    %4100 = vmatpush1.msra.mxu0 %v4099
    %4101 = vmatprep.subr.mxu0 0.0
    %v4102 = vand.u32 %v3625, 4294901760
    %v4103 = vsub.f32 %v3625, %v4102
    %4104 = vmatpush1.msra.mxu0 %v4103
    %4105 = vmatprep.subr.mxu0 0.0
    %v4106 = vand.u32 %v3626, 4294901760
    %v4107 = vsub.f32 %v3626, %v4106
    %4108 = vmatpush1.msra.mxu0 %v4107
    %4109 = vmatprep.subr.mxu0 0.0
    %v4110 = vand.u32 %v3627, 4294901760
    %v4111 = vsub.f32 %v3627, %v4110
    %4112 = vmatpush1.msra.mxu0 %v4111
    %4113 = vmatprep.subr.mxu0 0.0
    %v4114 = vand.u32 %v3628, 4294901760
    %v4115 = vsub.f32 %v3628, %v4114
    %4116 = vmatpush1.msra.mxu0 %v4115
    %4117 = vmatprep.subr.mxu0 0.0
    %v4118 = vand.u32 %v3629, 4294901760
    %v4119 = vsub.f32 %v3629, %v4118
    %4120 = vmatpush1.msra.mxu0 %v4119
    %4121 = vmatprep.subr.mxu0 0.0
    %v4122 = vand.u32 %v3630, 4294901760
    %v4123 = vsub.f32 %v3630, %v4122
    %4124 = vmatpush1.msra.mxu0 %v4123
    %4125 = vmatprep.subr.mxu0 0.0
    %v4126 = vand.u32 %v3631, 4294901760
    %v4127 = vsub.f32 %v3631, %v4126
    %4128 = vmatpush1.msra.mxu0 %v4127
    %4129 = vmatprep.subr.mxu0 0.0
    %v4130 = vand.u32 %v3632, 4294901760
    %v4131 = vsub.f32 %v3632, %v4130
    %4132 = vmatpush1.msra.mxu0 %v4131
    %4133 = vmatprep.subr.mxu0 0.0
    %v4134 = vand.u32 %v3633, 4294901760
    %v4135 = vsub.f32 %v3633, %v4134
    %4136 = vmatpush1.msra.mxu0 %v4135
    %4137 = vmatprep.subr.mxu0 0.0
    %v4138 = vand.u32 %v3634, 4294901760
    %v4139 = vsub.f32 %v3634, %v4138
    %4140 = vmatpush1.msra.mxu0 %v4139
    %4141 = vmatprep.subr.mxu0 0.0
    %v4142 = vand.u32 %v3635, 4294901760
    %v4143 = vsub.f32 %v3635, %v4142
    %4144 = vmatpush1.msra.mxu0 %v4143
    %4145 = vmatprep.subr.mxu0 0.0
    %v4146 = vand.u32 %v3636, 4294901760
    %v4147 = vsub.f32 %v3636, %v4146
    %4148 = vmatpush1.msra.mxu0 %v4147
    %4149 = vmatprep.subr.mxu0 0.0
    %v4150 = vand.u32 %v3637, 4294901760
    %v4151 = vsub.f32 %v3637, %v4150
    %4152 = vmatpush1.msra.mxu0 %v4151
    %4153 = vmatprep.subr.mxu0 0.0
    %v4154 = vand.u32 %v3638, 4294901760
    %v4155 = vsub.f32 %v3638, %v4154
    %4156 = vmatpush1.msra.mxu0 %v4155
    %4157 = vmatprep.subr.mxu0 0.0
    %v4158 = vand.u32 %v3639, 4294901760
    %v4159 = vsub.f32 %v3639, %v4158
    %4160 = vmatpush1.msra.mxu0 %v4159
    %4161 = vmatprep.subr.mxu0 0.0
    %v4162 = vand.u32 %v3640, 4294901760
    %v4163 = vsub.f32 %v3640, %v4162
    %4164 = vmatpush1.msra.mxu0 %v4163
    %4165 = vmatprep.subr.mxu0 0.0
    %v4166 = vand.u32 %v3641, 4294901760
    %v4167 = vsub.f32 %v3641, %v4166
    %4168 = vmatpush1.msra.mxu0 %v4167
    %4169 = vmatprep.subr.mxu0 0.0
    %v4170 = vand.u32 %v3642, 4294901760
    %v4171 = vsub.f32 %v3642, %v4170
    %4172 = vmatpush1.msra.mxu0 %v4171
    %4173 = vmatprep.subr.mxu0 0.0
    %v4174 = vand.u32 %v3643, 4294901760
    %v4175 = vsub.f32 %v3643, %v4174
    %4176 = vmatpush1.msra.mxu0 %v4175
    %4177 = vmatprep.subr.mxu0 0.0
    %v4178 = vand.u32 %v3644, 4294901760
    %v4179 = vsub.f32 %v3644, %v4178
    %4180 = vmatpush1.msra.mxu0 %v4179
    %4181 = vmatprep.subr.mxu0 0.0
    %v4182 = vand.u32 %v3645, 4294901760
    %v4183 = vsub.f32 %v3645, %v4182
    %4184 = vmatpush1.msra.mxu0 %v4183
    %4185 = vmatprep.subr.mxu0 0.0
    %v4186 = vand.u32 %v3646, 4294901760
    %v4187 = vsub.f32 %v3646, %v4186
    %4188 = vmatpush1.msra.mxu0 %v4187
    %4189 = vmatprep.subr.mxu0 0.0
    %v4190 = vand.u32 %v3647, 4294901760
    %v4191 = vsub.f32 %v3647, %v4190
    %4192 = vmatpush1.msra.mxu0 %v4191
    %4193 = vmatprep.subr.mxu0 0.0
    %v4194 = vand.u32 %v3648, 4294901760
    %v4195 = vsub.f32 %v3648, %v4194
    %4196 = vmatpush1.msra.mxu0 %v4195
    %4197 = vmatprep.subr.mxu0 0.0
    %v4198 = vand.u32 %v3649, 4294901760
    %v4199 = vsub.f32 %v3649, %v4198
    %4200 = vmatpush1.msra.mxu0 %v4199
    %4201 = vmatprep.subr.mxu0 0.0
    %v4202 = vand.u32 %v3650, 4294901760
    %v4203 = vsub.f32 %v3650, %v4202
    %4204 = vmatpush1.msra.mxu0 %v4203
    %v4205 = vand.u32 %v3608, 4294901760
    %v4206 = vsub.f32 %v3608, %v4205
    %4207 = vmatprep.mubr.f32.mxu0 %v4206
    %v4208 = vand.u32 %v3607, 4294901760
    %v4209 = vsub.f32 %v3607, %v4208
    %4210 = vmatmul.mubr.f32.gmra.mrb[0].mxu0 %v4209
    %v4211 = vpop.f32.mrb[0].mxu0
    %v4212 = vadd.f32 %v4053, %v4211
    %v4213 = vpop.f32.mrb[0].mxu0
    %v4214 = vand.u32 %v3611, 4294901760
    %v4215 = vsub.f32 %v3611, %v4214
    %4216 = vmatprep.mubr.f32.mxu0 %v4215
    %v4217 = vand.u32 %v3610, 4294901760
    %v4218 = vsub.f32 %v3610, %v4217
    %4219 = vmatmul.mubr.f32.gmra.mrb[0].mxu0 %v4218
    %v4220 = vpop.f32.mrb[0].mxu0
    %v4221 = vadd.f32 %v4060, %v4220
    %v4222 = vpop.f32.mrb[0].mxu0
    %v4223 = vand.u32 %v3614, 4294901760
    %v4224 = vsub.f32 %v3614, %v4223
    %4225 = vmatprep.mubr.f32.mxu0 %v4224
    %v4226 = vand.u32 %v3613, 4294901760
    %v4227 = vsub.f32 %v3613, %v4226
    %4228 = vmatmul.mubr.f32.gmra.mrb[0].mxu0 %v4227
    %v4229 = vpop.f32.mrb[0].mxu0
    %v4230 = vadd.f32 %v4067, %v4229
    %v4231 = vpop.f32.mrb[0].mxu0
    %v4232 = vand.u32 %v3617, 4294901760
    %v4233 = vsub.f32 %v3617, %v4232
    %4234 = vmatprep.mubr.f32.mxu0 %v4233
    %v4235 = vand.u32 %v3616, 4294901760
    %v4236 = vsub.f32 %v3616, %v4235
    %4237 = vmatmul.mubr.f32.gmra.mrb[0].mxu0 %v4236
    %v4238 = vpop.f32.mrb[0].mxu0
    %v4239 = vadd.f32 %v4074, %v4238
    %v4240 = vpop.f32.mrb[0].mxu0
    %4241 = vdwg.mxu0
    %4242 = vmatprep.subr.mxu0 0.0
    %v4243 = vand.u32 %v3619, 4294901760
    %4244 = vmatpush1.msra.mxu0 %v4243
    %4245 = vmatprep.subr.mxu0 0.0
    %v4246 = vand.u32 %v3620, 4294901760
    %4247 = vmatpush1.msra.mxu0 %v4246
    %4248 = vmatprep.subr.mxu0 0.0
    %v4249 = vand.u32 %v3621, 4294901760
    %4250 = vmatpush1.msra.mxu0 %v4249
    %4251 = vmatprep.subr.mxu0 0.0
    %v4252 = vand.u32 %v3622, 4294901760
    %4253 = vmatpush1.msra.mxu0 %v4252
    %4254 = vmatprep.subr.mxu0 0.0
    %v4255 = vand.u32 %v3623, 4294901760
    %4256 = vmatpush1.msra.mxu0 %v4255
    %4257 = vmatprep.subr.mxu0 0.0
    %v4258 = vand.u32 %v3624, 4294901760
    %4259 = vmatpush1.msra.mxu0 %v4258
    %4260 = vmatprep.subr.mxu0 0.0
    %v4261 = vand.u32 %v3625, 4294901760
    %4262 = vmatpush1.msra.mxu0 %v4261
    %4263 = vmatprep.subr.mxu0 0.0
    %v4264 = vand.u32 %v3626, 4294901760
    %4265 = vmatpush1.msra.mxu0 %v4264
    %4266 = vmatprep.subr.mxu0 0.0
    %v4267 = vand.u32 %v3627, 4294901760
    %4268 = vmatpush1.msra.mxu0 %v4267
    %4269 = vmatprep.subr.mxu0 0.0
    %v4270 = vand.u32 %v3628, 4294901760
    %4271 = vmatpush1.msra.mxu0 %v4270
    %4272 = vmatprep.subr.mxu0 0.0
    %v4273 = vand.u32 %v3629, 4294901760
    %4274 = vmatpush1.msra.mxu0 %v4273
    %4275 = vmatprep.subr.mxu0 0.0
    %v4276 = vand.u32 %v3630, 4294901760
    %4277 = vmatpush1.msra.mxu0 %v4276
    %4278 = vmatprep.subr.mxu0 0.0
    %v4279 = vand.u32 %v3631, 4294901760
    %4280 = vmatpush1.msra.mxu0 %v4279
    %4281 = vmatprep.subr.mxu0 0.0
    %v4282 = vand.u32 %v3632, 4294901760
    %4283 = vmatpush1.msra.mxu0 %v4282
    %4284 = vmatprep.subr.mxu0 0.0
    %v4285 = vand.u32 %v3633, 4294901760
    %4286 = vmatpush1.msra.mxu0 %v4285
    %4287 = vmatprep.subr.mxu0 0.0
    %v4288 = vand.u32 %v3634, 4294901760
    %4289 = vmatpush1.msra.mxu0 %v4288
    %4290 = vmatprep.subr.mxu0 0.0
    %v4291 = vand.u32 %v3635, 4294901760
    %4292 = vmatpush1.msra.mxu0 %v4291
    %4293 = vmatprep.subr.mxu0 0.0
    %v4294 = vand.u32 %v3636, 4294901760
    %4295 = vmatpush1.msra.mxu0 %v4294
    %4296 = vmatprep.subr.mxu0 0.0
    %v4297 = vand.u32 %v3637, 4294901760
    %4298 = vmatpush1.msra.mxu0 %v4297
    %4299 = vmatprep.subr.mxu0 0.0
    %v4300 = vand.u32 %v3638, 4294901760
    %4301 = vmatpush1.msra.mxu0 %v4300
    %4302 = vmatprep.subr.mxu0 0.0
    %v4303 = vand.u32 %v3639, 4294901760
    %4304 = vmatpush1.msra.mxu0 %v4303
    %4305 = vmatprep.subr.mxu0 0.0
    %v4306 = vand.u32 %v3640, 4294901760
    %4307 = vmatpush1.msra.mxu0 %v4306
    %4308 = vmatprep.subr.mxu0 0.0
    %v4309 = vand.u32 %v3641, 4294901760
    %4310 = vmatpush1.msra.mxu0 %v4309
    %4311 = vmatprep.subr.mxu0 0.0
    %v4312 = vand.u32 %v3642, 4294901760
    %4313 = vmatpush1.msra.mxu0 %v4312
    %4314 = vmatprep.subr.mxu0 0.0
    %v4315 = vand.u32 %v3643, 4294901760
    %4316 = vmatpush1.msra.mxu0 %v4315
    %4317 = vmatprep.subr.mxu0 0.0
    %v4318 = vand.u32 %v3644, 4294901760
    %4319 = vmatpush1.msra.mxu0 %v4318
    %4320 = vmatprep.subr.mxu0 0.0
    %v4321 = vand.u32 %v3645, 4294901760
    %4322 = vmatpush1.msra.mxu0 %v4321
    %4323 = vmatprep.subr.mxu0 0.0
    %v4324 = vand.u32 %v3646, 4294901760
    %4325 = vmatpush1.msra.mxu0 %v4324
    %4326 = vmatprep.subr.mxu0 0.0
    %v4327 = vand.u32 %v3647, 4294901760
    %4328 = vmatpush1.msra.mxu0 %v4327
    %4329 = vmatprep.subr.mxu0 0.0
    %v4330 = vand.u32 %v3648, 4294901760
    %4331 = vmatpush1.msra.mxu0 %v4330
    %4332 = vmatprep.subr.mxu0 0.0
    %v4333 = vand.u32 %v3649, 4294901760
    %4334 = vmatpush1.msra.mxu0 %v4333
    %4335 = vmatprep.subr.mxu0 0.0
    %v4336 = vand.u32 %v3650, 4294901760
    %4337 = vmatpush1.msra.mxu0 %v4336
    %v4338 = vand.u32 %v3608, 4294901760
    %v4339 = vsub.f32 %v3608, %v4338
    %v4340 = vand.u32 %v4339, 4294901760
    %4341 = vmatprep.mubr.f32.mxu0 %v4340
    %v4342 = vand.u32 %v3607, 4294901760
    %v4343 = vsub.f32 %v3607, %v4342
    %v4344 = vand.u32 %v4343, 4294901760
    %4345 = vmatmul.mubr.f32.gmra.mrb[0].mxu0 %v4344
    %v4346 = vpop.f32.mrb[0].mxu0
    %v4347 = vadd.f32 %v4212, %v4346
    %v4348 = vpop.f32.mrb[0].mxu0
    %v4349 = vand.u32 %v3611, 4294901760
    %v4350 = vsub.f32 %v3611, %v4349
    %v4351 = vand.u32 %v4350, 4294901760
    %4352 = vmatprep.mubr.f32.mxu0 %v4351
    %v4353 = vand.u32 %v3610, 4294901760
    %v4354 = vsub.f32 %v3610, %v4353
    %v4355 = vand.u32 %v4354, 4294901760
    %4356 = vmatmul.mubr.f32.gmra.mrb[0].mxu0 %v4355
    %v4357 = vpop.f32.mrb[0].mxu0
    %v4358 = vadd.f32 %v4221, %v4357
    %v4359 = vpop.f32.mrb[0].mxu0
    %v4360 = vand.u32 %v3614, 4294901760
    %v4361 = vsub.f32 %v3614, %v4360
    %v4362 = vand.u32 %v4361, 4294901760
    %4363 = vmatprep.mubr.f32.mxu0 %v4362
    %v4364 = vand.u32 %v3613, 4294901760
    %v4365 = vsub.f32 %v3613, %v4364
    %v4366 = vand.u32 %v4365, 4294901760
    %4367 = vmatmul.mubr.f32.gmra.mrb[0].mxu0 %v4366
    %v4368 = vpop.f32.mrb[0].mxu0
    %v4369 = vadd.f32 %v4230, %v4368
    %v4370 = vpop.f32.mrb[0].mxu0
    %v4371 = vand.u32 %v3617, 4294901760
    %v4372 = vsub.f32 %v3617, %v4371
    %v4373 = vand.u32 %v4372, 4294901760
    %4374 = vmatprep.mubr.f32.mxu0 %v4373
    %v4375 = vand.u32 %v3616, 4294901760
    %v4376 = vsub.f32 %v3616, %v4375
    %v4377 = vand.u32 %v4376, 4294901760
    %4378 = vmatmul.mubr.f32.gmra.mrb[0].mxu0 %v4377
    %v4379 = vpop.f32.mrb[0].mxu0
    %v4380 = vadd.f32 %v4239, %v4379
    %v4381 = vpop.f32.mrb[0].mxu0
    %4382 = vdwg.mxu0
    %4383 = vmatprep.subr.mxu0 0.0
    %v4384 = vand.u32 %v3619, 4294901760
    %v4385 = vsub.f32 %v3619, %v4384
    %v4386 = vand.u32 %v4385, 4294901760
    %4387 = vmatpush1.msra.mxu0 %v4386
    %4388 = vmatprep.subr.mxu0 0.0
    %v4389 = vand.u32 %v3620, 4294901760
    %v4390 = vsub.f32 %v3620, %v4389
    %v4391 = vand.u32 %v4390, 4294901760
    %4392 = vmatpush1.msra.mxu0 %v4391
    %4393 = vmatprep.subr.mxu0 0.0
    %v4394 = vand.u32 %v3621, 4294901760
    %v4395 = vsub.f32 %v3621, %v4394
    %v4396 = vand.u32 %v4395, 4294901760
    %4397 = vmatpush1.msra.mxu0 %v4396
    %4398 = vmatprep.subr.mxu0 0.0
    %v4399 = vand.u32 %v3622, 4294901760
    %v4400 = vsub.f32 %v3622, %v4399
    %v4401 = vand.u32 %v4400, 4294901760
    %4402 = vmatpush1.msra.mxu0 %v4401
    %4403 = vmatprep.subr.mxu0 0.0
    %v4404 = vand.u32 %v3623, 4294901760
    %v4405 = vsub.f32 %v3623, %v4404
    %v4406 = vand.u32 %v4405, 4294901760
    %4407 = vmatpush1.msra.mxu0 %v4406
    %4408 = vmatprep.subr.mxu0 0.0
    %v4409 = vand.u32 %v3624, 4294901760
    %v4410 = vsub.f32 %v3624, %v4409
    %v4411 = vand.u32 %v4410, 4294901760
    %4412 = vmatpush1.msra.mxu0 %v4411
    %4413 = vmatprep.subr.mxu0 0.0
    %v4414 = vand.u32 %v3625, 4294901760
    %v4415 = vsub.f32 %v3625, %v4414
    %v4416 = vand.u32 %v4415, 4294901760
    %4417 = vmatpush1.msra.mxu0 %v4416
    %4418 = vmatprep.subr.mxu0 0.0
    %v4419 = vand.u32 %v3626, 4294901760
    %v4420 = vsub.f32 %v3626, %v4419
    %v4421 = vand.u32 %v4420, 4294901760
    %4422 = vmatpush1.msra.mxu0 %v4421
    %4423 = vmatprep.subr.mxu0 0.0
    %v4424 = vand.u32 %v3627, 4294901760
    %v4425 = vsub.f32 %v3627, %v4424
    %v4426 = vand.u32 %v4425, 4294901760
    %4427 = vmatpush1.msra.mxu0 %v4426
    %4428 = vmatprep.subr.mxu0 0.0
    %v4429 = vand.u32 %v3628, 4294901760
    %v4430 = vsub.f32 %v3628, %v4429
    %v4431 = vand.u32 %v4430, 4294901760
    %4432 = vmatpush1.msra.mxu0 %v4431
    %4433 = vmatprep.subr.mxu0 0.0
    %v4434 = vand.u32 %v3629, 4294901760
    %v4435 = vsub.f32 %v3629, %v4434
    %v4436 = vand.u32 %v4435, 4294901760
    %4437 = vmatpush1.msra.mxu0 %v4436
    %4438 = vmatprep.subr.mxu0 0.0
    %v4439 = vand.u32 %v3630, 4294901760
    %v4440 = vsub.f32 %v3630, %v4439
    %v4441 = vand.u32 %v4440, 4294901760
    %4442 = vmatpush1.msra.mxu0 %v4441
    %4443 = vmatprep.subr.mxu0 0.0
    %v4444 = vand.u32 %v3631, 4294901760
    %v4445 = vsub.f32 %v3631, %v4444
    %v4446 = vand.u32 %v4445, 4294901760
    %4447 = vmatpush1.msra.mxu0 %v4446
    %4448 = vmatprep.subr.mxu0 0.0
    %v4449 = vand.u32 %v3632, 4294901760
    %v4450 = vsub.f32 %v3632, %v4449
    %v4451 = vand.u32 %v4450, 4294901760
    %4452 = vmatpush1.msra.mxu0 %v4451
    %4453 = vmatprep.subr.mxu0 0.0
    %v4454 = vand.u32 %v3633, 4294901760
    %v4455 = vsub.f32 %v3633, %v4454
    %v4456 = vand.u32 %v4455, 4294901760
    %4457 = vmatpush1.msra.mxu0 %v4456
    %4458 = vmatprep.subr.mxu0 0.0
    %v4459 = vand.u32 %v3634, 4294901760
    %v4460 = vsub.f32 %v3634, %v4459
    %v4461 = vand.u32 %v4460, 4294901760
    %4462 = vmatpush1.msra.mxu0 %v4461
    %4463 = vmatprep.subr.mxu0 0.0
    %v4464 = vand.u32 %v3635, 4294901760
    %v4465 = vsub.f32 %v3635, %v4464
    %v4466 = vand.u32 %v4465, 4294901760
    %4467 = vmatpush1.msra.mxu0 %v4466
    %4468 = vmatprep.subr.mxu0 0.0
    %v4469 = vand.u32 %v3636, 4294901760
    %v4470 = vsub.f32 %v3636, %v4469
    %v4471 = vand.u32 %v4470, 4294901760
    %4472 = vmatpush1.msra.mxu0 %v4471
    %4473 = vmatprep.subr.mxu0 0.0
    %v4474 = vand.u32 %v3637, 4294901760
    %v4475 = vsub.f32 %v3637, %v4474
    %v4476 = vand.u32 %v4475, 4294901760
    %4477 = vmatpush1.msra.mxu0 %v4476
    %4478 = vmatprep.subr.mxu0 0.0
    %v4479 = vand.u32 %v3638, 4294901760
    %v4480 = vsub.f32 %v3638, %v4479
    %v4481 = vand.u32 %v4480, 4294901760
    %4482 = vmatpush1.msra.mxu0 %v4481
    %4483 = vmatprep.subr.mxu0 0.0
    %v4484 = vand.u32 %v3639, 4294901760
    %v4485 = vsub.f32 %v3639, %v4484
    %v4486 = vand.u32 %v4485, 4294901760
    %4487 = vmatpush1.msra.mxu0 %v4486
    %4488 = vmatprep.subr.mxu0 0.0
    %v4489 = vand.u32 %v3640, 4294901760
    %v4490 = vsub.f32 %v3640, %v4489
    %v4491 = vand.u32 %v4490, 4294901760
    %4492 = vmatpush1.msra.mxu0 %v4491
    %4493 = vmatprep.subr.mxu0 0.0
    %v4494 = vand.u32 %v3641, 4294901760
    %v4495 = vsub.f32 %v3641, %v4494
    %v4496 = vand.u32 %v4495, 4294901760
    %4497 = vmatpush1.msra.mxu0 %v4496
    %4498 = vmatprep.subr.mxu0 0.0
    %v4499 = vand.u32 %v3642, 4294901760
    %v4500 = vsub.f32 %v3642, %v4499
    %v4501 = vand.u32 %v4500, 4294901760
    %4502 = vmatpush1.msra.mxu0 %v4501
    %4503 = vmatprep.subr.mxu0 0.0
    %v4504 = vand.u32 %v3643, 4294901760
    %v4505 = vsub.f32 %v3643, %v4504
    %v4506 = vand.u32 %v4505, 4294901760
    %4507 = vmatpush1.msra.mxu0 %v4506
    %4508 = vmatprep.subr.mxu0 0.0
    %v4509 = vand.u32 %v3644, 4294901760
    %v4510 = vsub.f32 %v3644, %v4509
    %v4511 = vand.u32 %v4510, 4294901760
    %4512 = vmatpush1.msra.mxu0 %v4511
    %4513 = vmatprep.subr.mxu0 0.0
    %v4514 = vand.u32 %v3645, 4294901760
    %v4515 = vsub.f32 %v3645, %v4514
    %v4516 = vand.u32 %v4515, 4294901760
    %4517 = vmatpush1.msra.mxu0 %v4516
    %4518 = vmatprep.subr.mxu0 0.0
    %v4519 = vand.u32 %v3646, 4294901760
    %v4520 = vsub.f32 %v3646, %v4519
    %v4521 = vand.u32 %v4520, 4294901760
    %4522 = vmatpush1.msra.mxu0 %v4521
    %4523 = vmatprep.subr.mxu0 0.0
    %v4524 = vand.u32 %v3647, 4294901760
    %v4525 = vsub.f32 %v3647, %v4524
    %v4526 = vand.u32 %v4525, 4294901760
    %4527 = vmatpush1.msra.mxu0 %v4526
    %4528 = vmatprep.subr.mxu0 0.0
    %v4529 = vand.u32 %v3648, 4294901760
    %v4530 = vsub.f32 %v3648, %v4529
    %v4531 = vand.u32 %v4530, 4294901760
    %4532 = vmatpush1.msra.mxu0 %v4531
    %4533 = vmatprep.subr.mxu0 0.0
    %v4534 = vand.u32 %v3649, 4294901760
    %v4535 = vsub.f32 %v3649, %v4534
    %v4536 = vand.u32 %v4535, 4294901760
    %4537 = vmatpush1.msra.mxu0 %v4536
    %4538 = vmatprep.subr.mxu0 0.0
    %v4539 = vand.u32 %v3650, 4294901760
    %v4540 = vsub.f32 %v3650, %v4539
    %v4541 = vand.u32 %v4540, 4294901760
    %4542 = vmatpush1.msra.mxu0 %v4541
    %v4543 = vand.u32 %v3608, 4294901760
    %4544 = vmatprep.mubr.f32.mxu0 %v4543
    %v4545 = vand.u32 %v3607, 4294901760
    %4546 = vmatmul.mubr.f32.gmra.mrb[0].mxu0 %v4545
    %v4547 = vpop.f32.mrb[0].mxu0
    %v4548 = vadd.f32 %v4347, %v4547
    %v4549 = vpop.f32.mrb[0].mxu0
    %v4550 = vand.u32 %v3611, 4294901760
    %4551 = vmatprep.mubr.f32.mxu0 %v4550
    %v4552 = vand.u32 %v3610, 4294901760
    %4553 = vmatmul.mubr.f32.gmra.mrb[0].mxu0 %v4552
    %v4554 = vpop.f32.mrb[0].mxu0
    %v4555 = vadd.f32 %v4358, %v4554
    %v4556 = vpop.f32.mrb[0].mxu0
    %v4557 = vand.u32 %v3614, 4294901760
    %4558 = vmatprep.mubr.f32.mxu0 %v4557
    %v4559 = vand.u32 %v3613, 4294901760
    %4560 = vmatmul.mubr.f32.gmra.mrb[0].mxu0 %v4559
    %v4561 = vpop.f32.mrb[0].mxu0
    %v4562 = vadd.f32 %v4369, %v4561
    %v4563 = vpop.f32.mrb[0].mxu0
    %v4564 = vand.u32 %v3617, 4294901760
    %4565 = vmatprep.mubr.f32.mxu0 %v4564
    %v4566 = vand.u32 %v3616, 4294901760
    %4567 = vmatmul.mubr.f32.gmra.mrb[0].mxu0 %v4566
    %v4568 = vpop.f32.mrb[0].mxu0
    %v4569 = vadd.f32 %v4380, %v4568
    %v4570 = vpop.f32.mrb[0].mxu0
    %4571 = vdwg.mxu0
    %4572 = vmatprep.subr.mxu0 0.0
    %v4573 = vand.u32 %v3619, 4294901760
    %4574 = vmatpush1.msra.mxu0 %v4573
    %4575 = vmatprep.subr.mxu0 0.0
    %v4576 = vand.u32 %v3620, 4294901760
    %4577 = vmatpush1.msra.mxu0 %v4576
    %4578 = vmatprep.subr.mxu0 0.0
    %v4579 = vand.u32 %v3621, 4294901760
    %4580 = vmatpush1.msra.mxu0 %v4579
    %4581 = vmatprep.subr.mxu0 0.0
    %v4582 = vand.u32 %v3622, 4294901760
    %4583 = vmatpush1.msra.mxu0 %v4582
    %4584 = vmatprep.subr.mxu0 0.0
    %v4585 = vand.u32 %v3623, 4294901760
    %4586 = vmatpush1.msra.mxu0 %v4585
    %4587 = vmatprep.subr.mxu0 0.0
    %v4588 = vand.u32 %v3624, 4294901760
    %4589 = vmatpush1.msra.mxu0 %v4588
    %4590 = vmatprep.subr.mxu0 0.0
    %v4591 = vand.u32 %v3625, 4294901760
    %4592 = vmatpush1.msra.mxu0 %v4591
    %4593 = vmatprep.subr.mxu0 0.0
    %v4594 = vand.u32 %v3626, 4294901760
    %4595 = vmatpush1.msra.mxu0 %v4594
    %4596 = vmatprep.subr.mxu0 0.0
    %v4597 = vand.u32 %v3627, 4294901760
    %4598 = vmatpush1.msra.mxu0 %v4597
    %4599 = vmatprep.subr.mxu0 0.0
    %v4600 = vand.u32 %v3628, 4294901760
    %4601 = vmatpush1.msra.mxu0 %v4600
    %4602 = vmatprep.subr.mxu0 0.0
    %v4603 = vand.u32 %v3629, 4294901760
    %4604 = vmatpush1.msra.mxu0 %v4603
    %4605 = vmatprep.subr.mxu0 0.0
    %v4606 = vand.u32 %v3630, 4294901760
    %4607 = vmatpush1.msra.mxu0 %v4606
    %4608 = vmatprep.subr.mxu0 0.0
    %v4609 = vand.u32 %v3631, 4294901760
    %4610 = vmatpush1.msra.mxu0 %v4609
    %4611 = vmatprep.subr.mxu0 0.0
    %v4612 = vand.u32 %v3632, 4294901760
    %4613 = vmatpush1.msra.mxu0 %v4612
    %4614 = vmatprep.subr.mxu0 0.0
    %v4615 = vand.u32 %v3633, 4294901760
    %4616 = vmatpush1.msra.mxu0 %v4615
    %4617 = vmatprep.subr.mxu0 0.0
    %v4618 = vand.u32 %v3634, 4294901760
    %4619 = vmatpush1.msra.mxu0 %v4618
    %4620 = vmatprep.subr.mxu0 0.0
    %v4621 = vand.u32 %v3635, 4294901760
    %4622 = vmatpush1.msra.mxu0 %v4621
    %4623 = vmatprep.subr.mxu0 0.0
    %v4624 = vand.u32 %v3636, 4294901760
    %4625 = vmatpush1.msra.mxu0 %v4624
    %4626 = vmatprep.subr.mxu0 0.0
    %v4627 = vand.u32 %v3637, 4294901760
    %4628 = vmatpush1.msra.mxu0 %v4627
    %4629 = vmatprep.subr.mxu0 0.0
    %v4630 = vand.u32 %v3638, 4294901760
    %4631 = vmatpush1.msra.mxu0 %v4630
    %4632 = vmatprep.subr.mxu0 0.0
    %v4633 = vand.u32 %v3639, 4294901760
    %4634 = vmatpush1.msra.mxu0 %v4633
    %4635 = vmatprep.subr.mxu0 0.0
    %v4636 = vand.u32 %v3640, 4294901760
    %4637 = vmatpush1.msra.mxu0 %v4636
    %4638 = vmatprep.subr.mxu0 0.0
    %v4639 = vand.u32 %v3641, 4294901760
    %4640 = vmatpush1.msra.mxu0 %v4639
    %4641 = vmatprep.subr.mxu0 0.0
    %v4642 = vand.u32 %v3642, 4294901760
    %4643 = vmatpush1.msra.mxu0 %v4642
    %4644 = vmatprep.subr.mxu0 0.0
    %v4645 = vand.u32 %v3643, 4294901760
    %4646 = vmatpush1.msra.mxu0 %v4645
    %4647 = vmatprep.subr.mxu0 0.0
    %v4648 = vand.u32 %v3644, 4294901760
    %4649 = vmatpush1.msra.mxu0 %v4648
    %4650 = vmatprep.subr.mxu0 0.0
    %v4651 = vand.u32 %v3645, 4294901760
    %4652 = vmatpush1.msra.mxu0 %v4651
    %4653 = vmatprep.subr.mxu0 0.0
    %v4654 = vand.u32 %v3646, 4294901760
    %4655 = vmatpush1.msra.mxu0 %v4654
    %4656 = vmatprep.subr.mxu0 0.0
    %v4657 = vand.u32 %v3647, 4294901760
    %4658 = vmatpush1.msra.mxu0 %v4657
    %4659 = vmatprep.subr.mxu0 0.0
    %v4660 = vand.u32 %v3648, 4294901760
    %4661 = vmatpush1.msra.mxu0 %v4660
    %4662 = vmatprep.subr.mxu0 0.0
    %v4663 = vand.u32 %v3649, 4294901760
    %4664 = vmatpush1.msra.mxu0 %v4663
    %4665 = vmatprep.subr.mxu0 0.0
    %v4666 = vand.u32 %v3650, 4294901760
    %4667 = vmatpush1.msra.mxu0 %v4666
    %v4668 = vand.u32 %v3608, 4294901760
    %4669 = vmatprep.mubr.f32.mxu0 %v4668
    %v4670 = vand.u32 %v3607, 4294901760
    %4671 = vmatmul.mubr.f32.gmra.mrb[0].mxu0 %v4670
    %v4672 = vpop.f32.mrb[0].mxu0
    %v4673 = vadd.f32 %v4548, %v4672
    %v4674 = vpop.f32.mrb[0].mxu0
    %v4675 = vand.u32 %v3611, 4294901760
    %4676 = vmatprep.mubr.f32.mxu0 %v4675
    %v4677 = vand.u32 %v3610, 4294901760
    %4678 = vmatmul.mubr.f32.gmra.mrb[0].mxu0 %v4677
    %v4679 = vpop.f32.mrb[0].mxu0
    %v4680 = vadd.f32 %v4555, %v4679
    %v4681 = vpop.f32.mrb[0].mxu0
    %v4682 = vand.u32 %v3614, 4294901760
    %4683 = vmatprep.mubr.f32.mxu0 %v4682
    %v4684 = vand.u32 %v3613, 4294901760
    %4685 = vmatmul.mubr.f32.gmra.mrb[0].mxu0 %v4684
    %v4686 = vpop.f32.mrb[0].mxu0
    %v4687 = vadd.f32 %v4562, %v4686
    %v4688 = vpop.f32.mrb[0].mxu0
    %v4689 = vand.u32 %v3617, 4294901760
    %4690 = vmatprep.mubr.f32.mxu0 %v4689
    %v4691 = vand.u32 %v3616, 4294901760
    %4692 = vmatmul.mubr.f32.gmra.mrb[0].mxu0 %v4691
    %v4693 = vpop.f32.mrb[0].mxu0
    %v4694 = vadd.f32 %v4569, %v4693
    %v4695 = vpop.f32.mrb[0].mxu0
    %4696 = vdwg.mxu0
    %4697 = vmatprep.subr.mxu0 0.0
    %v4698 = vand.u32 %v3651, 4294901760
    %4699 = vmatpush1.msra.mxu0 %v4698
    %4700 = vmatprep.subr.mxu0 0.0
    %v4701 = vand.u32 %v3652, 4294901760
    %4702 = vmatpush1.msra.mxu0 %v4701
    %4703 = vmatprep.subr.mxu0 0.0
    %v4704 = vand.u32 %v3653, 4294901760
    %4705 = vmatpush1.msra.mxu0 %v4704
    %4706 = vmatprep.subr.mxu0 0.0
    %v4707 = vand.u32 %v3654, 4294901760
    %4708 = vmatpush1.msra.mxu0 %v4707
    %4709 = vmatprep.subr.mxu0 0.0
    %4710 = vmatpush1.msra.mxu0 0.0
    %4711 = vmatprep.subr.mxu0 0.0
    %4712 = vmatpush1.msra.mxu0 0.0
    %4713 = vmatprep.subr.mxu0 0.0
    %4714 = vmatpush1.msra.mxu0 0.0
    %4715 = vmatprep.subr.mxu0 0.0
    %4716 = vmatpush1.msra.mxu0 0.0
    %4717 = vmatprep.subr.mxu0 0.0
    %4718 = vmatpush1.msra.mxu0 0.0
    %4719 = vmatprep.subr.mxu0 0.0
    %4720 = vmatpush1.msra.mxu0 0.0
    %4721 = vmatprep.subr.mxu0 0.0
    %4722 = vmatpush1.msra.mxu0 0.0
    %4723 = vmatprep.subr.mxu0 0.0
    %4724 = vmatpush1.msra.mxu0 0.0
    %4725 = vmatprep.subr.mxu0 0.0
    %4726 = vmatpush1.msra.mxu0 0.0
    %4727 = vmatprep.subr.mxu0 0.0
    %4728 = vmatpush1.msra.mxu0 0.0
    %4729 = vmatprep.subr.mxu0 0.0
    %4730 = vmatpush1.msra.mxu0 0.0
    %4731 = vmatprep.subr.mxu0 0.0
    %4732 = vmatpush1.msra.mxu0 0.0
    %4733 = vmatprep.subr.mxu0 0.0
    %4734 = vmatpush1.msra.mxu0 0.0
    %4735 = vmatprep.subr.mxu0 0.0
    %4736 = vmatpush1.msra.mxu0 0.0
    %4737 = vmatprep.subr.mxu0 0.0
    %4738 = vmatpush1.msra.mxu0 0.0
    %4739 = vmatprep.subr.mxu0 0.0
    %4740 = vmatpush1.msra.mxu0 0.0
    %4741 = vmatprep.subr.mxu0 0.0
    %4742 = vmatpush1.msra.mxu0 0.0
    %4743 = vmatprep.subr.mxu0 0.0
    %4744 = vmatpush1.msra.mxu0 0.0
    %4745 = vmatprep.subr.mxu0 0.0
    %4746 = vmatpush1.msra.mxu0 0.0
    %4747 = vmatprep.subr.mxu0 0.0
    %4748 = vmatpush1.msra.mxu0 0.0
    %4749 = vmatprep.subr.mxu0 0.0
    %4750 = vmatpush1.msra.mxu0 0.0
    %4751 = vmatprep.subr.mxu0 0.0
    %4752 = vmatpush1.msra.mxu0 0.0
    %4753 = vmatprep.subr.mxu0 0.0
    %4754 = vmatpush1.msra.mxu0 0.0
    %4755 = vmatprep.subr.mxu0 0.0
    %4756 = vmatpush1.msra.mxu0 0.0
    %4757 = vmatprep.subr.mxu0 0.0
    %4758 = vmatpush1.msra.mxu0 0.0
    %4759 = vmatprep.subr.mxu0 0.0
    %4760 = vmatpush1.msra.mxu0 0.0
    %4761 = vmatprep.subr.mxu0 0.0
    %4762 = vmatpush1.msra.mxu0 0.0
    %4763 = vmatprep.subr.mxu0 0.0
    %4764 = vmatpush1.msra.mxu0 0.0
    %4765 = vmatprep.mubr.f32.mxu0 0.0
    %v4766 = vand.u32 %v3656, 4294901760
    %v4767 = vsub.f32 %v3656, %v4766
    %v4768 = vand.u32 %v4767, 4294901760
    %v4769 = vsub.f32 %v4767, %v4768
    %v4770 = vand.u32 %v4769, 4294901760
    %4771 = vmatmul.mubr.f32.gmra.mrb[0].mxu0 %v4770
    %v4772 = vpop.f32.mrb[0].mxu0
    %v4773 = vadd.f32 %v4673, %v4772
    %v4774 = vpop.f32.mrb[0].mxu0
    %4775 = vmatprep.mubr.f32.mxu0 0.0
    %v4776 = vand.u32 %v3659, 4294901760
    %v4777 = vsub.f32 %v3659, %v4776
    %v4778 = vand.u32 %v4777, 4294901760
    %v4779 = vsub.f32 %v4777, %v4778
    %v4780 = vand.u32 %v4779, 4294901760
    %4781 = vmatmul.mubr.f32.gmra.mrb[0].mxu0 %v4780
    %v4782 = vpop.f32.mrb[0].mxu0
    %v4783 = vadd.f32 %v4680, %v4782
    %v4784 = vpop.f32.mrb[0].mxu0
    %4785 = vmatprep.mubr.f32.mxu0 0.0
    %v4786 = vand.u32 %v3662, 4294901760
    %v4787 = vsub.f32 %v3662, %v4786
    %v4788 = vand.u32 %v4787, 4294901760
    %v4789 = vsub.f32 %v4787, %v4788
    %v4790 = vand.u32 %v4789, 4294901760
    %4791 = vmatmul.mubr.f32.gmra.mrb[0].mxu0 %v4790
    %v4792 = vpop.f32.mrb[0].mxu0
    %v4793 = vadd.f32 %v4687, %v4792
    %v4794 = vpop.f32.mrb[0].mxu0
    %4795 = vmatprep.mubr.f32.mxu0 0.0
    %v4796 = vand.u32 %v3665, 4294901760
    %v4797 = vsub.f32 %v3665, %v4796
    %v4798 = vand.u32 %v4797, 4294901760
    %v4799 = vsub.f32 %v4797, %v4798
    %v4800 = vand.u32 %v4799, 4294901760
    %4801 = vmatmul.mubr.f32.gmra.mrb[0].mxu0 %v4800
    %v4802 = vpop.f32.mrb[0].mxu0
    %v4803 = vadd.f32 %v4694, %v4802
    %v4804 = vpop.f32.mrb[0].mxu0
    %4805 = vdwg.mxu0
    %4806 = vmatprep.subr.mxu0 0.0
    %v4807 = vand.u32 %v3651, 4294901760
    %v4808 = vsub.f32 %v3651, %v4807
    %v4809 = vand.u32 %v4808, 4294901760
    %v4810 = vsub.f32 %v4808, %v4809
    %v4811 = vand.u32 %v4810, 4294901760
    %4812 = vmatpush1.msra.mxu0 %v4811
    %4813 = vmatprep.subr.mxu0 0.0
    %v4814 = vand.u32 %v3652, 4294901760
    %v4815 = vsub.f32 %v3652, %v4814
    %v4816 = vand.u32 %v4815, 4294901760
    %v4817 = vsub.f32 %v4815, %v4816
    %v4818 = vand.u32 %v4817, 4294901760
    %4819 = vmatpush1.msra.mxu0 %v4818
    %4820 = vmatprep.subr.mxu0 0.0
    %v4821 = vand.u32 %v3653, 4294901760
    %v4822 = vsub.f32 %v3653, %v4821
    %v4823 = vand.u32 %v4822, 4294901760
    %v4824 = vsub.f32 %v4822, %v4823
    %v4825 = vand.u32 %v4824, 4294901760
    %4826 = vmatpush1.msra.mxu0 %v4825
    %4827 = vmatprep.subr.mxu0 0.0
    %v4828 = vand.u32 %v3654, 4294901760
    %v4829 = vsub.f32 %v3654, %v4828
    %v4830 = vand.u32 %v4829, 4294901760
    %v4831 = vsub.f32 %v4829, %v4830
    %v4832 = vand.u32 %v4831, 4294901760
    %4833 = vmatpush1.msra.mxu0 %v4832
    %4834 = vmatprep.subr.mxu0 0.0
    %4835 = vmatpush1.msra.mxu0 0.0
    %4836 = vmatprep.subr.mxu0 0.0
    %4837 = vmatpush1.msra.mxu0 0.0
    %4838 = vmatprep.subr.mxu0 0.0
    %4839 = vmatpush1.msra.mxu0 0.0
    %4840 = vmatprep.subr.mxu0 0.0
    %4841 = vmatpush1.msra.mxu0 0.0
    %4842 = vmatprep.subr.mxu0 0.0
    %4843 = vmatpush1.msra.mxu0 0.0
    %4844 = vmatprep.subr.mxu0 0.0
    %4845 = vmatpush1.msra.mxu0 0.0
    %4846 = vmatprep.subr.mxu0 0.0
    %4847 = vmatpush1.msra.mxu0 0.0
    %4848 = vmatprep.subr.mxu0 0.0
    %4849 = vmatpush1.msra.mxu0 0.0
    %4850 = vmatprep.subr.mxu0 0.0
    %4851 = vmatpush1.msra.mxu0 0.0
    %4852 = vmatprep.subr.mxu0 0.0
    %4853 = vmatpush1.msra.mxu0 0.0
    %4854 = vmatprep.subr.mxu0 0.0
    %4855 = vmatpush1.msra.mxu0 0.0
    %4856 = vmatprep.subr.mxu0 0.0
    %4857 = vmatpush1.msra.mxu0 0.0
    %4858 = vmatprep.subr.mxu0 0.0
    %4859 = vmatpush1.msra.mxu0 0.0
    %4860 = vmatprep.subr.mxu0 0.0
    %4861 = vmatpush1.msra.mxu0 0.0
    %4862 = vmatprep.subr.mxu0 0.0
    %4863 = vmatpush1.msra.mxu0 0.0
    %4864 = vmatprep.subr.mxu0 0.0
    %4865 = vmatpush1.msra.mxu0 0.0
    %4866 = vmatprep.subr.mxu0 0.0
    %4867 = vmatpush1.msra.mxu0 0.0
    %4868 = vmatprep.subr.mxu0 0.0
    %4869 = vmatpush1.msra.mxu0 0.0
    %4870 = vmatprep.subr.mxu0 0.0
    %4871 = vmatpush1.msra.mxu0 0.0
    %4872 = vmatprep.subr.mxu0 0.0
    %4873 = vmatpush1.msra.mxu0 0.0
    %4874 = vmatprep.subr.mxu0 0.0
    %4875 = vmatpush1.msra.mxu0 0.0
    %4876 = vmatprep.subr.mxu0 0.0
    %4877 = vmatpush1.msra.mxu0 0.0
    %4878 = vmatprep.subr.mxu0 0.0
    %4879 = vmatpush1.msra.mxu0 0.0
    %4880 = vmatprep.subr.mxu0 0.0
    %4881 = vmatpush1.msra.mxu0 0.0
    %4882 = vmatprep.subr.mxu0 0.0
    %4883 = vmatpush1.msra.mxu0 0.0
    %4884 = vmatprep.subr.mxu0 0.0
    %4885 = vmatpush1.msra.mxu0 0.0
    %4886 = vmatprep.subr.mxu0 0.0
    %4887 = vmatpush1.msra.mxu0 0.0
    %4888 = vmatprep.subr.mxu0 0.0
    %4889 = vmatpush1.msra.mxu0 0.0
    %4890 = vmatprep.mubr.f32.mxu0 0.0
    %v4891 = vand.u32 %v3656, 4294901760
    %4892 = vmatmul.mubr.f32.gmra.mrb[0].mxu0 %v4891
    %v4893 = vpop.f32.mrb[0].mxu0
    %v4894 = vadd.f32 %v4773, %v4893
    %v4895 = vpop.f32.mrb[0].mxu0
    %4896 = vmatprep.mubr.f32.mxu0 0.0
    %v4897 = vand.u32 %v3659, 4294901760
    %4898 = vmatmul.mubr.f32.gmra.mrb[0].mxu0 %v4897
    %v4899 = vpop.f32.mrb[0].mxu0
    %v4900 = vadd.f32 %v4783, %v4899
    %v4901 = vpop.f32.mrb[0].mxu0
    %4902 = vmatprep.mubr.f32.mxu0 0.0
    %v4903 = vand.u32 %v3662, 4294901760
    %4904 = vmatmul.mubr.f32.gmra.mrb[0].mxu0 %v4903
    %v4905 = vpop.f32.mrb[0].mxu0
    %v4906 = vadd.f32 %v4793, %v4905
    %v4907 = vpop.f32.mrb[0].mxu0
    %4908 = vmatprep.mubr.f32.mxu0 0.0
    %v4909 = vand.u32 %v3665, 4294901760
    %4910 = vmatmul.mubr.f32.gmra.mrb[0].mxu0 %v4909
    %v4911 = vpop.f32.mrb[0].mxu0
    %v4912 = vadd.f32 %v4803, %v4911
    %v4913 = vpop.f32.mrb[0].mxu0
    %4914 = vdwg.mxu0
    %4915 = vmatprep.subr.mxu0 0.0
    %v4916 = vand.u32 %v3651, 4294901760
    %v4917 = vsub.f32 %v3651, %v4916
    %4918 = vmatpush1.msra.mxu0 %v4917
    %4919 = vmatprep.subr.mxu0 0.0
    %v4920 = vand.u32 %v3652, 4294901760
    %v4921 = vsub.f32 %v3652, %v4920
    %4922 = vmatpush1.msra.mxu0 %v4921
    %4923 = vmatprep.subr.mxu0 0.0
    %v4924 = vand.u32 %v3653, 4294901760
    %v4925 = vsub.f32 %v3653, %v4924
    %4926 = vmatpush1.msra.mxu0 %v4925
    %4927 = vmatprep.subr.mxu0 0.0
    %v4928 = vand.u32 %v3654, 4294901760
    %v4929 = vsub.f32 %v3654, %v4928
    %4930 = vmatpush1.msra.mxu0 %v4929
    %4931 = vmatprep.subr.mxu0 0.0
    %4932 = vmatpush1.msra.mxu0 0.0
    %4933 = vmatprep.subr.mxu0 0.0
    %4934 = vmatpush1.msra.mxu0 0.0
    %4935 = vmatprep.subr.mxu0 0.0
    %4936 = vmatpush1.msra.mxu0 0.0
    %4937 = vmatprep.subr.mxu0 0.0
    %4938 = vmatpush1.msra.mxu0 0.0
    %4939 = vmatprep.subr.mxu0 0.0
    %4940 = vmatpush1.msra.mxu0 0.0
    %4941 = vmatprep.subr.mxu0 0.0
    %4942 = vmatpush1.msra.mxu0 0.0
    %4943 = vmatprep.subr.mxu0 0.0
    %4944 = vmatpush1.msra.mxu0 0.0
    %4945 = vmatprep.subr.mxu0 0.0
    %4946 = vmatpush1.msra.mxu0 0.0
    %4947 = vmatprep.subr.mxu0 0.0
    %4948 = vmatpush1.msra.mxu0 0.0
    %4949 = vmatprep.subr.mxu0 0.0
    %4950 = vmatpush1.msra.mxu0 0.0
    %4951 = vmatprep.subr.mxu0 0.0
    %4952 = vmatpush1.msra.mxu0 0.0
    %4953 = vmatprep.subr.mxu0 0.0
    %4954 = vmatpush1.msra.mxu0 0.0
    %4955 = vmatprep.subr.mxu0 0.0
    %4956 = vmatpush1.msra.mxu0 0.0
    %4957 = vmatprep.subr.mxu0 0.0
    %4958 = vmatpush1.msra.mxu0 0.0
    %4959 = vmatprep.subr.mxu0 0.0
    %4960 = vmatpush1.msra.mxu0 0.0
    %4961 = vmatprep.subr.mxu0 0.0
    %4962 = vmatpush1.msra.mxu0 0.0
    %4963 = vmatprep.subr.mxu0 0.0
    %4964 = vmatpush1.msra.mxu0 0.0
    %4965 = vmatprep.subr.mxu0 0.0
    %4966 = vmatpush1.msra.mxu0 0.0
    %4967 = vmatprep.subr.mxu0 0.0
    %4968 = vmatpush1.msra.mxu0 0.0
    %4969 = vmatprep.subr.mxu0 0.0
    %4970 = vmatpush1.msra.mxu0 0.0
    %4971 = vmatprep.subr.mxu0 0.0
    %4972 = vmatpush1.msra.mxu0 0.0
    %4973 = vmatprep.subr.mxu0 0.0
    %4974 = vmatpush1.msra.mxu0 0.0
    %4975 = vmatprep.subr.mxu0 0.0
    %4976 = vmatpush1.msra.mxu0 0.0
    %4977 = vmatprep.subr.mxu0 0.0
    %4978 = vmatpush1.msra.mxu0 0.0
    %4979 = vmatprep.subr.mxu0 0.0
    %4980 = vmatpush1.msra.mxu0 0.0
    %4981 = vmatprep.subr.mxu0 0.0
    %4982 = vmatpush1.msra.mxu0 0.0
    %4983 = vmatprep.subr.mxu0 0.0
    %4984 = vmatpush1.msra.mxu0 0.0
    %4985 = vmatprep.subr.mxu0 0.0
    %4986 = vmatpush1.msra.mxu0 0.0
    %4987 = vmatprep.mubr.f32.mxu0 0.0
    %v4988 = vand.u32 %v3656, 4294901760
    %v4989 = vsub.f32 %v3656, %v4988
    %4990 = vmatmul.mubr.f32.gmra.mrb[0].mxu0 %v4989
    %v4991 = vpop.f32.mrb[0].mxu0
    %v4992 = vadd.f32 %v4894, %v4991
    %v4993 = vpop.f32.mrb[0].mxu0
    %4994 = vmatprep.mubr.f32.mxu0 0.0
    %v4995 = vand.u32 %v3659, 4294901760
    %v4996 = vsub.f32 %v3659, %v4995
    %4997 = vmatmul.mubr.f32.gmra.mrb[0].mxu0 %v4996
    %v4998 = vpop.f32.mrb[0].mxu0
    %v4999 = vadd.f32 %v4900, %v4998
    %v5000 = vpop.f32.mrb[0].mxu0
    %5001 = vmatprep.mubr.f32.mxu0 0.0
    %v5002 = vand.u32 %v3662, 4294901760
    %v5003 = vsub.f32 %v3662, %v5002
    %5004 = vmatmul.mubr.f32.gmra.mrb[0].mxu0 %v5003
    %v5005 = vpop.f32.mrb[0].mxu0
    %v5006 = vadd.f32 %v4906, %v5005
    %v5007 = vpop.f32.mrb[0].mxu0
    %5008 = vmatprep.mubr.f32.mxu0 0.0
    %v5009 = vand.u32 %v3665, 4294901760
    %v5010 = vsub.f32 %v3665, %v5009
    %5011 = vmatmul.mubr.f32.gmra.mrb[0].mxu0 %v5010
    %v5012 = vpop.f32.mrb[0].mxu0
    %v5013 = vadd.f32 %v4912, %v5012
    %v5014 = vpop.f32.mrb[0].mxu0
    %5015 = vdwg.mxu0
    %5016 = vmatprep.subr.mxu0 0.0
    %v5017 = vand.u32 %v3651, 4294901760
    %5018 = vmatpush1.msra.mxu0 %v5017
    %5019 = vmatprep.subr.mxu0 0.0
    %v5020 = vand.u32 %v3652, 4294901760
    %5021 = vmatpush1.msra.mxu0 %v5020
    %5022 = vmatprep.subr.mxu0 0.0
    %v5023 = vand.u32 %v3653, 4294901760
    %5024 = vmatpush1.msra.mxu0 %v5023
    %5025 = vmatprep.subr.mxu0 0.0
    %v5026 = vand.u32 %v3654, 4294901760
    %5027 = vmatpush1.msra.mxu0 %v5026
    %5028 = vmatprep.subr.mxu0 0.0
    %5029 = vmatpush1.msra.mxu0 0.0
    %5030 = vmatprep.subr.mxu0 0.0
    %5031 = vmatpush1.msra.mxu0 0.0
    %5032 = vmatprep.subr.mxu0 0.0
    %5033 = vmatpush1.msra.mxu0 0.0
    %5034 = vmatprep.subr.mxu0 0.0
    %5035 = vmatpush1.msra.mxu0 0.0
    %5036 = vmatprep.subr.mxu0 0.0
    %5037 = vmatpush1.msra.mxu0 0.0
    %5038 = vmatprep.subr.mxu0 0.0
    %5039 = vmatpush1.msra.mxu0 0.0
    %5040 = vmatprep.subr.mxu0 0.0
    %5041 = vmatpush1.msra.mxu0 0.0
    %5042 = vmatprep.subr.mxu0 0.0
    %5043 = vmatpush1.msra.mxu0 0.0
    %5044 = vmatprep.subr.mxu0 0.0
    %5045 = vmatpush1.msra.mxu0 0.0
    %5046 = vmatprep.subr.mxu0 0.0
    %5047 = vmatpush1.msra.mxu0 0.0
    %5048 = vmatprep.subr.mxu0 0.0
    %5049 = vmatpush1.msra.mxu0 0.0
    %5050 = vmatprep.subr.mxu0 0.0
    %5051 = vmatpush1.msra.mxu0 0.0
    %5052 = vmatprep.subr.mxu0 0.0
    %5053 = vmatpush1.msra.mxu0 0.0
    %5054 = vmatprep.subr.mxu0 0.0
    %5055 = vmatpush1.msra.mxu0 0.0
    %5056 = vmatprep.subr.mxu0 0.0
    %5057 = vmatpush1.msra.mxu0 0.0
    %5058 = vmatprep.subr.mxu0 0.0
    %5059 = vmatpush1.msra.mxu0 0.0
    %5060 = vmatprep.subr.mxu0 0.0
    %5061 = vmatpush1.msra.mxu0 0.0
    %5062 = vmatprep.subr.mxu0 0.0
    %5063 = vmatpush1.msra.mxu0 0.0
    %5064 = vmatprep.subr.mxu0 0.0
    %5065 = vmatpush1.msra.mxu0 0.0
    %5066 = vmatprep.subr.mxu0 0.0
    %5067 = vmatpush1.msra.mxu0 0.0
    %5068 = vmatprep.subr.mxu0 0.0
    %5069 = vmatpush1.msra.mxu0 0.0
    %5070 = vmatprep.subr.mxu0 0.0
    %5071 = vmatpush1.msra.mxu0 0.0
    %5072 = vmatprep.subr.mxu0 0.0
    %5073 = vmatpush1.msra.mxu0 0.0
    %5074 = vmatprep.subr.mxu0 0.0
    %5075 = vmatpush1.msra.mxu0 0.0
    %5076 = vmatprep.subr.mxu0 0.0
    %5077 = vmatpush1.msra.mxu0 0.0
    %5078 = vmatprep.subr.mxu0 0.0
    %5079 = vmatpush1.msra.mxu0 0.0
    %5080 = vmatprep.subr.mxu0 0.0
    %5081 = vmatpush1.msra.mxu0 0.0
    %5082 = vmatprep.subr.mxu0 0.0
    %5083 = vmatpush1.msra.mxu0 0.0
    %5084 = vmatprep.mubr.f32.mxu0 0.0
    %v5085 = vand.u32 %v3656, 4294901760
    %v5086 = vsub.f32 %v3656, %v5085
    %v5087 = vand.u32 %v5086, 4294901760
    %5088 = vmatmul.mubr.f32.gmra.mrb[0].mxu0 %v5087
    %v5089 = vpop.f32.mrb[0].mxu0
    %v5090 = vadd.f32 %v4992, %v5089
    %v5091 = vpop.f32.mrb[0].mxu0
    %5092 = vmatprep.mubr.f32.mxu0 0.0
    %v5093 = vand.u32 %v3659, 4294901760
    %v5094 = vsub.f32 %v3659, %v5093
    %v5095 = vand.u32 %v5094, 4294901760
    %5096 = vmatmul.mubr.f32.gmra.mrb[0].mxu0 %v5095
    %v5097 = vpop.f32.mrb[0].mxu0
    %v5098 = vadd.f32 %v4999, %v5097
    %v5099 = vpop.f32.mrb[0].mxu0
    %5100 = vmatprep.mubr.f32.mxu0 0.0
    %v5101 = vand.u32 %v3662, 4294901760
    %v5102 = vsub.f32 %v3662, %v5101
    %v5103 = vand.u32 %v5102, 4294901760
    %5104 = vmatmul.mubr.f32.gmra.mrb[0].mxu0 %v5103
    %v5105 = vpop.f32.mrb[0].mxu0
    %v5106 = vadd.f32 %v5006, %v5105
    %v5107 = vpop.f32.mrb[0].mxu0
    %5108 = vmatprep.mubr.f32.mxu0 0.0
    %v5109 = vand.u32 %v3665, 4294901760
    %v5110 = vsub.f32 %v3665, %v5109
    %v5111 = vand.u32 %v5110, 4294901760
    %5112 = vmatmul.mubr.f32.gmra.mrb[0].mxu0 %v5111
    %v5113 = vpop.f32.mrb[0].mxu0
    %v5114 = vadd.f32 %v5013, %v5113
    %v5115 = vpop.f32.mrb[0].mxu0
    %5116 = vdwg.mxu0
    %5117 = vmatprep.subr.mxu0 0.0
    %v5118 = vand.u32 %v3651, 4294901760
    %v5119 = vsub.f32 %v3651, %v5118
    %v5120 = vand.u32 %v5119, 4294901760
    %5121 = vmatpush1.msra.mxu0 %v5120
    %5122 = vmatprep.subr.mxu0 0.0
    %v5123 = vand.u32 %v3652, 4294901760
    %v5124 = vsub.f32 %v3652, %v5123
    %v5125 = vand.u32 %v5124, 4294901760
    %5126 = vmatpush1.msra.mxu0 %v5125
    %5127 = vmatprep.subr.mxu0 0.0
    %v5128 = vand.u32 %v3653, 4294901760
    %v5129 = vsub.f32 %v3653, %v5128
    %v5130 = vand.u32 %v5129, 4294901760
    %5131 = vmatpush1.msra.mxu0 %v5130
    %5132 = vmatprep.subr.mxu0 0.0
    %v5133 = vand.u32 %v3654, 4294901760
    %v5134 = vsub.f32 %v3654, %v5133
    %v5135 = vand.u32 %v5134, 4294901760
    %5136 = vmatpush1.msra.mxu0 %v5135
    %5137 = vmatprep.subr.mxu0 0.0
    %5138 = vmatpush1.msra.mxu0 0.0
    %5139 = vmatprep.subr.mxu0 0.0
    %5140 = vmatpush1.msra.mxu0 0.0
    %5141 = vmatprep.subr.mxu0 0.0
    %5142 = vmatpush1.msra.mxu0 0.0
    %5143 = vmatprep.subr.mxu0 0.0
    %5144 = vmatpush1.msra.mxu0 0.0
    %5145 = vmatprep.subr.mxu0 0.0
    %5146 = vmatpush1.msra.mxu0 0.0
    %5147 = vmatprep.subr.mxu0 0.0
    %5148 = vmatpush1.msra.mxu0 0.0
    %5149 = vmatprep.subr.mxu0 0.0
    %5150 = vmatpush1.msra.mxu0 0.0
    %5151 = vmatprep.subr.mxu0 0.0
    %5152 = vmatpush1.msra.mxu0 0.0
    %5153 = vmatprep.subr.mxu0 0.0
    %5154 = vmatpush1.msra.mxu0 0.0
    %5155 = vmatprep.subr.mxu0 0.0
    %5156 = vmatpush1.msra.mxu0 0.0
    %5157 = vmatprep.subr.mxu0 0.0
    %5158 = vmatpush1.msra.mxu0 0.0
    %5159 = vmatprep.subr.mxu0 0.0
    %5160 = vmatpush1.msra.mxu0 0.0
    %5161 = vmatprep.subr.mxu0 0.0
    %5162 = vmatpush1.msra.mxu0 0.0
    %5163 = vmatprep.subr.mxu0 0.0
    %5164 = vmatpush1.msra.mxu0 0.0
    %5165 = vmatprep.subr.mxu0 0.0
    %5166 = vmatpush1.msra.mxu0 0.0
    %5167 = vmatprep.subr.mxu0 0.0
    %5168 = vmatpush1.msra.mxu0 0.0
    %5169 = vmatprep.subr.mxu0 0.0
    %5170 = vmatpush1.msra.mxu0 0.0
    %5171 = vmatprep.subr.mxu0 0.0
    %5172 = vmatpush1.msra.mxu0 0.0
    %5173 = vmatprep.subr.mxu0 0.0
    %5174 = vmatpush1.msra.mxu0 0.0
    %5175 = vmatprep.subr.mxu0 0.0
    %5176 = vmatpush1.msra.mxu0 0.0
    %5177 = vmatprep.subr.mxu0 0.0
    %5178 = vmatpush1.msra.mxu0 0.0
    %5179 = vmatprep.subr.mxu0 0.0
    %5180 = vmatpush1.msra.mxu0 0.0
    %5181 = vmatprep.subr.mxu0 0.0
    %5182 = vmatpush1.msra.mxu0 0.0
    %5183 = vmatprep.subr.mxu0 0.0
    %5184 = vmatpush1.msra.mxu0 0.0
    %5185 = vmatprep.subr.mxu0 0.0
    %5186 = vmatpush1.msra.mxu0 0.0
    %5187 = vmatprep.subr.mxu0 0.0
    %5188 = vmatpush1.msra.mxu0 0.0
    %5189 = vmatprep.subr.mxu0 0.0
    %5190 = vmatpush1.msra.mxu0 0.0
    %5191 = vmatprep.subr.mxu0 0.0
    %5192 = vmatpush1.msra.mxu0 0.0
    %5193 = vmatprep.mubr.f32.mxu0 0.0
    %v5194 = vand.u32 %v3656, 4294901760
    %5195 = vmatmul.mubr.f32.gmra.mrb[0].mxu0 %v5194
    %v5196 = vpop.f32.mrb[0].mxu0
    %v5197 = vadd.f32 %v5090, %v5196
    %v5198 = vpop.f32.mrb[0].mxu0
    %5199 = vmatprep.mubr.f32.mxu0 0.0
    %v5200 = vand.u32 %v3659, 4294901760
    %5201 = vmatmul.mubr.f32.gmra.mrb[0].mxu0 %v5200
    %v5202 = vpop.f32.mrb[0].mxu0
    %v5203 = vadd.f32 %v5098, %v5202
    %v5204 = vpop.f32.mrb[0].mxu0
    %5205 = vmatprep.mubr.f32.mxu0 0.0
    %v5206 = vand.u32 %v3662, 4294901760
    %5207 = vmatmul.mubr.f32.gmra.mrb[0].mxu0 %v5206
    %v5208 = vpop.f32.mrb[0].mxu0
    %v5209 = vadd.f32 %v5106, %v5208
    %v5210 = vpop.f32.mrb[0].mxu0
    %5211 = vmatprep.mubr.f32.mxu0 0.0
    %v5212 = vand.u32 %v3665, 4294901760
    %5213 = vmatmul.mubr.f32.gmra.mrb[0].mxu0 %v5212
    %v5214 = vpop.f32.mrb[0].mxu0
    %v5215 = vadd.f32 %v5114, %v5214
    %v5216 = vpop.f32.mrb[0].mxu0
    %5217 = vdwg.mxu0
    %5218 = vmatprep.subr.mxu0 0.0
    %v5219 = vand.u32 %v3651, 4294901760
    %5220 = vmatpush1.msra.mxu0 %v5219
    %5221 = vmatprep.subr.mxu0 0.0
    %v5222 = vand.u32 %v3652, 4294901760
    %5223 = vmatpush1.msra.mxu0 %v5222
    %5224 = vmatprep.subr.mxu0 0.0
    %v5225 = vand.u32 %v3653, 4294901760
    %5226 = vmatpush1.msra.mxu0 %v5225
    %5227 = vmatprep.subr.mxu0 0.0
    %v5228 = vand.u32 %v3654, 4294901760
    %5229 = vmatpush1.msra.mxu0 %v5228
    %5230 = vmatprep.subr.mxu0 0.0
    %5231 = vmatpush1.msra.mxu0 0.0
    %5232 = vmatprep.subr.mxu0 0.0
    %5233 = vmatpush1.msra.mxu0 0.0
    %5234 = vmatprep.subr.mxu0 0.0
    %5235 = vmatpush1.msra.mxu0 0.0
    %5236 = vmatprep.subr.mxu0 0.0
    %5237 = vmatpush1.msra.mxu0 0.0
    %5238 = vmatprep.subr.mxu0 0.0
    %5239 = vmatpush1.msra.mxu0 0.0
    %5240 = vmatprep.subr.mxu0 0.0
    %5241 = vmatpush1.msra.mxu0 0.0
    %5242 = vmatprep.subr.mxu0 0.0
    %5243 = vmatpush1.msra.mxu0 0.0
    %5244 = vmatprep.subr.mxu0 0.0
    %5245 = vmatpush1.msra.mxu0 0.0
    %5246 = vmatprep.subr.mxu0 0.0
    %5247 = vmatpush1.msra.mxu0 0.0
    %5248 = vmatprep.subr.mxu0 0.0
    %5249 = vmatpush1.msra.mxu0 0.0
    %5250 = vmatprep.subr.mxu0 0.0
    %5251 = vmatpush1.msra.mxu0 0.0
    %5252 = vmatprep.subr.mxu0 0.0
    %5253 = vmatpush1.msra.mxu0 0.0
    %5254 = vmatprep.subr.mxu0 0.0
    %5255 = vmatpush1.msra.mxu0 0.0
    %5256 = vmatprep.subr.mxu0 0.0
    %5257 = vmatpush1.msra.mxu0 0.0
    %5258 = vmatprep.subr.mxu0 0.0
    %5259 = vmatpush1.msra.mxu0 0.0
    %5260 = vmatprep.subr.mxu0 0.0
    %5261 = vmatpush1.msra.mxu0 0.0
    %5262 = vmatprep.subr.mxu0 0.0
    %5263 = vmatpush1.msra.mxu0 0.0
    %5264 = vmatprep.subr.mxu0 0.0
    %5265 = vmatpush1.msra.mxu0 0.0
    %5266 = vmatprep.subr.mxu0 0.0
    %5267 = vmatpush1.msra.mxu0 0.0
    %5268 = vmatprep.subr.mxu0 0.0
    %5269 = vmatpush1.msra.mxu0 0.0
    %5270 = vmatprep.subr.mxu0 0.0
    %5271 = vmatpush1.msra.mxu0 0.0
    %5272 = vmatprep.subr.mxu0 0.0
    %5273 = vmatpush1.msra.mxu0 0.0
    %5274 = vmatprep.subr.mxu0 0.0
    %5275 = vmatpush1.msra.mxu0 0.0
    %5276 = vmatprep.subr.mxu0 0.0
    %5277 = vmatpush1.msra.mxu0 0.0
    %5278 = vmatprep.subr.mxu0 0.0
    %5279 = vmatpush1.msra.mxu0 0.0
    %5280 = vmatprep.subr.mxu0 0.0
    %5281 = vmatpush1.msra.mxu0 0.0
    %5282 = vmatprep.subr.mxu0 0.0
    %5283 = vmatpush1.msra.mxu0 0.0
    %5284 = vmatprep.subr.mxu0 0.0
    %5285 = vmatpush1.msra.mxu0 0.0
    %5286 = vmatprep.mubr.f32.mxu0 0.0
    %v5287 = vand.u32 %v3656, 4294901760
    %5288 = vmatmul.mubr.f32.gmra.mrb[0].mxu0 %v5287
    %v5289 = vpop.f32.mrb[0].mxu0
    %v5290 = vadd.f32 %v5197, %v5289
    %v5291 = vpop.f32.mrb[0].mxu0
    %5292 = vmatprep.mubr.f32.mxu0 0.0
    %v5293 = vand.u32 %v3659, 4294901760
    %5294 = vmatmul.mubr.f32.gmra.mrb[0].mxu0 %v5293
    %v5295 = vpop.f32.mrb[0].mxu0
    %v5296 = vadd.f32 %v5203, %v5295
    %v5297 = vpop.f32.mrb[0].mxu0
    %5298 = vmatprep.mubr.f32.mxu0 0.0
    %v5299 = vand.u32 %v3662, 4294901760
    %5300 = vmatmul.mubr.f32.gmra.mrb[0].mxu0 %v5299
    %v5301 = vpop.f32.mrb[0].mxu0
    %v5302 = vadd.f32 %v5209, %v5301
    %v5303 = vpop.f32.mrb[0].mxu0
    %5304 = vmatprep.mubr.f32.mxu0 0.0
    %v5305 = vand.u32 %v3665, 4294901760
    %5306 = vmatmul.mubr.f32.gmra.mrb[0].mxu0 %v5305
    %v5307 = vpop.f32.mrb[0].mxu0
    %v5308 = vadd.f32 %v5215, %v5307
    %v5309 = vpop.f32.mrb[0].mxu0
    %5310 = vdwg.mxu0
    %v5311 = vld [vmem:[%s10] sm:$0x1]
    %v5312 = vlaneseq
    %v5313 = vshrl.u32 %v5312, 7
    %v5314 = vsub.s32 0, %v5313
    %v5315 = vrot.slane %v5311, %v5314
    %v5316 = vmul.f32 %v5290, %v5315
    %v5317 = vmul.f32 %v5296, %v5315
    %v5318 = vmul.f32 %v5302, %v5315
    %v5319 = vmul.f32 %v5308, %v5315
    %v5320 = vld [vmem:[%s10 + $0x1] sm:$0x1]
    %v5321 = vlaneseq
    %v5322 = vshrl.u32 %v5321, 7
    %v5323 = vsub.s32 0, %v5322
    %v5324 = vrot.slane %v5320, %v5323
    %v5325 = vadd.f32 %v5316, %v5324
    %v5326 = vadd.f32 %v5317, %v5324
    %v5327 = vadd.f32 %v5318, %v5324
    %v5328 = vadd.f32 %v5319, %v5324
    %v5329 = vmax.f32 %v5325, 0.0
    %v5330 = vmax.f32 %v5326, 0.0
    %v5331 = vmax.f32 %v5327, 0.0
    %v5332 = vmax.f32 %v5328, 0.0
    %5333 = vst.msk [vmem:[#allocation2] sm:$0xff] %vm1779, %v5329
    %5334 = vst.msk [vmem:[#allocation2 + $0x8] sm:$0xff] %vm1779, %v5330
    %5335 = vst.msk [vmem:[#allocation2 + $0x10] sm:$0xff] %vm1779, %v5331
    %5336 = vst.msk [vmem:[#allocation2 + $0x18] sm:$0xff] %vm1779, %v5332
    // Predicated region
    $region50: #{stem_block.1} parent=1 // pred_check
      _
    $region51: #{stem_block.1} parent=1 // pred_check_branch
      %5338 = sbr.rel (0) target = $region53
    $region52: #{stem_block.1} parent=1 // pred_region
      %s5340 = ssub.s32 512, 512
      %5341 = vsyncadd [#allocation3], %s5340
      %s5342 = sshll.u32 [#allocation2], 4
      %s5343 = int_to_ptr.vmem [resolvable:$true] %s5342
      %5348 = dma.vmem_to_hbm [thread:$0]  %s5343, 512, %s12, [#allocation3], 128, 128, 8
    $region53: #{stem_block.1} parent=1 // pred_fallthru
      _
    // Predicated region
    $region54: #{stem_block.1} parent=1 // pred_check
      _
    $region55: #{stem_block.1} parent=1 // pred_check_branch
      %5350 = sbr.rel (0) target = $region57
    $region56: #{stem_block.1} parent=1 // pred_region
      %5351 = dma.done [#allocation3], 512
    $region57: #{stem_block.1} parent=1 // pred_fallthru
      _
    %5352 = vsyncpa [#allocation3], 1

</llo_original>
